<compile_context>
chip_gen: v5e
topology: v5e:2x2
jax: 0.10.0
libtpu: 0.0.40
codegen_flags: <defaults>
</compile_context>

<pallas_src>
import jax
import jax.numpy as jnp
from jax import lax
from jax.experimental import pallas as pl
from jax.experimental.pallas import tpu as pltpu


# ------------------------------ fused kernel -------------------------------- #

def _make_fused_kernel(H, W, TH, C, c_mid):
    """Fused GSConv(+residual) kernel body for a fixed tile geometry."""
    h2 = c_mid // 2
    M = (TH + 4) * W  # rows fed to the 1x1-conv matmul (tile + 2-row halo each side)

    def kernel(x_ref, xt_ref, xb_ref, w1_ref, b1_ref, w2_ref, b2_ref,
               o_ref, x1p_ref):
        t = pl.program_id(1)

        # ---- cv1: 1x1 conv (+folded BN) + SiLU on the halo'd row window ------
        # bf16 operands + f32 accumulation -> native MXU rate.
        xwin = jnp.concatenate([xt_ref[0], x_ref[0], xb_ref[0]], axis=0)  # (TH+4, W, C)
        xm = xwin.reshape(M, C).astype(jnp.bfloat16)
        acc1 = jnp.dot(xm, w1_ref[...], preferred_element_type=jnp.float32)
        acc1 = acc1 + b1_ref[...]                                          # (M, c_mid)
        x1w = acc1 * pl.reciprocal(1.0 + jnp.exp(-acc1), approx=True)      # SiLU
        x1w = x1w.reshape(TH + 4, W, c_mid)

        # cv2 zero-pads *x1*, so halo rows outside the image must be exactly 0
        # (this also neutralizes the clamped halo blocks at the image edges).
        row = lax.broadcasted_iota(jnp.int32, (TH + 4, W, c_mid), 0)
        grow = t * TH - 2 + row                       # original-image row index
        x1w = jnp.where((grow >= 0) & (grow < H), x1w, 0.0)

        # Stage the zero-padded x1 window in VMEM scratch: (TH+4, W+4, c_mid).
        x1p_ref[...] = jnp.zeros((TH + 4, W + 4, c_mid), jnp.float32)
        x1p_ref[:, 2:2 + W, :] = x1w

        # ---- cv2: depthwise 5x5 (+folded BN) + SiLU --------------------------
        # Each tap slices the scratch REF (cheap view), statically unrolled.
        w2 = w2_ref[...]                              # (25, c_mid) f32
        acc2 = jnp.zeros((TH, W, c_mid), jnp.float32)
        for ky in range(5):
            for kx in range(5):
                tap = w2[ky * 5 + kx, :].reshape(1, 1, c_mid)
                acc2 = acc2 + x1p_ref[ky:ky + TH, kx:kx + W, :] * tap
        acc2 = acc2 + b2_ref[...].reshape(1, 1, c_mid)
        dw = acc2 * pl.reciprocal(1.0 + jnp.exp(-acc2), approx=True)       # SiLU

        # ---- groups=2 channel shuffle + residual -----------------------------
        # Weights were pre-permuted (evens-then-odds), so the shuffled output is
        # just contiguous channel blocks: [x1_even, dw_even, x1_odd, dw_odd].
        x1 = x1p_ref[2:2 + TH, 2:2 + W, :]
        y = jnp.concatenate(
            [x1[..., :h2], dw[..., :h2], x1[..., h2:], dw[..., h2:]], axis=-1)
        o_ref[0] = y + x_ref[0]                       # Residual: fn(x) + x

    return kernel


def _pick_tile_h(H, W, C, c_mid, budget_bytes=6 * 1024 * 1024):
    """Largest even divisor of H whose per-step footprint (double-buffered x/out
    tiles + x1 scratch, f32) fits the budget; prefer >=2 row-tiles so the
    BlockSpec pipeline has DMA/compute to overlap."""
    cands = [th for th in range(2, H + 1, 2) if H % th == 0]
    if not cands:
        return H

    def foot(th):
        return 4 * (4 * th * W * C + (th + 4) * (W + 4) * c_mid)

    fitting = [th for th in cands if foot(th) <= budget_bytes]
    th = max(fitting) if fitting else min(cands)
    if th == H and (H // 2) in cands and H >= 4:
        th = H // 2
    return th


# --------------------------------- wrapper ---------------------------------- #

def residual_gsconv_forward(x_nchw, w1, b1, w2, b2, *, tile_h=None):
    """Forward of Residual(fn) with fn = GSConv(c, c, 1, 1) (eval mode).

    x_nchw: (B, C, H, W) f32.
    w1: (C, c_) BN-folded 1x1-conv weight,          b1: (1, c_) folded bias.
    w2: (25, c_) BN-folded depthwise 5x5 taps (row-major ky*5+kx), b2: (1, c_).
    Returns (B, C, H, W) = GSConv(x) + x.
    """
    B, C, H, W = x_nchw.shape
    c_mid = w1.shape[1]
    assert C == 2 * c_mid, "Residual requires GSConv c2 == c1"
    assert c_mid % 2 == 0, "shuffle-as-permutation assumes an even hidden width"
    assert H % 2 == 0, "halo blocking assumes even H"
    # TODO(synk): odd H / odd c_ would need Element-indexed halo blocks and a
    # gather-based in-kernel shuffle; not needed for standard GSConv configs.

    # groups=2 channel shuffle == a fixed channel permutation of cat(x1, dw).
    # Permute the *weights* (evens-then-odds) so the kernel writes directly in
    # shuffled order with contiguous slices.
    perm = jnp.concatenate([jnp.arange(0, c_mid, 2), jnp.arange(1, c_mid, 2)])
    w1p = w1[:, perm].astype(jnp.bfloat16)   # MXU operand, pre-cast once
    b1p, w2p, b2p = b1[:, perm], w2[:, perm], b2[:, perm]

    x_nhwc = jnp.transpose(x_nchw, (0, 2, 3, 1))  # channels-last: C on lanes

    TH = tile_h if tile_h is not None else _pick_tile_h(H, W, C, c_mid)
    assert H % TH == 0 and TH % 2 == 0
    T = H // TH
    kernel = _make_fused_kernel(H, W, TH, C, c_mid)

    out_nhwc = pl.pallas_call(
        kernel,
        out_shape=jax.ShapeDtypeStruct((B, H, W, C), jnp.float32),
        grid_spec=pltpu.PrefetchScalarGridSpec(
            num_scalar_prefetch=0,
            grid=(B, T),                                  # batch x row-tiles
            in_specs=[
                # main row tile
                pl.BlockSpec((1, TH, W, C), lambda b, t: (b, t, 0, 0)),
                # 2-row halo just above / below the tile (block indices clamped
                # at the image edges; kernel masks those rows to zero)
                pl.BlockSpec((1, 2, W, C),
                             lambda b, t: (b, jnp.maximum(t * (TH // 2) - 1, 0), 0, 0)),
                pl.BlockSpec((1, 2, W, C),
                             lambda b, t: (b, jnp.minimum((t + 1) * (TH // 2), H // 2 - 1), 0, 0)),
                # weights / biases (small, resident)
                pl.BlockSpec((C, c_mid), lambda b, t: (0, 0)),
                pl.BlockSpec((1, c_mid), lambda b, t: (0, 0)),
                pl.BlockSpec((25, c_mid), lambda b, t: (0, 0)),
                pl.BlockSpec((1, c_mid), lambda b, t: (0, 0)),
            ],
            out_specs=pl.BlockSpec((1, TH, W, C), lambda b, t: (b, t, 0, 0)),
            scratch_shapes=[pltpu.VMEM((TH + 4, W + 4, c_mid), jnp.float32)],
        ),
        compiler_params=pltpu.CompilerParams(
            dimension_semantics=("parallel", "parallel"),  # megacore-friendly
            vmem_limit_bytes=32 * 1024 * 1024,
        ),
    )(x_nhwc, x_nhwc, x_nhwc, w1p, b1p, w2p, b2p)

    return jnp.transpose(out_nhwc, (0, 3, 1, 2))


# ---------------------------- pure-JAX reference ----------------------------- #

def _silu_ref(v):
    return v * jax.nn.sigmoid(v)


def reference_residual_gsconv(x_nchw, w1, b1, w2_oihw, b2):
    B, C, H, W = x_nchw.shape
    c_ = w1.shape[1]
    x_nhwc = jnp.transpose(x_nchw, (0, 2, 3, 1))
    x1 = _silu_ref(
        jnp.einsum("bhwc,cd->bhwd", x_nhwc, w1,
                   precision=lax.Precision.HIGHEST) + b1[0])
    x1_nchw = jnp.transpose(x1, (0, 3, 1, 2))
    dw = lax.conv_general_dilated(
        x1_nchw, w2_oihw, (1, 1), ((2, 2), (2, 2)),
        feature_group_count=c_,
        dimension_numbers=("NCHW", "OIHW", "NCHW"),
        precision=lax.Precision.HIGHEST)
    dw = _silu_ref(dw + b2[0][None, :, None, None])
    x2 = jnp.concatenate([x1_nchw, dw], axis=1)
    b, n, h, w = x2.shape
    y = x2.reshape(b * n // 2, 2, h * w).transpose(1, 0, 2).reshape(2, b, n // 2, h, w)
    gs = jnp.concatenate([y[0], y[1]], axis=1)
    return gs + x_nchw            # Residual: fn(x) + x


# ----------------------------------- main ------------------------------------ #

if __name__ == "__main__":
    B, C, H, W = 2, 8, 16, 16     # Residual(GSConv(c, c)) needs c1 == c2
    c_ = C // 2
    eps = 1e-5

    key = jax.random.PRNGKey(0)
    k_x, k_w1, k_w2 = jax.random.split(key, 3)

    x = jax.random.normal(k_x, (B, C, H, W), dtype=jnp.float32)

    # conv weights (PyTorch shapes): cv1 (c_, C, 1, 1), cv2 depthwise (c_, 1, 5, 5)
    w1_oihw = jax.random.normal(k_w1, (c_, C, 1, 1), dtype=jnp.float32) * 0.3
    w2_oihw = jax.random.normal(k_w2, (c_, 1, 5, 5), dtype=jnp.float32) * 0.1

    # deterministic BatchNorm params (eval mode), folded into the convs (exact)
    gamma1 = 1.0 + 0.10 * jnp.arange(c_, dtype=jnp.float32)
    beta1 = 0.05 * jnp.arange(c_, dtype=jnp.float32)
    mean1 = 0.01 * jnp.arange(c_, dtype=jnp.float32)
    var1 = 1.0 + 0.02 * jnp.arange(c_, dtype=jnp.float32)
    gamma2 = 1.0 - 0.05 * jnp.arange(c_, dtype=jnp.float32)
    beta2 = -0.03 * jnp.arange(c_, dtype=jnp.float32)
    mean2 = 0.02 * jnp.arange(c_, dtype=jnp.float32)
    var2 = 1.0 + 0.04 * jnp.arange(c_, dtype=jnp.float32)

    scale1 = gamma1 / jnp.sqrt(var1 + eps)
    scale2 = gamma2 / jnp.sqrt(var2 + eps)

    w1 = (w1_oihw[:, :, 0, 0] * scale1[:, None]).T            # (C, c_)
    b1 = (beta1 - mean1 * scale1)[None, :]                    # (1, c_)
    w2_oihw_f = w2_oihw * scale2[:, None, None, None]         # folded OIHW (reference)
    w2 = jnp.transpose(w2_oihw_f[:, 0], (1, 2, 0)).reshape(25, c_)  # (25, c_) taps
    b2 = (beta2 - mean2 * scale2)[None, :]                    # (1, c_)

    fwd = jax.jit(residual_gsconv_forward, static_argnames=("tile_h",))

    out = jax.block_until_ready(fwd(x, w1, b1, w2, b2))
    ref = jax.block_until_ready(reference_residual_gsconv(x, w1, b1, w2_oihw_f, b2))

    assert out.shape == (B, C, H, W), out.shape
    assert out.dtype == jnp.float32
    # bf16 MXU + approx-reciprocal SiLU -> compare with bf16-level tolerance.
    err = float(jnp.max(jnp.abs(out - ref)))
    assert jnp.allclose(out, ref, atol=2e-2, rtol=2e-2), err

    # exercise the multi-tile halo path (4 row tiles, incl. interior tiles)
    out4 = jax.block_until_ready(fwd(x, w1, b1, w2, b2, tile_h=4))
    err4 = float(jnp.max(jnp.abs(out4 - ref)))
    assert jnp.allclose(out4, ref, atol=2e-2, rtol=2e-2), err4

    print("KERNEL_OK")
</pallas_src>

<mosaic_0001>
module attributes {stable_mosaic.version = 11 : i64} {
  func.func @kernel(%arg0: i32, %arg1: i32, %arg2: memref<1x8x16x8xf32, #tpu.memory_space<vmem>>, %arg3: memref<1x2x16x8xf32, #tpu.memory_space<vmem>>, %arg4: memref<1x2x16x8xf32, #tpu.memory_space<vmem>>, %arg5: memref<8x4xbf16, #tpu.memory_space<vmem>>, %arg6: memref<1x4xf32, #tpu.memory_space<vmem>>, %arg7: memref<25x4xf32, #tpu.memory_space<vmem>>, %arg8: memref<1x4xf32, #tpu.memory_space<vmem>>, %arg9: memref<1x8x16x8xf32, #tpu.memory_space<vmem>>, %arg10: memref<12x20x4xf32, #tpu.memory_space<vmem>>) attributes {dimension_semantics = [#tpu.dimension_semantics<parallel>, #tpu.dimension_semantics<parallel>], iteration_bounds = array<i64: 2, 2>, scalar_prefetch = 0 : i64, scratch_operands = 1 : i64, tpu.core_type = #tpu.core_type<tc>, window_params = [{transform_indices = @transform_0, window_bounds = array<i64: 1, 8, 16, 8>}, {transform_indices = @transform_1, window_bounds = array<i64: 1, 2, 16, 8>}, {transform_indices = @transform_2, window_bounds = array<i64: 1, 2, 16, 8>}, {pipeline_mode = #tpu.pipeline_mode<synchronous>, transform_indices = @transform_3, window_bounds = array<i64: 8, 4>}, {pipeline_mode = #tpu.pipeline_mode<synchronous>, transform_indices = @transform_4, window_bounds = array<i64: 1, 4>}, {pipeline_mode = #tpu.pipeline_mode<synchronous>, transform_indices = @transform_5, window_bounds = array<i64: 25, 4>}, {pipeline_mode = #tpu.pipeline_mode<synchronous>, transform_indices = @transform_6, window_bounds = array<i64: 1, 4>}, {transform_indices = @transform_7, window_bounds = array<i64: 1, 8, 16, 8>}]} {
    %c0 = arith.constant 0 : index
    %c0_0 = arith.constant 0 : index
    %c0_1 = arith.constant 0 : index
    %c0_2 = arith.constant 0 : index
    %0 = vector.load %arg3[%c0, %c0_0, %c0_1, %c0_2] : memref<1x2x16x8xf32, #tpu.memory_space<vmem>>, vector<1x2x16x8xf32>
    %1 = vector.shape_cast %0 : vector<1x2x16x8xf32> to vector<2x16x8xf32>
    %c0_3 = arith.constant 0 : index
    %c0_4 = arith.constant 0 : index
    %c0_5 = arith.constant 0 : index
    %c0_6 = arith.constant 0 : index
    %2 = vector.load %arg2[%c0_3, %c0_4, %c0_5, %c0_6] : memref<1x8x16x8xf32, #tpu.memory_space<vmem>>, vector<1x8x16x8xf32>
    %3 = vector.shape_cast %2 : vector<1x8x16x8xf32> to vector<8x16x8xf32>
    %c0_7 = arith.constant 0 : index
    %c0_8 = arith.constant 0 : index
    %c0_9 = arith.constant 0 : index
    %c0_10 = arith.constant 0 : index
    %4 = vector.load %arg4[%c0_7, %c0_8, %c0_9, %c0_10] : memref<1x2x16x8xf32, #tpu.memory_space<vmem>>, vector<1x2x16x8xf32>
    %5 = vector.shape_cast %4 : vector<1x2x16x8xf32> to vector<2x16x8xf32>
    %6 = tpu.concatenate %1, %3, %5 in 0 : vector<2x16x8xf32>, vector<8x16x8xf32>, vector<2x16x8xf32> -> vector<12x16x8xf32>
    %7 = vector.shape_cast %6 : vector<12x16x8xf32> to vector<192x8xf32>
    %8 = arith.truncf %7 : vector<192x8xf32> to vector<192x8xbf16>
    %c0_11 = arith.constant 0 : index
    %c0_12 = arith.constant 0 : index
    %9 = vector.load %arg5[%c0_11, %c0_12] : memref<8x4xbf16, #tpu.memory_space<vmem>>, vector<8x4xbf16>
    %cst = arith.constant dense<0.000000e+00> : vector<192x4xf32>
    %10 = tpu.matmul %8, %9, %cst {dimension_numbers = #tpu.dot_dimension_numbers<[1], [0], [0], [1], [0, 0, 1, 1], [], []>} : vector<192x8xbf16>, vector<8x4xbf16>, vector<192x4xf32> -> vector<192x4xf32>
    %c0_13 = arith.constant 0 : index
    %c0_14 = arith.constant 0 : index
    %11 = vector.load %arg6[%c0_13, %c0_14] : memref<1x4xf32, #tpu.memory_space<vmem>>, vector<1x4xf32>
    %12 = vector.broadcast %11 : vector<1x4xf32> to vector<192x4xf32>
    %13 = arith.addf %10, %12 : vector<192x4xf32>
    %cst_15 = arith.constant 0.000000e+00 : f32
    %14 = vector.broadcast %cst_15 : f32 to vector<192x4xf32>
    %15 = arith.subf %14, %13 : vector<192x4xf32>
    %16 = math.exp %15 : vector<192x4xf32>
    %cst_16 = arith.constant 1.000000e+00 : f32
    %17 = vector.broadcast %cst_16 : f32 to vector<192x4xf32>
    %18 = arith.addf %17, %16 : vector<192x4xf32>
    %19 = tpu.reciprocal %18 {approx = true} : vector<192x4xf32> -> vector<192x4xf32>
    %20 = arith.mulf %13, %19 : vector<192x4xf32>
    %21 = vector.shape_cast %20 : vector<192x4xf32> to vector<12x16x4xf32>
    %22 = tpu.iota {dimensions = array<i32: 0>} : vector<12x16x4xi32>
    %c8_i32 = arith.constant 8 : i32
    %23 = arith.muli %arg1, %c8_i32 : i32
    %c2_i32 = arith.constant 2 : i32
    %24 = arith.subi %23, %c2_i32 : i32
    %25 = vector.broadcast %24 : i32 to vector<12x16x4xi32>
    %26 = arith.addi %25, %22 : vector<12x16x4xi32>
    %c0_i32 = arith.constant 0 : i32
    %27 = vector.broadcast %c0_i32 : i32 to vector<12x16x4xi32>
    %28 = arith.cmpi sge, %26, %27 : vector<12x16x4xi32>
    %c16_i32 = arith.constant 16 : i32
    %29 = vector.broadcast %c16_i32 : i32 to vector<12x16x4xi32>
    %30 = arith.cmpi slt, %26, %29 : vector<12x16x4xi32>
    %31 = arith.andi %28, %30 : vector<12x16x4xi1>
    %cst_17 = arith.constant 0.000000e+00 : f32
    %32 = vector.broadcast %cst_17 : f32 to vector<12x16x4xf32>
    %33 = arith.select %31, %21, %32 : vector<12x16x4xi1>, vector<12x16x4xf32>
    %cst_18 = arith.constant 0.000000e+00 : f32
    %34 = vector.broadcast %cst_18 : f32 to vector<12x20x4xf32>
    %c0_19 = arith.constant 0 : index
    %c0_20 = arith.constant 0 : index
    %c0_21 = arith.constant 0 : index
    %35 = vector.load %arg10[%c0_19, %c0_20, %c0_21] : memref<12x20x4xf32, #tpu.memory_space<vmem>>, vector<12x20x4xf32>
    tpu.vector_store %arg10[%c0_19, %c0_20, %c0_21], %34 {strides = array<i32>} : memref<12x20x4xf32, #tpu.memory_space<vmem>>, vector<12x20x4xf32>,
    %c0_22 = arith.constant 0 : index
    %c2 = arith.constant 2 : index
    %c0_23 = arith.constant 0 : index
    %36 = vector.load %arg10[%c0_22, %c2, %c0_23] : memref<12x20x4xf32, #tpu.memory_space<vmem>>, vector<12x16x4xf32>
    tpu.vector_store %arg10[%c0_22, %c2, %c0_23], %33 {strides = array<i32>} : memref<12x20x4xf32, #tpu.memory_space<vmem>>, vector<12x16x4xf32>,
    %c0_24 = arith.constant 0 : index
    %c0_25 = arith.constant 0 : index
    %37 = vector.load %arg7[%c0_24, %c0_25] : memref<25x4xf32, #tpu.memory_space<vmem>>, vector<25x4xf32>
    %cst_26 = arith.constant 0.000000e+00 : f32
    %38 = vector.broadcast %cst_26 : f32 to vector<8x16x4xf32>
    %39 = vector.extract_strided_slice %37 {offsets = [0, 0], sizes = [1, 4], strides = [1, 1]} : vector<25x4xf32> to vector<1x4xf32>
    %40 = vector.shape_cast %39 : vector<1x4xf32> to vector<4xf32>
    %41 = vector.shape_cast %40 : vector<4xf32> to vector<1x1x4xf32>
    %c0_27 = arith.constant 0 : index
    %c0_28 = arith.constant 0 : index
    %c0_29 = arith.constant 0 : index
    %42 = vector.load %arg10[%c0_27, %c0_28, %c0_29] : memref<12x20x4xf32, #tpu.memory_space<vmem>>, vector<8x16x4xf32>
    %43 = vector.broadcast %41 : vector<1x1x4xf32> to vector<8x16x4xf32>
    %44 = arith.mulf %42, %43 : vector<8x16x4xf32>
    %45 = arith.addf %38, %44 : vector<8x16x4xf32>
    %46 = vector.extract_strided_slice %37 {offsets = [1, 0], sizes = [1, 4], strides = [1, 1]} : vector<25x4xf32> to vector<1x4xf32>
    %47 = vector.shape_cast %46 : vector<1x4xf32> to vector<4xf32>
    %48 = vector.shape_cast %47 : vector<4xf32> to vector<1x1x4xf32>
    %c0_30 = arith.constant 0 : index
    %c1 = arith.constant 1 : index
    %c0_31 = arith.constant 0 : index
    %49 = vector.load %arg10[%c0_30, %c1, %c0_31] : memref<12x20x4xf32, #tpu.memory_space<vmem>>, vector<8x16x4xf32>
    %50 = vector.broadcast %48 : vector<1x1x4xf32> to vector<8x16x4xf32>
    %51 = arith.mulf %49, %50 : vector<8x16x4xf32>
    %52 = arith.addf %45, %51 : vector<8x16x4xf32>
    %53 = vector.extract_strided_slice %37 {offsets = [2, 0], sizes = [1, 4], strides = [1, 1]} : vector<25x4xf32> to vector<1x4xf32>
    %54 = vector.shape_cast %53 : vector<1x4xf32> to vector<4xf32>
    %55 = vector.shape_cast %54 : vector<4xf32> to vector<1x1x4xf32>
    %c0_32 = arith.constant 0 : index
    %c2_33 = arith.constant 2 : index
    %c0_34 = arith.constant 0 : index
    %56 = vector.load %arg10[%c0_32, %c2_33, %c0_34] : memref<12x20x4xf32, #tpu.memory_space<vmem>>, vector<8x16x4xf32>
    %57 = vector.broadcast %55 : vector<1x1x4xf32> to vector<8x16x4xf32>
    %58 = arith.mulf %56, %57 : vector<8x16x4xf32>
    %59 = arith.addf %52, %58 : vector<8x16x4xf32>
    %60 = vector.extract_strided_slice %37 {offsets = [3, 0], sizes = [1, 4], strides = [1, 1]} : vector<25x4xf32> to vector<1x4xf32>
    %61 = vector.shape_cast %60 : vector<1x4xf32> to vector<4xf32>
    %62 = vector.shape_cast %61 : vector<4xf32> to vector<1x1x4xf32>
    %c0_35 = arith.constant 0 : index
    %c3 = arith.constant 3 : index
    %c0_36 = arith.constant 0 : index
    %63 = vector.load %arg10[%c0_35, %c3, %c0_36] : memref<12x20x4xf32, #tpu.memory_space<vmem>>, vector<8x16x4xf32>
    %64 = vector.broadcast %62 : vector<1x1x4xf32> to vector<8x16x4xf32>
    %65 = arith.mulf %63, %64 : vector<8x16x4xf32>
    %66 = arith.addf %59, %65 : vector<8x16x4xf32>
    %67 = vector.extract_strided_slice %37 {offsets = [4, 0], sizes = [1, 4], strides = [1, 1]} : vector<25x4xf32> to vector<1x4xf32>
    %68 = vector.shape_cast %67 : vector<1x4xf32> to vector<4xf32>
    %69 = vector.shape_cast %68 : vector<4xf32> to vector<1x1x4xf32>
    %c0_37 = arith.constant 0 : index
    %c4 = arith.constant 4 : index
    %c0_38 = arith.constant 0 : index
    %70 = vector.load %arg10[%c0_37, %c4, %c0_38] : memref<12x20x4xf32, #tpu.memory_space<vmem>>, vector<8x16x4xf32>
    %71 = vector.broadcast %69 : vector<1x1x4xf32> to vector<8x16x4xf32>
    %72 = arith.mulf %70, %71 : vector<8x16x4xf32>
    %73 = arith.addf %66, %72 : vector<8x16x4xf32>
    %74 = vector.extract_strided_slice %37 {offsets = [5, 0], sizes = [1, 4], strides = [1, 1]} : vector<25x4xf32> to vector<1x4xf32>
    %75 = vector.shape_cast %74 : vector<1x4xf32> to vector<4xf32>
    %76 = vector.shape_cast %75 : vector<4xf32> to vector<1x1x4xf32>
    %c1_39 = arith.constant 1 : index
    %c0_40 = arith.constant 0 : index
    %c0_41 = arith.constant 0 : index
    %77 = vector.load %arg10[%c1_39, %c0_40, %c0_41] : memref<12x20x4xf32, #tpu.memory_space<vmem>>, vector<8x16x4xf32>
    %78 = vector.broadcast %76 : vector<1x1x4xf32> to vector<8x16x4xf32>
    %79 = arith.mulf %77, %78 : vector<8x16x4xf32>
    %80 = arith.addf %73, %79 : vector<8x16x4xf32>
    %81 = vector.extract_strided_slice %37 {offsets = [6, 0], sizes = [1, 4], strides = [1, 1]} : vector<25x4xf32> to vector<1x4xf32>
    %82 = vector.shape_cast %81 : vector<1x4xf32> to vector<4xf32>
    %83 = vector.shape_cast %82 : vector<4xf32> to vector<1x1x4xf32>
    %c1_42 = arith.constant 1 : index
    %c1_43 = arith.constant 1 : index
    %c0_44 = arith.constant 0 : index
    %84 = vector.load %arg10[%c1_42, %c1_43, %c0_44] : memref<12x20x4xf32, #tpu.memory_space<vmem>>, vector<8x16x4xf32>
    %85 = vector.broadcast %83 : vector<1x1x4xf32> to vector<8x16x4xf32>
    %86 = arith.mulf %84, %85 : vector<8x16x4xf32>
    %87 = arith.addf %80, %86 : vector<8x16x4xf32>
    %88 = vector.extract_strided_slice %37 {offsets = [7, 0], sizes = [1, 4], strides = [1, 1]} : vector<25x4xf32> to vector<1x4xf32>
    %89 = vector.shape_cast %88 : vector<1x4xf32> to vector<4xf32>
    %90 = vector.shape_cast %89 : vector<4xf32> to vector<1x1x4xf32>
    %c1_45 = arith.constant 1 : index
    %c2_46 = arith.constant 2 : index
    %c0_47 = arith.constant 0 : index
    %91 = vector.load %arg10[%c1_45, %c2_46, %c0_47] : memref<12x20x4xf32, #tpu.memory_space<vmem>>, vector<8x16x4xf32>
    %92 = vector.broadcast %90 : vector<1x1x4xf32> to vector<8x16x4xf32>
    %93 = arith.mulf %91, %92 : vector<8x16x4xf32>
    %94 = arith.addf %87, %93 : vector<8x16x4xf32>
    %95 = vector.extract_strided_slice %37 {offsets = [8, 0], sizes = [1, 4], strides = [1, 1]} : vector<25x4xf32> to vector<1x4xf32>
    %96 = vector.shape_cast %95 : vector<1x4xf32> to vector<4xf32>
    %97 = vector.shape_cast %96 : vector<4xf32> to vector<1x1x4xf32>
    %c1_48 = arith.constant 1 : index
    %c3_49 = arith.constant 3 : index
    %c0_50 = arith.constant 0 : index
    %98 = vector.load %arg10[%c1_48, %c3_49, %c0_50] : memref<12x20x4xf32, #tpu.memory_space<vmem>>, vector<8x16x4xf32>
    %99 = vector.broadcast %97 : vector<1x1x4xf32> to vector<8x16x4xf32>
    %100 = arith.mulf %98, %99 : vector<8x16x4xf32>
    %101 = arith.addf %94, %100 : vector<8x16x4xf32>
    %102 = vector.extract_strided_slice %37 {offsets = [9, 0], sizes = [1, 4], strides = [1, 1]} : vector<25x4xf32> to vector<1x4xf32>
    %103 = vector.shape_cast %102 : vector<1x4xf32> to vector<4xf32>
    %104 = vector.shape_cast %103 : vector<4xf32> to vector<1x1x4xf32>
    %c1_51 = arith.constant 1 : index
    %c4_52 = arith.constant 4 : index
    %c0_53 = arith.constant 0 : index
    %105 = vector.load %arg10[%c1_51, %c4_52, %c0_53] : memref<12x20x4xf32, #tpu.memory_space<vmem>>, vector<8x16x4xf32>
    %106 = vector.broadcast %104 : vector<1x1x4xf32> to vector<8x16x4xf32>
    %107 = arith.mulf %105, %106 : vector<8x16x4xf32>
    %108 = arith.addf %101, %107 : vector<8x16x4xf32>
    %109 = vector.extract_strided_slice %37 {offsets = [10, 0], sizes = [1, 4], strides = [1, 1]} : vector<25x4xf32> to vector<1x4xf32>
    %110 = vector.shape_cast %109 : vector<1x4xf32> to vector<4xf32>
    %111 = vector.shape_cast %110 : vector<4xf32> to vector<1x1x4xf32>
    %c2_54 = arith.constant 2 : index
    %c0_55 = arith.constant 0 : index
    %c0_56 = arith.constant 0 : index
    %112 = vector.load %arg10[%c2_54, %c0_55, %c0_56] : memref<12x20x4xf32, #tpu.memory_space<vmem>>, vector<8x16x4xf32>
    %113 = vector.broadcast %111 : vector<1x1x4xf32> to vector<8x16x4xf32>
    %114 = arith.mulf %112, %113 : vector<8x16x4xf32>
    %115 = arith.addf %108, %114 : vector<8x16x4xf32>
    %116 = vector.extract_strided_slice %37 {offsets = [11, 0], sizes = [1, 4], strides = [1, 1]} : vector<25x4xf32> to vector<1x4xf32>
    %117 = vector.shape_cast %116 : vector<1x4xf32> to vector<4xf32>
    %118 = vector.shape_cast %117 : vector<4xf32> to vector<1x1x4xf32>
    %c2_57 = arith.constant 2 : index
    %c1_58 = arith.constant 1 : index
    %c0_59 = arith.constant 0 : index
    %119 = vector.load %arg10[%c2_57, %c1_58, %c0_59] : memref<12x20x4xf32, #tpu.memory_space<vmem>>, vector<8x16x4xf32>
    %120 = vector.broadcast %118 : vector<1x1x4xf32> to vector<8x16x4xf32>
    %121 = arith.mulf %119, %120 : vector<8x16x4xf32>
    %122 = arith.addf %115, %121 : vector<8x16x4xf32>
    %123 = vector.extract_strided_slice %37 {offsets = [12, 0], sizes = [1, 4], strides = [1, 1]} : vector<25x4xf32> to vector<1x4xf32>
    %124 = vector.shape_cast %123 : vector<1x4xf32> to vector<4xf32>
    %125 = vector.shape_cast %124 : vector<4xf32> to vector<1x1x4xf32>
    %c2_60 = arith.constant 2 : index
    %c2_61 = arith.constant 2 : index
    %c0_62 = arith.constant 0 : index
    %126 = vector.load %arg10[%c2_60, %c2_61, %c0_62] : memref<12x20x4xf32, #tpu.memory_space<vmem>>, vector<8x16x4xf32>
    %127 = vector.broadcast %125 : vector<1x1x4xf32> to vector<8x16x4xf32>
    %128 = arith.mulf %126, %127 : vector<8x16x4xf32>
    %129 = arith.addf %122, %128 : vector<8x16x4xf32>
    %130 = vector.extract_strided_slice %37 {offsets = [13, 0], sizes = [1, 4], strides = [1, 1]} : vector<25x4xf32> to vector<1x4xf32>
    %131 = vector.shape_cast %130 : vector<1x4xf32> to vector<4xf32>
    %132 = vector.shape_cast %131 : vector<4xf32> to vector<1x1x4xf32>
    %c2_63 = arith.constant 2 : index
    %c3_64 = arith.constant 3 : index
    %c0_65 = arith.constant 0 : index
    %133 = vector.load %arg10[%c2_63, %c3_64, %c0_65] : memref<12x20x4xf32, #tpu.memory_space<vmem>>, vector<8x16x4xf32>
    %134 = vector.broadcast %132 : vector<1x1x4xf32> to vector<8x16x4xf32>
    %135 = arith.mulf %133, %134 : vector<8x16x4xf32>
    %136 = arith.addf %129, %135 : vector<8x16x4xf32>
    %137 = vector.extract_strided_slice %37 {offsets = [14, 0], sizes = [1, 4], strides = [1, 1]} : vector<25x4xf32> to vector<1x4xf32>
    %138 = vector.shape_cast %137 : vector<1x4xf32> to vector<4xf32>
    %139 = vector.shape_cast %138 : vector<4xf32> to vector<1x1x4xf32>
    %c2_66 = arith.constant 2 : index
    %c4_67 = arith.constant 4 : index
    %c0_68 = arith.constant 0 : index
    %140 = vector.load %arg10[%c2_66, %c4_67, %c0_68] : memref<12x20x4xf32, #tpu.memory_space<vmem>>, vector<8x16x4xf32>
    %141 = vector.broadcast %139 : vector<1x1x4xf32> to vector<8x16x4xf32>
    %142 = arith.mulf %140, %141 : vector<8x16x4xf32>
    %143 = arith.addf %136, %142 : vector<8x16x4xf32>
    %144 = vector.extract_strided_slice %37 {offsets = [15, 0], sizes = [1, 4], strides = [1, 1]} : vector<25x4xf32> to vector<1x4xf32>
    %145 = vector.shape_cast %144 : vector<1x4xf32> to vector<4xf32>
    %146 = vector.shape_cast %145 : vector<4xf32> to vector<1x1x4xf32>
    %c3_69 = arith.constant 3 : index
    %c0_70 = arith.constant 0 : index
    %c0_71 = arith.constant 0 : index
    %147 = vector.load %arg10[%c3_69, %c0_70, %c0_71] : memref<12x20x4xf32, #tpu.memory_space<vmem>>, vector<8x16x4xf32>
    %148 = vector.broadcast %146 : vector<1x1x4xf32> to vector<8x16x4xf32>
    %149 = arith.mulf %147, %148 : vector<8x16x4xf32>
    %150 = arith.addf %143, %149 : vector<8x16x4xf32>
    %151 = vector.extract_strided_slice %37 {offsets = [16, 0], sizes = [1, 4], strides = [1, 1]} : vector<25x4xf32> to vector<1x4xf32>
    %152 = vector.shape_cast %151 : vector<1x4xf32> to vector<4xf32>
    %153 = vector.shape_cast %152 : vector<4xf32> to vector<1x1x4xf32>
    %c3_72 = arith.constant 3 : index
    %c1_73 = arith.constant 1 : index
    %c0_74 = arith.constant 0 : index
    %154 = vector.load %arg10[%c3_72, %c1_73, %c0_74] : memref<12x20x4xf32, #tpu.memory_space<vmem>>, vector<8x16x4xf32>
    %155 = vector.broadcast %153 : vector<1x1x4xf32> to vector<8x16x4xf32>
    %156 = arith.mulf %154, %155 : vector<8x16x4xf32>
    %157 = arith.addf %150, %156 : vector<8x16x4xf32>
    %158 = vector.extract_strided_slice %37 {offsets = [17, 0], sizes = [1, 4], strides = [1, 1]} : vector<25x4xf32> to vector<1x4xf32>
    %159 = vector.shape_cast %158 : vector<1x4xf32> to vector<4xf32>
    %160 = vector.shape_cast %159 : vector<4xf32> to vector<1x1x4xf32>
    %c3_75 = arith.constant 3 : index
    %c2_76 = arith.constant 2 : index
    %c0_77 = arith.constant 0 : index
    %161 = vector.load %arg10[%c3_75, %c2_76, %c0_77] : memref<12x20x4xf32, #tpu.memory_space<vmem>>, vector<8x16x4xf32>
    %162 = vector.broadcast %160 : vector<1x1x4xf32> to vector<8x16x4xf32>
    %163 = arith.mulf %161, %162 : vector<8x16x4xf32>
    %164 = arith.addf %157, %163 : vector<8x16x4xf32>
    %165 = vector.extract_strided_slice %37 {offsets = [18, 0], sizes = [1, 4], strides = [1, 1]} : vector<25x4xf32> to vector<1x4xf32>
    %166 = vector.shape_cast %165 : vector<1x4xf32> to vector<4xf32>
    %167 = vector.shape_cast %166 : vector<4xf32> to vector<1x1x4xf32>
    %c3_78 = arith.constant 3 : index
    %c3_79 = arith.constant 3 : index
    %c0_80 = arith.constant 0 : index
    %168 = vector.load %arg10[%c3_78, %c3_79, %c0_80] : memref<12x20x4xf32, #tpu.memory_space<vmem>>, vector<8x16x4xf32>
    %169 = vector.broadcast %167 : vector<1x1x4xf32> to vector<8x16x4xf32>
    %170 = arith.mulf %168, %169 : vector<8x16x4xf32>
    %171 = arith.addf %164, %170 : vector<8x16x4xf32>
    %172 = vector.extract_strided_slice %37 {offsets = [19, 0], sizes = [1, 4], strides = [1, 1]} : vector<25x4xf32> to vector<1x4xf32>
    %173 = vector.shape_cast %172 : vector<1x4xf32> to vector<4xf32>
    %174 = vector.shape_cast %173 : vector<4xf32> to vector<1x1x4xf32>
    %c3_81 = arith.constant 3 : index
    %c4_82 = arith.constant 4 : index
    %c0_83 = arith.constant 0 : index
    %175 = vector.load %arg10[%c3_81, %c4_82, %c0_83] : memref<12x20x4xf32, #tpu.memory_space<vmem>>, vector<8x16x4xf32>
    %176 = vector.broadcast %174 : vector<1x1x4xf32> to vector<8x16x4xf32>
    %177 = arith.mulf %175, %176 : vector<8x16x4xf32>
    %178 = arith.addf %171, %177 : vector<8x16x4xf32>
    %179 = vector.extract_strided_slice %37 {offsets = [20, 0], sizes = [1, 4], strides = [1, 1]} : vector<25x4xf32> to vector<1x4xf32>
    %180 = vector.shape_cast %179 : vector<1x4xf32> to vector<4xf32>
    %181 = vector.shape_cast %180 : vector<4xf32> to vector<1x1x4xf32>
    %c4_84 = arith.constant 4 : index
    %c0_85 = arith.constant 0 : index
    %c0_86 = arith.constant 0 : index
    %182 = vector.load %arg10[%c4_84, %c0_85, %c0_86] : memref<12x20x4xf32, #tpu.memory_space<vmem>>, vector<8x16x4xf32>
    %183 = vector.broadcast %181 : vector<1x1x4xf32> to vector<8x16x4xf32>
    %184 = arith.mulf %182, %183 : vector<8x16x4xf32>
    %185 = arith.addf %178, %184 : vector<8x16x4xf32>
    %186 = vector.extract_strided_slice %37 {offsets = [21, 0], sizes = [1, 4], strides = [1, 1]} : vector<25x4xf32> to vector<1x4xf32>
    %187 = vector.shape_cast %186 : vector<1x4xf32> to vector<4xf32>
    %188 = vector.shape_cast %187 : vector<4xf32> to vector<1x1x4xf32>
    %c4_87 = arith.constant 4 : index
    %c1_88 = arith.constant 1 : index
    %c0_89 = arith.constant 0 : index
    %189 = vector.load %arg10[%c4_87, %c1_88, %c0_89] : memref<12x20x4xf32, #tpu.memory_space<vmem>>, vector<8x16x4xf32>
    %190 = vector.broadcast %188 : vector<1x1x4xf32> to vector<8x16x4xf32>
    %191 = arith.mulf %189, %190 : vector<8x16x4xf32>
    %192 = arith.addf %185, %191 : vector<8x16x4xf32>
    %193 = vector.extract_strided_slice %37 {offsets = [22, 0], sizes = [1, 4], strides = [1, 1]} : vector<25x4xf32> to vector<1x4xf32>
    %194 = vector.shape_cast %193 : vector<1x4xf32> to vector<4xf32>
    %195 = vector.shape_cast %194 : vector<4xf32> to vector<1x1x4xf32>
    %c4_90 = arith.constant 4 : index
    %c2_91 = arith.constant 2 : index
    %c0_92 = arith.constant 0 : index
    %196 = vector.load %arg10[%c4_90, %c2_91, %c0_92] : memref<12x20x4xf32, #tpu.memory_space<vmem>>, vector<8x16x4xf32>
    %197 = vector.broadcast %195 : vector<1x1x4xf32> to vector<8x16x4xf32>
    %198 = arith.mulf %196, %197 : vector<8x16x4xf32>
    %199 = arith.addf %192, %198 : vector<8x16x4xf32>
    %200 = vector.extract_strided_slice %37 {offsets = [23, 0], sizes = [1, 4], strides = [1, 1]} : vector<25x4xf32> to vector<1x4xf32>
    %201 = vector.shape_cast %200 : vector<1x4xf32> to vector<4xf32>
    %202 = vector.shape_cast %201 : vector<4xf32> to vector<1x1x4xf32>
    %c4_93 = arith.constant 4 : index
    %c3_94 = arith.constant 3 : index
    %c0_95 = arith.constant 0 : index
    %203 = vector.load %arg10[%c4_93, %c3_94, %c0_95] : memref<12x20x4xf32, #tpu.memory_space<vmem>>, vector<8x16x4xf32>
    %204 = vector.broadcast %202 : vector<1x1x4xf32> to vector<8x16x4xf32>
    %205 = arith.mulf %203, %204 : vector<8x16x4xf32>
    %206 = arith.addf %199, %205 : vector<8x16x4xf32>
    %207 = vector.extract_strided_slice %37 {offsets = [24, 0], sizes = [1, 4], strides = [1, 1]} : vector<25x4xf32> to vector<1x4xf32>
    %208 = vector.shape_cast %207 : vector<1x4xf32> to vector<4xf32>
    %209 = vector.shape_cast %208 : vector<4xf32> to vector<1x1x4xf32>
    %c4_96 = arith.constant 4 : index
    %c4_97 = arith.constant 4 : index
    %c0_98 = arith.constant 0 : index
    %210 = vector.load %arg10[%c4_96, %c4_97, %c0_98] : memref<12x20x4xf32, #tpu.memory_space<vmem>>, vector<8x16x4xf32>
    %211 = vector.broadcast %209 : vector<1x1x4xf32> to vector<8x16x4xf32>
    %212 = arith.mulf %210, %211 : vector<8x16x4xf32>
    %213 = arith.addf %206, %212 : vector<8x16x4xf32>
    %c0_99 = arith.constant 0 : index
    %c0_100 = arith.constant 0 : index
    %214 = vector.load %arg8[%c0_99, %c0_100] : memref<1x4xf32, #tpu.memory_space<vmem>>, vector<1x4xf32>
    %215 = vector.shape_cast %214 : vector<1x4xf32> to vector<1x1x4xf32>
    %216 = vector.broadcast %215 : vector<1x1x4xf32> to vector<8x16x4xf32>
    %217 = arith.addf %213, %216 : vector<8x16x4xf32>
    %cst_101 = arith.constant 0.000000e+00 : f32
    %218 = vector.broadcast %cst_101 : f32 to vector<8x16x4xf32>
    %219 = arith.subf %218, %217 : vector<8x16x4xf32>
    %220 = math.exp %219 : vector<8x16x4xf32>
    %cst_102 = arith.constant 1.000000e+00 : f32
    %221 = vector.broadcast %cst_102 : f32 to vector<8x16x4xf32>
    %222 = arith.addf %221, %220 : vector<8x16x4xf32>
    %223 = tpu.reciprocal %222 {approx = true} : vector<8x16x4xf32> -> vector<8x16x4xf32>
    %224 = arith.mulf %217, %223 : vector<8x16x4xf32>
    %c2_103 = arith.constant 2 : index
    %c2_104 = arith.constant 2 : index
    %c0_105 = arith.constant 0 : index
    %225 = vector.load %arg10[%c2_103, %c2_104, %c0_105] : memref<12x20x4xf32, #tpu.memory_space<vmem>>, vector<8x16x4xf32>
    %226 = vector.extract_strided_slice %225 {offsets = [0, 0, 0], sizes = [8, 16, 2], strides = [1, 1, 1]} : vector<8x16x4xf32> to vector<8x16x2xf32>
    %227 = vector.extract_strided_slice %224 {offsets = [0, 0, 0], sizes = [8, 16, 2], strides = [1, 1, 1]} : vector<8x16x4xf32> to vector<8x16x2xf32>
    %228 = vector.extract_strided_slice %225 {offsets = [0, 0, 2], sizes = [8, 16, 2], strides = [1, 1, 1]} : vector<8x16x4xf32> to vector<8x16x2xf32>
    %229 = vector.extract_strided_slice %224 {offsets = [0, 0, 2], sizes = [8, 16, 2], strides = [1, 1, 1]} : vector<8x16x4xf32> to vector<8x16x2xf32>
    %230 = tpu.concatenate %226, %227, %228, %229 in 2 : vector<8x16x2xf32>, vector<8x16x2xf32>, vector<8x16x2xf32>, vector<8x16x2xf32> -> vector<8x16x8xf32>
    %c0_106 = arith.constant 0 : index
    %c0_107 = arith.constant 0 : index
    %c0_108 = arith.constant 0 : index
    %c0_109 = arith.constant 0 : index
    %231 = vector.load %arg2[%c0_106, %c0_107, %c0_108, %c0_109] : memref<1x8x16x8xf32, #tpu.memory_space<vmem>>, vector<1x8x16x8xf32>
    %232 = vector.shape_cast %231 : vector<1x8x16x8xf32> to vector<8x16x8xf32>
    %233 = arith.addf %230, %232 : vector<8x16x8xf32>
    %c0_110 = arith.constant 0 : index
    %c0_111 = arith.constant 0 : index
    %c0_112 = arith.constant 0 : index
    %c0_113 = arith.constant 0 : index
    %234 = vector.load %arg9[%c0_110, %c0_111, %c0_112, %c0_113] : memref<1x8x16x8xf32, #tpu.memory_space<vmem>>, vector<1x8x16x8xf32>
    %235 = vector.shape_cast %234 : vector<1x8x16x8xf32> to vector<8x16x8xf32>
    %236 = vector.shape_cast %233 : vector<8x16x8xf32> to vector<1x8x16x8xf32>
    tpu.vector_store %arg9[%c0_110, %c0_111, %c0_112, %c0_113], %236 {strides = array<i32>} : memref<1x8x16x8xf32, #tpu.memory_space<vmem>>, vector<1x8x16x8xf32>,
    return
  }
  func.func @transform_0(%arg0: i32, %arg1: i32) -> (i32, i32, i32, i32) {
    %c0_i32 = arith.constant 0 : i32
    %c0_i32_0 = arith.constant 0 : i32
    %c0_i32_1 = arith.constant 0 : i32
    return %arg0, %arg1, %c0_i32, %c0_i32_0 : i32, i32, i32, i32
  }
  func.func @transform_1(%arg0: i32, %arg1: i32) -> (i32, i32, i32, i32) {
    %c4_i32 = arith.constant 4 : i32
    %0 = arith.muli %arg1, %c4_i32 : i32
    %c1_i32 = arith.constant 1 : i32
    %1 = arith.subi %0, %c1_i32 : i32
    %c0_i32 = arith.constant 0 : i32
    %2 = arith.maxsi %1, %c0_i32 : i32
    %c0_i32_0 = arith.constant 0 : i32
    %c0_i32_1 = arith.constant 0 : i32
    %c0_i32_2 = arith.constant 0 : i32
    return %arg0, %2, %c0_i32_0, %c0_i32_1 : i32, i32, i32, i32
  }
  func.func @transform_2(%arg0: i32, %arg1: i32) -> (i32, i32, i32, i32) {
    %c1_i32 = arith.constant 1 : i32
    %0 = arith.addi %arg1, %c1_i32 : i32
    %c4_i32 = arith.constant 4 : i32
    %1 = arith.muli %0, %c4_i32 : i32
    %c7_i32 = arith.constant 7 : i32
    %2 = arith.minsi %1, %c7_i32 : i32
    %c0_i32 = arith.constant 0 : i32
    %c0_i32_0 = arith.constant 0 : i32
    %c0_i32_1 = arith.constant 0 : i32
    return %arg0, %2, %c0_i32, %c0_i32_0 : i32, i32, i32, i32
  }
  func.func @transform_3(%arg0: i32, %arg1: i32) -> (i32, i32) {
    %c0_i32 = arith.constant 0 : i32
    %c0_i32_0 = arith.constant 0 : i32
    %c0_i32_1 = arith.constant 0 : i32
    return %c0_i32, %c0_i32_0 : i32, i32
  }
  func.func @transform_4(%arg0: i32, %arg1: i32) -> (i32, i32) {
    %c0_i32 = arith.constant 0 : i32
    %c0_i32_0 = arith.constant 0 : i32
    %c0_i32_1 = arith.constant 0 : i32
    return %c0_i32, %c0_i32_0 : i32, i32
  }
  func.func @transform_5(%arg0: i32, %arg1: i32) -> (i32, i32) {
    %c0_i32 = arith.constant 0 : i32
    %c0_i32_0 = arith.constant 0 : i32
    %c0_i32_1 = arith.constant 0 : i32
    return %c0_i32, %c0_i32_0 : i32, i32
  }
  func.func @transform_6(%arg0: i32, %arg1: i32) -> (i32, i32) {
    %c0_i32 = arith.constant 0 : i32
    %c0_i32_0 = arith.constant 0 : i32
    %c0_i32_1 = arith.constant 0 : i32
    return %c0_i32, %c0_i32_0 : i32, i32
  }
  func.func @transform_7(%arg0: i32, %arg1: i32) -> (i32, i32, i32, i32) {
    %c0_i32 = arith.constant 0 : i32
    %c0_i32_0 = arith.constant 0 : i32
    %c0_i32_1 = arith.constant 0 : i32
    return %arg0, %arg1, %c0_i32, %c0_i32_0 : i32, i32, i32, i32
  }
}

</mosaic_0001>

<llo_original>
// kernel: residual_gsconv_forward.1
$region0: #{residual_gsconv_forward.1}
  #allocation0 [shape = 'u32[]', space=smem, size = 0x4, offset = 0x4, fixed_abs, tag = 'smem constant byte address 0x4 - core index']
  #allocation1 [shape = 'u32[72,128]{1,0:T(1,128)}', space=vmem, size = 0x9000, scoped, tag = 'internal scratch']
  #allocation2 [shape = 'f32[12,20,4]{2,1,0:T(8,128)}', space=vmem, size = 0x24000, scoped, tag = 'scratch operand']
  %s0 = inlined_call_operand.vmem [shape: f32[2,16,16,8], index: 0, kind: input, shape index: {}, may-alias: {0,1,2}]
  %s1 = inlined_call_operand.vmem [shape: f32[2,16,16,8], index: 1, kind: input, shape index: {}, may-alias: {0,1,2}]
  %s2 = inlined_call_operand.vmem [shape: f32[2,16,16,8], index: 2, kind: input, shape index: {}, may-alias: {0,1,2}]
  %s3 = inlined_call_operand.vmem [shape: bf16[8,4], index: 3, kind: input, shape index: {}]
  %s4 = inlined_call_operand.vmem [shape: f32[1,4], index: 4, kind: input, shape index: {}]
  %s5 = inlined_call_operand.vmem [shape: f32[25,4], index: 5, kind: input, shape index: {}]
  %s6 = inlined_call_operand.vmem [shape: f32[1,4], index: 6, kind: input, shape index: {}]
  %s7 = inlined_call_operand.vmem [shape: f32[2,16,16,8], index: 7, kind: output, shape index: {}]
  %s8 = sld [smem:[#allocation0]]
  $region61: #{residual_gsconv_forward.1} parent=0
    _
  %s10 = ssub.s32 1, %s8
  %s11 = scalar_select 0, %s10, %s8
  loop: start=0, step=1, limit=6
  $region2: #{residual_gsconv_forward.1} parent=0 // loop_pre_header
    _
  $region3: #{residual_gsconv_forward.1} parent=0 // loop_header
    %s13 = sphi 0, %s17
    %p14 = scmp.ge.s32.totalorder %s13, 6
    %s20 = sphi 0, %s32
    %s21 = sphi 0, %s28
    %s22 = sphi 0, %s20
    %s23 = sphi 0, %s21
    %s24 = sphi 0, %s22
    %s25 = sphi 0, %s23
    %s37 = sphi 0, %s39
    %s40 = sphi 0, %s37
    %s41 = sphi 0, %s40
    %s57 = sphi 0, %s41
    %s73 = sphi 0, %s75
    %s76 = sphi 0, %s73
    %s77 = sphi 0, %s76
    %s93 = sphi 0, %s77
    %s109 = sphi 0, %s111
    %s112 = sphi 0, %s109
    %s113 = sphi 0, %s112
    %s129 = sphi 0, %s113
    %s133 = sphi 0, %s133
    %s135 = sphi 0, %s133
    %s136 = sphi 0, %s135
    %s150 = sphi 0, %s136
    %s154 = sphi 0, %s154
    %s156 = sphi 0, %s154
    %s157 = sphi 0, %s156
    %s171 = sphi 0, %s157
    %s175 = sphi 0, %s175
    %s177 = sphi 0, %s175
    %s178 = sphi 0, %s177
    %s192 = sphi 0, %s178
    %s196 = sphi 0, %s196
    %s198 = sphi 0, %s196
    %s199 = sphi 0, %s198
    %s213 = sphi 0, %s199
    %s221 = sphi 0, %s223
    %s224 = sphi 0, %s221
    %s225 = sphi 0, %s224
    %s241 = sphi 0, %s225
  $region4: #{residual_gsconv_forward.1} parent=0 // loop_header_branch
    %16 = sbr.rel (%p14) target = $region8
  $region5: #{residual_gsconv_forward.1} parent=0 // loop_body
    %s18 = ssub.s32 %s13, 1
    %s19 = ssub.s32 %s13, 2
    %s26 = sadd.s32 1, %s21
    %p27 = scmp.ge.s32.totalorder %s26, 2
    %s28 = scalar_select %p27, 0, %s26
    %s29 = sadd.s32 1, %s20
    %s30 = scalar_select %p27, %s29, %s20
    %p31 = scmp.ge.s32.totalorder %s30, 2
    %s32 = scalar_select %p31, 0, %s30
    %s33 = ssub.s32 %s20, %s32
    %s34 = ssub.s32 %s21, %s28
    %s35 = sor.u32 %s33, %s34
    %p36 = scmp.eq.s32.totalorder %s35, 0
    %s38 = sadd.s32 %s37, 1
    %s39 = scalar_select %p36, %s37, %s38
    %p42 = pneg %p36
    %p43 = scmp.eq.s32.totalorder %s13, 3
    %p44 = por %p42, %p43
    %p45 = scmp.ne.s32.totalorder %s37, %s40
    %p46 = scmp.eq.s32.totalorder %s13, 0
    %p47 = por %p45, %p46
    %p48 = scmp.ne.s32.totalorder %s37, %s40
    %p49 = scmp.eq.s32.totalorder %s18, 3
    %p50 = por %p48, %p49
    %p51 = scmp.ne.s32.totalorder %s40, %s41
    %p52 = scmp.eq.s32.totalorder %s18, 0
    %p53 = por %p51, %p52
    %p54 = scmp.ne.s32.totalorder %s40, %s41
    %p55 = scmp.eq.s32.totalorder %s19, 3
    %p56 = por %p54, %p55
    %p58 = scmp.ne.s32.totalorder %s41, %s57
    %p59 = scmp.eq.s32.totalorder %s19, 0
    %p60 = por %p58, %p59
    %s61 = smul.u32 %s21, 4
    %s62 = ssub.s32 %s61, 1
    %p63 = scmp.gt.s32.totalorder %s62, 0
    %s64 = scalar_select %p63, %s62, 0
    %s65 = smul.u32 %s28, 4
    %s66 = ssub.s32 %s65, 1
    %p67 = scmp.gt.s32.totalorder %s66, 0
    %s68 = scalar_select %p67, %s66, 0
    %s69 = ssub.s32 %s20, %s32
    %s70 = ssub.s32 %s64, %s68
    %s71 = sor.u32 %s69, %s70
    %p72 = scmp.eq.s32.totalorder %s71, 0
    %s74 = sadd.s32 %s73, 1
    %s75 = scalar_select %p72, %s73, %s74
    %p78 = pneg %p72
    %p79 = scmp.eq.s32.totalorder %s13, 3
    %p80 = por %p78, %p79
    %p81 = scmp.ne.s32.totalorder %s73, %s76
    %p82 = scmp.eq.s32.totalorder %s13, 0
    %p83 = por %p81, %p82
    %p84 = scmp.ne.s32.totalorder %s73, %s76
    %p85 = scmp.eq.s32.totalorder %s18, 3
    %p86 = por %p84, %p85
    %p87 = scmp.ne.s32.totalorder %s76, %s77
    %p88 = scmp.eq.s32.totalorder %s18, 0
    %p89 = por %p87, %p88
    %p90 = scmp.ne.s32.totalorder %s76, %s77
    %p91 = scmp.eq.s32.totalorder %s19, 3
    %p92 = por %p90, %p91
    %p94 = scmp.ne.s32.totalorder %s77, %s93
    %p95 = scmp.eq.s32.totalorder %s19, 0
    %p96 = por %p94, %p95
    %s97 = sadd.s32 %s21, 1
    %s98 = smul.u32 %s97, 4
    %p99 = scmp.lt.s32.totalorder %s98, 7
    %s100 = scalar_select %p99, %s98, 7
    %s101 = sadd.s32 %s28, 1
    %s102 = smul.u32 %s101, 4
    %p103 = scmp.lt.s32.totalorder %s102, 7
    %s104 = scalar_select %p103, %s102, 7
    %s105 = ssub.s32 %s20, %s32
    %s106 = ssub.s32 %s100, %s104
    %s107 = sor.u32 %s105, %s106
    %p108 = scmp.eq.s32.totalorder %s107, 0
    %s110 = sadd.s32 %s109, 1
    %s111 = scalar_select %p108, %s109, %s110
    %p114 = pneg %p108
    %p115 = scmp.eq.s32.totalorder %s13, 3
    %p116 = por %p114, %p115
    %p117 = scmp.ne.s32.totalorder %s109, %s112
    %p118 = scmp.eq.s32.totalorder %s13, 0
    %p119 = por %p117, %p118
    %p120 = scmp.ne.s32.totalorder %s109, %s112
    %p121 = scmp.eq.s32.totalorder %s18, 3
    %p122 = por %p120, %p121
    %p123 = scmp.ne.s32.totalorder %s112, %s113
    %p124 = scmp.eq.s32.totalorder %s18, 0
    %p125 = por %p123, %p124
    %p126 = scmp.ne.s32.totalorder %s112, %s113
    %p127 = scmp.eq.s32.totalorder %s19, 3
    %p128 = por %p126, %p127
    %p130 = scmp.ne.s32.totalorder %s113, %s129
    %p131 = scmp.eq.s32.totalorder %s19, 0
    %p132 = por %p130, %p131
    %s134 = sadd.s32 %s133, 1
    %p137 = scmp.eq.s32.totalorder %s13, 3
    %p138 = scmp.ne.s32.totalorder %s133, %s135
    %p139 = scmp.eq.s32.totalorder %s13, 0
    %p140 = por %p138, %p139
    %p141 = scmp.ne.s32.totalorder %s133, %s135
    %p142 = scmp.eq.s32.totalorder %s18, 3
    %p143 = por %p141, %p142
    %p144 = scmp.ne.s32.totalorder %s135, %s136
    %p145 = scmp.eq.s32.totalorder %s18, 0
    %p146 = por %p144, %p145
    %p147 = scmp.ne.s32.totalorder %s135, %s136
    %p148 = scmp.eq.s32.totalorder %s19, 3
    %p149 = por %p147, %p148
    %p151 = scmp.ne.s32.totalorder %s136, %s150
    %p152 = scmp.eq.s32.totalorder %s19, 0
    %p153 = por %p151, %p152
    %s155 = sadd.s32 %s154, 1
    %p158 = scmp.eq.s32.totalorder %s13, 3
    %p159 = scmp.ne.s32.totalorder %s154, %s156
    %p160 = scmp.eq.s32.totalorder %s13, 0
    %p161 = por %p159, %p160
    %p162 = scmp.ne.s32.totalorder %s154, %s156
    %p163 = scmp.eq.s32.totalorder %s18, 3
    %p164 = por %p162, %p163
    %p165 = scmp.ne.s32.totalorder %s156, %s157
    %p166 = scmp.eq.s32.totalorder %s18, 0
    %p167 = por %p165, %p166
    %p168 = scmp.ne.s32.totalorder %s156, %s157
    %p169 = scmp.eq.s32.totalorder %s19, 3
    %p170 = por %p168, %p169
    %p172 = scmp.ne.s32.totalorder %s157, %s171
    %p173 = scmp.eq.s32.totalorder %s19, 0
    %p174 = por %p172, %p173
    %s176 = sadd.s32 %s175, 1
    %p179 = scmp.eq.s32.totalorder %s13, 3
    %p180 = scmp.ne.s32.totalorder %s175, %s177
    %p181 = scmp.eq.s32.totalorder %s13, 0
    %p182 = por %p180, %p181
    %p183 = scmp.ne.s32.totalorder %s175, %s177
    %p184 = scmp.eq.s32.totalorder %s18, 3
    %p185 = por %p183, %p184
    %p186 = scmp.ne.s32.totalorder %s177, %s178
    %p187 = scmp.eq.s32.totalorder %s18, 0
    %p188 = por %p186, %p187
    %p189 = scmp.ne.s32.totalorder %s177, %s178
    %p190 = scmp.eq.s32.totalorder %s19, 3
    %p191 = por %p189, %p190
    %p193 = scmp.ne.s32.totalorder %s178, %s192
    %p194 = scmp.eq.s32.totalorder %s19, 0
    %p195 = por %p193, %p194
    %s197 = sadd.s32 %s196, 1
    %p200 = scmp.eq.s32.totalorder %s13, 3
    %p201 = scmp.ne.s32.totalorder %s196, %s198
    %p202 = scmp.eq.s32.totalorder %s13, 0
    %p203 = por %p201, %p202
    %p204 = scmp.ne.s32.totalorder %s196, %s198
    %p205 = scmp.eq.s32.totalorder %s18, 3
    %p206 = por %p204, %p205
    %p207 = scmp.ne.s32.totalorder %s198, %s199
    %p208 = scmp.eq.s32.totalorder %s18, 0
    %p209 = por %p207, %p208
    %p210 = scmp.ne.s32.totalorder %s198, %s199
    %p211 = scmp.eq.s32.totalorder %s19, 3
    %p212 = por %p210, %p211
    %p214 = scmp.ne.s32.totalorder %s199, %s213
    %p215 = scmp.eq.s32.totalorder %s19, 0
    %p216 = por %p214, %p215
    %s217 = ssub.s32 %s20, %s32
    %s218 = ssub.s32 %s21, %s28
    %s219 = sor.u32 %s217, %s218
    %p220 = scmp.eq.s32.totalorder %s219, 0
    %s222 = sadd.s32 %s221, 1
    %s223 = scalar_select %p220, %s221, %s222
    %p226 = pneg %p220
    %p227 = scmp.eq.s32.totalorder %s13, 3
    %p228 = por %p226, %p227
    %p229 = scmp.ne.s32.totalorder %s221, %s224
    %p230 = scmp.eq.s32.totalorder %s13, 0
    %p231 = por %p229, %p230
    %p232 = scmp.ne.s32.totalorder %s221, %s224
    %p233 = scmp.eq.s32.totalorder %s18, 3
    %p234 = por %p232, %p233
    %p235 = scmp.ne.s32.totalorder %s224, %s225
    %p236 = scmp.eq.s32.totalorder %s18, 0
    %p237 = por %p235, %p236
    %p238 = scmp.ne.s32.totalorder %s224, %s225
    %p239 = scmp.eq.s32.totalorder %s19, 3
    %p240 = por %p238, %p239
    %p242 = scmp.ne.s32.totalorder %s225, %s241
    %p243 = scmp.eq.s32.totalorder %s19, 0
    %p244 = por %p242, %p243
    %p245 = scmp.le.s32.totalorder 1, %s13
    %p246 = scmp.lt.s32.totalorder %s13, 5
    %p247 = pnand %p245, %p246
    %p248 = pneg %p247
    // Predicated region
    $region9: #{residual_gsconv_forward.1} parent=5 // pred_check
      _
    $region10: #{residual_gsconv_forward.1} parent=5 // pred_check_branch
      %250 = sbr.rel (%p247) target = $region12
    $region11: #{residual_gsconv_forward.1} parent=5 // pred_region
      %s251 = ssub.s32 %s13, 1
      // Predicated region
      $region13: #{residual_gsconv_forward.1} parent=11 // pred_check
        %p252 = pneg %p146
      $region14: #{residual_gsconv_forward.1} parent=11 // pred_check_branch
        %254 = sbr.rel (%p252) target = $region16
      $region15: #{residual_gsconv_forward.1} parent=11 // pred_region
        _
      $region16: #{residual_gsconv_forward.1} parent=11 // pred_fallthru
        _
      // Predicated region
      $region17: #{residual_gsconv_forward.1} parent=11 // pred_check
        %p255 = pneg %p167
      $region18: #{residual_gsconv_forward.1} parent=11 // pred_check_branch
        %257 = sbr.rel (%p255) target = $region20
      $region19: #{residual_gsconv_forward.1} parent=11 // pred_region
        _
      $region20: #{residual_gsconv_forward.1} parent=11 // pred_fallthru
        _
      // Predicated region
      $region21: #{residual_gsconv_forward.1} parent=11 // pred_check
        %p258 = pneg %p188
      $region22: #{residual_gsconv_forward.1} parent=11 // pred_check_branch
        %260 = sbr.rel (%p258) target = $region24
      $region23: #{residual_gsconv_forward.1} parent=11 // pred_region
        _
      $region24: #{residual_gsconv_forward.1} parent=11 // pred_fallthru
        _
      // Predicated region
      $region25: #{residual_gsconv_forward.1} parent=11 // pred_check
        %p261 = pneg %p209
      $region26: #{residual_gsconv_forward.1} parent=11 // pred_check_branch
        %263 = sbr.rel (%p261) target = $region28
      $region27: #{residual_gsconv_forward.1} parent=11 // pred_region
        _
      $region28: #{residual_gsconv_forward.1} parent=11 // pred_fallthru
        _
    $region12: #{residual_gsconv_forward.1} parent=5 // pred_fallthru
      _
    %p264 = scmp.lt.s32.totalorder %s13, 4
    // Predicated region
    $region29: #{residual_gsconv_forward.1} parent=5 // pred_check
      %p265 = pneg %p264
    $region30: #{residual_gsconv_forward.1} parent=5 // pred_check_branch
      %267 = sbr.rel (%p265) target = $region32
    $region31: #{residual_gsconv_forward.1} parent=5 // pred_region
      // Predicated region
      $region33: #{residual_gsconv_forward.1} parent=31 // pred_check
        %p268 = pneg %p47
      $region34: #{residual_gsconv_forward.1} parent=31 // pred_check_branch
        %270 = sbr.rel (%p268) target = $region36
      $region35: #{residual_gsconv_forward.1} parent=31 // pred_region
        %s271 = smul.u32 8, %s21
        %p272 = scmp.lt.s32.totalorder %s20, 1
        %s273 = scalar_select %p272, %s20, 1
        %p274 = scmp.lt.s32.totalorder %s271, 15
        %s275 = scalar_select %p274, %s271, 15
        %s276 = smul.addr %s275, 2
        %s277 = smul.addr %s273, 32
        %s278 = sadd.s32 %s276, %s277
        %s279 = smul.addr %s278, 8
        %s280 = scalar_lea.vmem %s0, %s279
        %s281 = smul.u32 8, %s21
      $region36: #{residual_gsconv_forward.1} parent=31 // pred_fallthru
        _
      // Predicated region
      $region37: #{residual_gsconv_forward.1} parent=31 // pred_check
        %p282 = pneg %p83
      $region38: #{residual_gsconv_forward.1} parent=31 // pred_check_branch
        %284 = sbr.rel (%p282) target = $region40
      $region39: #{residual_gsconv_forward.1} parent=31 // pred_region
        %s285 = smul.u32 %s21, 4
        %s286 = ssub.s32 %s285, 1
        %p287 = scmp.gt.s32.totalorder %s286, 0
        %s288 = scalar_select %p287, %s286, 0
        %s289 = smul.u32 2, %s288
        %p290 = scmp.lt.s32.totalorder %s20, 1
        %s291 = scalar_select %p290, %s20, 1
        %p292 = scmp.lt.s32.totalorder %s289, 15
        %s293 = scalar_select %p292, %s289, 15
        %s294 = smul.addr %s293, 2
        %s295 = smul.addr %s291, 32
        %s296 = sadd.s32 %s294, %s295
        %s297 = smul.addr %s296, 8
        %s298 = scalar_lea.vmem %s1, %s297
        %s299 = smul.u32 %s21, 4
        %s300 = ssub.s32 %s299, 1
        %p301 = scmp.gt.s32.totalorder %s300, 0
        %s302 = scalar_select %p301, %s300, 0
        %s303 = smul.u32 2, %s302
      $region40: #{residual_gsconv_forward.1} parent=31 // pred_fallthru
        _
      // Predicated region
      $region41: #{residual_gsconv_forward.1} parent=31 // pred_check
        %p304 = pneg %p119
      $region42: #{residual_gsconv_forward.1} parent=31 // pred_check_branch
        %306 = sbr.rel (%p304) target = $region44
      $region43: #{residual_gsconv_forward.1} parent=31 // pred_region
        %s307 = sadd.s32 %s21, 1
        %s308 = smul.u32 %s307, 4
        %p309 = scmp.lt.s32.totalorder %s308, 7
        %s310 = scalar_select %p309, %s308, 7
        %s311 = smul.u32 2, %s310
        %p312 = scmp.lt.s32.totalorder %s20, 1
        %s313 = scalar_select %p312, %s20, 1
        %p314 = scmp.lt.s32.totalorder %s311, 15
        %s315 = scalar_select %p314, %s311, 15
        %s316 = smul.addr %s315, 2
        %s317 = smul.addr %s313, 32
        %s318 = sadd.s32 %s316, %s317
        %s319 = smul.addr %s318, 8
        %s320 = scalar_lea.vmem %s2, %s319
        %s321 = sadd.s32 %s21, 1
        %s322 = smul.u32 %s321, 4
        %p323 = scmp.lt.s32.totalorder %s322, 7
        %s324 = scalar_select %p323, %s322, 7
        %s325 = smul.u32 2, %s324
      $region44: #{residual_gsconv_forward.1} parent=31 // pred_fallthru
        _
    $region32: #{residual_gsconv_forward.1} parent=5 // pred_fallthru
      _
    %p326 = scmp.le.s32.totalorder 1, %s13
    %p327 = scmp.lt.s32.totalorder %s13, 5
    %p328 = pnand %p326, %p327
    %p329 = pneg %p328
    // Predicated region
    $region45: #{residual_gsconv_forward.1} parent=5 // pred_check
      _
    $region46: #{residual_gsconv_forward.1} parent=5 // pred_check_branch
      %331 = sbr.rel (%p328) target = $region48
    $region47: #{residual_gsconv_forward.1} parent=5 // pred_region
      %s332 = ssub.s32 %s13, 1
      %s333 = smul.u32 8, %s23
      %p334 = scmp.lt.s32.totalorder %s22, 1
      %s335 = scalar_select %p334, %s22, 1
      %p336 = scmp.lt.s32.totalorder %s333, 15
      %s337 = scalar_select %p336, %s333, 15
      %s338 = smul.addr %s337, 2
      %s339 = smul.addr %s335, 32
      %s340 = sadd.s32 %s338, %s339
      %s341 = smul.addr %s340, 8
      %s342 = scalar_lea.vmem %s0, %s341
      %p343 = pneg %p53
      %p344 = pneg %p50
      %s345 = smul.u32 %s23, 4
      %s346 = ssub.s32 %s345, 1
      %p347 = scmp.gt.s32.totalorder %s346, 0
      %s348 = scalar_select %p347, %s346, 0
      %s349 = smul.u32 2, %s348
      %p350 = scmp.lt.s32.totalorder %s22, 1
      %s351 = scalar_select %p350, %s22, 1
      %p352 = scmp.lt.s32.totalorder %s349, 15
      %s353 = scalar_select %p352, %s349, 15
      %s354 = smul.addr %s353, 2
      %s355 = smul.addr %s351, 32
      %s356 = sadd.s32 %s354, %s355
      %s357 = smul.addr %s356, 8
      %s358 = scalar_lea.vmem %s1, %s357
      %p359 = pneg %p89
      %p360 = pneg %p86
      %s361 = sadd.s32 %s23, 1
      %s362 = smul.u32 %s361, 4
      %p363 = scmp.lt.s32.totalorder %s362, 7
      %s364 = scalar_select %p363, %s362, 7
      %s365 = smul.u32 2, %s364
      %p366 = scmp.lt.s32.totalorder %s22, 1
      %s367 = scalar_select %p366, %s22, 1
      %p368 = scmp.lt.s32.totalorder %s365, 15
      %s369 = scalar_select %p368, %s365, 15
      %s370 = smul.addr %s369, 2
      %s371 = smul.addr %s367, 32
      %s372 = sadd.s32 %s370, %s371
      %s373 = smul.addr %s372, 8
      %s374 = scalar_lea.vmem %s2, %s373
      %p375 = pneg %p125
      %p376 = pneg %p122
      %p377 = pneg %p146
      %p378 = pneg %p143
      %p379 = pneg %p167
      %p380 = pneg %p164
      %p381 = pneg %p188
      %p382 = pneg %p185
      %p383 = pneg %p209
      %p384 = pneg %p206
      %p385 = pneg %p237
      %p386 = pneg %p234
      %s387 = smul.u32 8, %s23
      %p388 = scmp.lt.s32.totalorder %s22, 1
      %s389 = scalar_select %p388, %s22, 1
      %p390 = scmp.lt.s32.totalorder %s387, 15
      %s391 = scalar_select %p390, %s387, 15
      %s392 = smul.addr %s391, 2
      %s393 = smul.addr %s389, 32
      %s394 = sadd.s32 %s392, %s393
      %s395 = smul.addr %s394, 8
      %s396 = scalar_lea.vmem %s7, %s395
      %s397 = smul.u32 8, %s23
      %p398 = scmp.lt.s32.totalorder %s22, 1
      %s399 = scalar_select %p398, %s22, 1
      %p400 = scmp.lt.s32.totalorder %s397, 15
      %s401 = scalar_select %p400, %s397, 15
      %s402 = smul.addr %s401, 2
      %s403 = smul.addr %s399, 32
      %s404 = sadd.s32 %s402, %s403
      %s405 = smul.addr %s404, 8
      %s406 = scalar_lea.vmem %s0, %s405
      %s407 = smul.u32 8, %s23
      %s408 = smul.u32 %s23, 4
      %s409 = ssub.s32 %s408, 1
      %p410 = scmp.gt.s32.totalorder %s409, 0
      %s411 = scalar_select %p410, %s409, 0
      %s412 = smul.u32 2, %s411
      %p413 = scmp.lt.s32.totalorder %s22, 1
      %s414 = scalar_select %p413, %s22, 1
      %p415 = scmp.lt.s32.totalorder %s412, 15
      %s416 = scalar_select %p415, %s412, 15
      %s417 = smul.addr %s416, 2
      %s418 = smul.addr %s414, 32
      %s419 = sadd.s32 %s417, %s418
      %s420 = smul.addr %s419, 8
      %s421 = scalar_lea.vmem %s1, %s420
      %s422 = smul.u32 %s23, 4
      %s423 = ssub.s32 %s422, 1
      %p424 = scmp.gt.s32.totalorder %s423, 0
      %s425 = scalar_select %p424, %s423, 0
      %s426 = smul.u32 2, %s425
      %s427 = sadd.s32 %s23, 1
      %s428 = smul.u32 %s427, 4
      %p429 = scmp.lt.s32.totalorder %s428, 7
      %s430 = scalar_select %p429, %s428, 7
      %s431 = smul.u32 2, %s430
      %p432 = scmp.lt.s32.totalorder %s22, 1
      %s433 = scalar_select %p432, %s22, 1
      %p434 = scmp.lt.s32.totalorder %s431, 15
      %s435 = scalar_select %p434, %s431, 15
      %s436 = smul.addr %s435, 2
      %s437 = smul.addr %s433, 32
      %s438 = sadd.s32 %s436, %s437
      %s439 = smul.addr %s438, 8
      %s440 = scalar_lea.vmem %s2, %s439
      %s441 = sadd.s32 %s23, 1
      %s442 = smul.u32 %s441, 4
      %p443 = scmp.lt.s32.totalorder %s442, 7
      %s444 = scalar_select %p443, %s442, 7
      %s445 = smul.u32 2, %s444
      %s446 = smul.u32 8, %s23
      %p447 = scmp.lt.s32.totalorder %s22, 1
      %s448 = scalar_select %p447, %s22, 1
      %p449 = scmp.lt.s32.totalorder %s446, 15
      %s450 = scalar_select %p449, %s446, 15
      %s451 = smul.addr %s450, 2
      %s452 = smul.addr %s448, 32
      %s453 = sadd.s32 %s451, %s452
      %s454 = smul.addr %s453, 8
      %s455 = scalar_lea.vmem %s7, %s454
      %s456 = smul.u32 8, %s23
      %v458 = vld [vmem:[%s421] sm:$0xff]
      %v459 = vld [vmem:[%s421 + $0x8] sm:$0xff]
      %v460 = vld [vmem:[%s421 + $0x10] sm:$0xff]
      %v461 = vld [vmem:[%s421 + $0x18] sm:$0xff]
      %v462 = vld [vmem:[%s406] sm:$0xff]
      %v463 = vld [vmem:[%s406 + $0x8] sm:$0xff]
      %v464 = vld [vmem:[%s406 + $0x10] sm:$0xff]
      %v465 = vld [vmem:[%s406 + $0x18] sm:$0xff]
      %v466 = vld [vmem:[%s406 + $0x20] sm:$0xff]
      %v467 = vld [vmem:[%s406 + $0x28] sm:$0xff]
      %v468 = vld [vmem:[%s406 + $0x30] sm:$0xff]
      %v469 = vld [vmem:[%s406 + $0x38] sm:$0xff]
      %v470 = vld [vmem:[%s406 + $0x40] sm:$0xff]
      %v471 = vld [vmem:[%s406 + $0x48] sm:$0xff]
      %v472 = vld [vmem:[%s406 + $0x50] sm:$0xff]
      %v473 = vld [vmem:[%s406 + $0x58] sm:$0xff]
      %v474 = vld [vmem:[%s406 + $0x60] sm:$0xff]
      %v475 = vld [vmem:[%s406 + $0x68] sm:$0xff]
      %v476 = vld [vmem:[%s406 + $0x70] sm:$0xff]
      %v477 = vld [vmem:[%s406 + $0x78] sm:$0xff]
      %v478 = vld [vmem:[%s440] sm:$0xff]
      %v479 = vld [vmem:[%s440 + $0x8] sm:$0xff]
      %v480 = vld [vmem:[%s440 + $0x10] sm:$0xff]
      %v481 = vld [vmem:[%s440 + $0x18] sm:$0xff]
      %v482 = vpack.c.bf16 %v459, %v458
      %v483 = vpack.c.bf16 %v461, %v460
      %v484 = vpack.c.bf16 %v463, %v462
      %v485 = vpack.c.bf16 %v465, %v464
      %v486 = vpack.c.bf16 %v467, %v466
      %v487 = vpack.c.bf16 %v469, %v468
      %v488 = vpack.c.bf16 %v471, %v470
      %v489 = vpack.c.bf16 %v473, %v472
      %v490 = vpack.c.bf16 %v475, %v474
      %v491 = vpack.c.bf16 %v477, %v476
      %v492 = vpack.c.bf16 %v479, %v478
      %v493 = vpack.c.bf16 %v481, %v480
      %v494 = vld [vmem:[%s3] sm:$0xf]
      %v495 = vld [vmem:[%s4] sm:$0x1]
      %v497 = vperm.slane %v495, 0
      %vm499 = vcmask 64512
      %v501 = vsel %vm499, %v482, 0
      %v504 = vsel %vm499, %v483, 0
      %v507 = vsel %vm499, %v484, 0
      %v510 = vsel %vm499, %v485, 0
      %v513 = vsel %vm499, %v486, 0
      %v516 = vsel %vm499, %v487, 0
      %v519 = vsel %vm499, %v488, 0
      %v522 = vsel %vm499, %v489, 0
      %v525 = vsel %vm499, %v490, 0
      %v528 = vsel %vm499, %v491, 0
      %v531 = vsel %vm499, %v492, 0
      %v534 = vsel %vm499, %v493, 0
      %vm536 = vcmask 1043456
      %v538 = vsel %vm536, %v494, 0
      %540 = vmatpush.bf16.msra.mxu0 0
      %541 = vmatpush.bf16.msra.mxu0 0
      %542 = vmatpush.bf16.msra.mxu0 0
      %543 = vmatpush.bf16.msra.mxu0 0
      %544 = vmatpush.bf16.msra.mxu0 0
      %545 = vmatpush.bf16.msra.mxu0 0
      %546 = vmatpush.bf16.msra.mxu0 0
      %547 = vmatpush.bf16.msra.mxu0 %v538
      %548 = vmatmul.bf16.gmra.mxu0 %v501
      %v549 = vpop.f32.mrf.mxu0
      %v550 = vadd.f32 %v497, %v549
      %v551 = vpop.f32.mrf.mxu0
      %v552 = vadd.f32 %v497, %v551
      %553 = vmatmul.bf16.gmra.mxu0 %v504
      %v554 = vpop.f32.mrf.mxu0
      %v555 = vadd.f32 %v497, %v554
      %v556 = vpop.f32.mrf.mxu0
      %v557 = vadd.f32 %v497, %v556
      %558 = vmatmul.bf16.gmra.mxu0 %v507
      %v559 = vpop.f32.mrf.mxu0
      %v560 = vadd.f32 %v497, %v559
      %v561 = vpop.f32.mrf.mxu0
      %v562 = vadd.f32 %v497, %v561
      %563 = vmatmul.bf16.gmra.mxu0 %v510
      %v564 = vpop.f32.mrf.mxu0
      %v565 = vadd.f32 %v497, %v564
      %v566 = vpop.f32.mrf.mxu0
      %v567 = vadd.f32 %v497, %v566
      %568 = vmatmul.bf16.gmra.mxu0 %v513
      %v569 = vpop.f32.mrf.mxu0
      %v570 = vadd.f32 %v497, %v569
      %v571 = vpop.f32.mrf.mxu0
      %v572 = vadd.f32 %v497, %v571
      %573 = vmatmul.bf16.gmra.mxu0 %v516
      %v574 = vpop.f32.mrf.mxu0
      %v575 = vadd.f32 %v497, %v574
      %v576 = vpop.f32.mrf.mxu0
      %v577 = vadd.f32 %v497, %v576
      %578 = vmatmul.bf16.gmra.mxu0 %v519
      %v579 = vpop.f32.mrf.mxu0
      %v580 = vadd.f32 %v497, %v579
      %v581 = vpop.f32.mrf.mxu0
      %v582 = vadd.f32 %v497, %v581
      %583 = vmatmul.bf16.gmra.mxu0 %v522
      %v584 = vpop.f32.mrf.mxu0
      %v585 = vadd.f32 %v497, %v584
      %v586 = vpop.f32.mrf.mxu0
      %v587 = vadd.f32 %v497, %v586
      %588 = vmatmul.bf16.gmra.mxu0 %v525
      %v589 = vpop.f32.mrf.mxu0
      %v590 = vadd.f32 %v497, %v589
      %v591 = vpop.f32.mrf.mxu0
      %v592 = vadd.f32 %v497, %v591
      %593 = vmatmul.bf16.gmra.mxu0 %v528
      %v594 = vpop.f32.mrf.mxu0
      %v595 = vadd.f32 %v497, %v594
      %v596 = vpop.f32.mrf.mxu0
      %v597 = vadd.f32 %v497, %v596
      %598 = vmatmul.bf16.gmra.mxu0 %v531
      %v599 = vpop.f32.mrf.mxu0
      %v600 = vadd.f32 %v497, %v599
      %v601 = vpop.f32.mrf.mxu0
      %v602 = vadd.f32 %v497, %v601
      %603 = vmatmul.bf16.gmra.mxu0 %v534
      %v604 = vpop.f32.mrf.mxu0
      %v605 = vadd.f32 %v497, %v604
      %v606 = vpop.f32.mrf.mxu0
      %v607 = vadd.f32 %v497, %v606
      %608 = vdwg.mxu0
      %v609 = vsub.f32 0.0, %v550
      %v610 = vsub.f32 0.0, %v552
      %v611 = vsub.f32 0.0, %v555
      %v612 = vsub.f32 0.0, %v557
      %v613 = vsub.f32 0.0, %v560
      %v614 = vsub.f32 0.0, %v562
      %v615 = vsub.f32 0.0, %v565
      %v616 = vsub.f32 0.0, %v567
      %v617 = vsub.f32 0.0, %v570
      %v618 = vsub.f32 0.0, %v572
      %v619 = vsub.f32 0.0, %v575
      %v620 = vsub.f32 0.0, %v577
      %v621 = vsub.f32 0.0, %v580
      %v622 = vsub.f32 0.0, %v582
      %v623 = vsub.f32 0.0, %v585
      %v624 = vsub.f32 0.0, %v587
      %v625 = vsub.f32 0.0, %v590
      %v626 = vsub.f32 0.0, %v592
      %v627 = vsub.f32 0.0, %v595
      %v628 = vsub.f32 0.0, %v597
      %v629 = vsub.f32 0.0, %v600
      %v630 = vsub.f32 0.0, %v602
      %v631 = vsub.f32 0.0, %v605
      %v632 = vsub.f32 0.0, %v607
      %v633 = vmul.f32 %v609, 1.442695
      %v634 = vpow.pop %v633
      %v635 = vmul.f32 %v610, 1.442695
      %v636 = vpow.pop %v635
      %v637 = vmul.f32 %v611, 1.442695
      %v638 = vpow.pop %v637
      %v639 = vmul.f32 %v612, 1.442695
      %v640 = vpow.pop %v639
      %v641 = vmul.f32 %v613, 1.442695
      %v642 = vpow.pop %v641
      %v643 = vmul.f32 %v614, 1.442695
      %v644 = vpow.pop %v643
      %v645 = vmul.f32 %v615, 1.442695
      %v646 = vpow.pop %v645
      %v647 = vmul.f32 %v616, 1.442695
      %v648 = vpow.pop %v647
      %v649 = vmul.f32 %v617, 1.442695
      %v650 = vpow.pop %v649
      %v651 = vmul.f32 %v618, 1.442695
      %v652 = vpow.pop %v651
      %v653 = vmul.f32 %v619, 1.442695
      %v654 = vpow.pop %v653
      %v655 = vmul.f32 %v620, 1.442695
      %v656 = vpow.pop %v655
      %v657 = vmul.f32 %v621, 1.442695
      %v658 = vpow.pop %v657
      %v659 = vmul.f32 %v622, 1.442695
      %v660 = vpow.pop %v659
      %v661 = vmul.f32 %v623, 1.442695
      %v662 = vpow.pop %v661
      %v663 = vmul.f32 %v624, 1.442695
      %v664 = vpow.pop %v663
      %v665 = vmul.f32 %v625, 1.442695
      %v666 = vpow.pop %v665
      %v667 = vmul.f32 %v626, 1.442695
      %v668 = vpow.pop %v667
      %v669 = vmul.f32 %v627, 1.442695
      %v670 = vpow.pop %v669
      %v671 = vmul.f32 %v628, 1.442695
      %v672 = vpow.pop %v671
      %v673 = vmul.f32 %v629, 1.442695
      %v674 = vpow.pop %v673
      %v675 = vmul.f32 %v630, 1.442695
      %v676 = vpow.pop %v675
      %v677 = vmul.f32 %v631, 1.442695
      %v678 = vpow.pop %v677
      %v679 = vmul.f32 %v632, 1.442695
      %v680 = vpow.pop %v679
      %v681 = vadd.f32 %v634, 1.0
      %v682 = vadd.f32 %v636, 1.0
      %v683 = vadd.f32 %v638, 1.0
      %v684 = vadd.f32 %v640, 1.0
      %v685 = vadd.f32 %v642, 1.0
      %v686 = vadd.f32 %v644, 1.0
      %v687 = vadd.f32 %v646, 1.0
      %v688 = vadd.f32 %v648, 1.0
      %v689 = vadd.f32 %v650, 1.0
      %v690 = vadd.f32 %v652, 1.0
      %v691 = vadd.f32 %v654, 1.0
      %v692 = vadd.f32 %v656, 1.0
      %v693 = vadd.f32 %v658, 1.0
      %v694 = vadd.f32 %v660, 1.0
      %v695 = vadd.f32 %v662, 1.0
      %v696 = vadd.f32 %v664, 1.0
      %v697 = vadd.f32 %v666, 1.0
      %v698 = vadd.f32 %v668, 1.0
      %v699 = vadd.f32 %v670, 1.0
      %v700 = vadd.f32 %v672, 1.0
      %v701 = vadd.f32 %v674, 1.0
      %v702 = vadd.f32 %v676, 1.0
      %v703 = vadd.f32 %v678, 1.0
      %v704 = vadd.f32 %v680, 1.0
      %v705 = vrcp.pop %v681
      %v706 = vrcp.pop %v682
      %v707 = vrcp.pop %v683
      %v708 = vrcp.pop %v684
      %v709 = vrcp.pop %v685
      %v710 = vrcp.pop %v686
      %v711 = vrcp.pop %v687
      %v712 = vrcp.pop %v688
      %v713 = vrcp.pop %v689
      %v714 = vrcp.pop %v690
      %v715 = vrcp.pop %v691
      %v716 = vrcp.pop %v692
      %v717 = vrcp.pop %v693
      %v718 = vrcp.pop %v694
      %v719 = vrcp.pop %v695
      %v720 = vrcp.pop %v696
      %v721 = vrcp.pop %v697
      %v722 = vrcp.pop %v698
      %v723 = vrcp.pop %v699
      %v724 = vrcp.pop %v700
      %v725 = vrcp.pop %v701
      %v726 = vrcp.pop %v702
      %v727 = vrcp.pop %v703
      %v728 = vrcp.pop %v704
      %v729 = vmul.f32 %v550, %v705
      %v730 = vmul.f32 %v552, %v706
      %v731 = vmul.f32 %v555, %v707
      %v732 = vmul.f32 %v557, %v708
      %v733 = vmul.f32 %v560, %v709
      %v734 = vmul.f32 %v562, %v710
      %v735 = vmul.f32 %v565, %v711
      %v736 = vmul.f32 %v567, %v712
      %v737 = vmul.f32 %v570, %v713
      %v738 = vmul.f32 %v572, %v714
      %v739 = vmul.f32 %v575, %v715
      %v740 = vmul.f32 %v577, %v716
      %v741 = vmul.f32 %v580, %v717
      %v742 = vmul.f32 %v582, %v718
      %v743 = vmul.f32 %v585, %v719
      %v744 = vmul.f32 %v587, %v720
      %v745 = vmul.f32 %v590, %v721
      %v746 = vmul.f32 %v592, %v722
      %v747 = vmul.f32 %v595, %v723
      %v748 = vmul.f32 %v597, %v724
      %v749 = vmul.f32 %v600, %v725
      %v750 = vmul.f32 %v602, %v726
      %v751 = vmul.f32 %v605, %v727
      %v752 = vmul.f32 %v607, %v728
      %s753 = smul.u32 %s23, 8
      %s754 = ssub.s32 %s753, 2
      %v755 = vstv %s754
      %v756 = vadd.s32 %v755, 1
      %v757 = vadd.s32 %v755, 2
      %v758 = vadd.s32 %v755, 3
      %v759 = vadd.s32 %v755, 4
      %v760 = vadd.s32 %v755, 5
      %v761 = vadd.s32 %v755, 6
      %v762 = vadd.s32 %v755, 7
      %v763 = vadd.s32 %v755, 8
      %v764 = vadd.s32 %v755, 9
      %v765 = vadd.s32 %v755, 10
      %v766 = vadd.s32 %v755, 11
      %vm767 = vcmp.ge.s32.totalorder %v755, 0
      %vm768 = vcmp.ge.s32.totalorder %v756, 0
      %vm769 = vcmp.ge.s32.totalorder %v757, 0
      %vm770 = vcmp.ge.s32.totalorder %v758, 0
      %vm771 = vcmp.ge.s32.totalorder %v759, 0
      %vm772 = vcmp.ge.s32.totalorder %v760, 0
      %vm773 = vcmp.ge.s32.totalorder %v761, 0
      %vm774 = vcmp.ge.s32.totalorder %v762, 0
      %vm775 = vcmp.ge.s32.totalorder %v763, 0
      %vm776 = vcmp.ge.s32.totalorder %v764, 0
      %vm777 = vcmp.ge.s32.totalorder %v765, 0
      %vm778 = vcmp.ge.s32.totalorder %v766, 0
      %vm779 = vcmp.lt.s32.totalorder %v755, 16
      %vm780 = vcmp.lt.s32.totalorder %v756, 16
      %vm781 = vcmp.lt.s32.totalorder %v757, 16
      %vm782 = vcmp.lt.s32.totalorder %v758, 16
      %vm783 = vcmp.lt.s32.totalorder %v759, 16
      %vm784 = vcmp.lt.s32.totalorder %v760, 16
      %vm785 = vcmp.lt.s32.totalorder %v761, 16
      %vm786 = vcmp.lt.s32.totalorder %v762, 16
      %vm787 = vcmp.lt.s32.totalorder %v763, 16
      %vm788 = vcmp.lt.s32.totalorder %v764, 16
      %vm789 = vcmp.lt.s32.totalorder %v765, 16
      %vm790 = vcmp.lt.s32.totalorder %v766, 16
      %vm791 = vmand %vm767, %vm779
      %vm792 = vmand %vm768, %vm780
      %vm793 = vmand %vm769, %vm781
      %vm794 = vmand %vm770, %vm782
      %vm795 = vmand %vm771, %vm783
      %vm796 = vmand %vm772, %vm784
      %vm797 = vmand %vm773, %vm785
      %vm798 = vmand %vm774, %vm786
      %vm799 = vmand %vm775, %vm787
      %vm800 = vmand %vm776, %vm788
      %vm801 = vmand %vm777, %vm789
      %vm802 = vmand %vm778, %vm790
      %v803 = vsel %vm791, %v729, 0.0
      %v804 = vsel %vm791, %v730, 0.0
      %v805 = vsel %vm792, %v731, 0.0
      %v806 = vsel %vm792, %v732, 0.0
      %v807 = vsel %vm793, %v733, 0.0
      %v808 = vsel %vm793, %v734, 0.0
      %v809 = vsel %vm794, %v735, 0.0
      %v810 = vsel %vm794, %v736, 0.0
      %v811 = vsel %vm795, %v737, 0.0
      %v812 = vsel %vm795, %v738, 0.0
      %v813 = vsel %vm796, %v739, 0.0
      %v814 = vsel %vm796, %v740, 0.0
      %v815 = vsel %vm797, %v741, 0.0
      %v816 = vsel %vm797, %v742, 0.0
      %v817 = vsel %vm798, %v743, 0.0
      %v818 = vsel %vm798, %v744, 0.0
      %v819 = vsel %vm799, %v745, 0.0
      %v820 = vsel %vm799, %v746, 0.0
      %v821 = vsel %vm800, %v747, 0.0
      %v822 = vsel %vm800, %v748, 0.0
      %v823 = vsel %vm801, %v749, 0.0
      %v824 = vsel %vm801, %v750, 0.0
      %v825 = vsel %vm802, %v751, 0.0
      %v826 = vsel %vm802, %v752, 0.0
      %vm827 = vcmask 31744
      %828 = vst.msk [vmem:[#allocation2] sm:$0xff] %vm827, 0.0
      %829 = vst.msk [vmem:[#allocation2 + $0x8] sm:$0xff] %vm827, 0.0
      %vm830 = vcmask 27648
      %831 = vst.msk [vmem:[#allocation2 + $0x10] sm:$0xf] %vm830, 0.0
      %832 = vst.msk [vmem:[#allocation2 + $0x18] sm:$0xff] %vm827, 0.0
      %833 = vst.msk [vmem:[#allocation2 + $0x20] sm:$0xff] %vm827, 0.0
      %834 = vst.msk [vmem:[#allocation2 + $0x28] sm:$0xf] %vm830, 0.0
      %835 = vst.msk [vmem:[#allocation2 + $0x30] sm:$0xff] %vm827, 0.0
      %836 = vst.msk [vmem:[#allocation2 + $0x38] sm:$0xff] %vm827, 0.0
      %837 = vst.msk [vmem:[#allocation2 + $0x40] sm:$0xf] %vm830, 0.0
      %838 = vst.msk [vmem:[#allocation2 + $0x48] sm:$0xff] %vm827, 0.0
      %839 = vst.msk [vmem:[#allocation2 + $0x50] sm:$0xff] %vm827, 0.0
      %840 = vst.msk [vmem:[#allocation2 + $0x58] sm:$0xf] %vm830, 0.0
      %841 = vst.msk [vmem:[#allocation2 + $0x60] sm:$0xff] %vm827, 0.0
      %842 = vst.msk [vmem:[#allocation2 + $0x68] sm:$0xff] %vm827, 0.0
      %843 = vst.msk [vmem:[#allocation2 + $0x70] sm:$0xf] %vm830, 0.0
      %844 = vst.msk [vmem:[#allocation2 + $0x78] sm:$0xff] %vm827, 0.0
      %845 = vst.msk [vmem:[#allocation2 + $0x80] sm:$0xff] %vm827, 0.0
      %846 = vst.msk [vmem:[#allocation2 + $0x88] sm:$0xf] %vm830, 0.0
      %847 = vst.msk [vmem:[#allocation2 + $0x90] sm:$0xff] %vm827, 0.0
      %848 = vst.msk [vmem:[#allocation2 + $0x98] sm:$0xff] %vm827, 0.0
      %849 = vst.msk [vmem:[#allocation2 + $0xa0] sm:$0xf] %vm830, 0.0
      %850 = vst.msk [vmem:[#allocation2 + $0xa8] sm:$0xff] %vm827, 0.0
      %851 = vst.msk [vmem:[#allocation2 + $0xb0] sm:$0xff] %vm827, 0.0
      %852 = vst.msk [vmem:[#allocation2 + $0xb8] sm:$0xf] %vm830, 0.0
      %853 = vst.msk [vmem:[#allocation2 + $0xc0] sm:$0xff] %vm827, 0.0
      %854 = vst.msk [vmem:[#allocation2 + $0xc8] sm:$0xff] %vm827, 0.0
      %855 = vst.msk [vmem:[#allocation2 + $0xd0] sm:$0xf] %vm830, 0.0
      %856 = vst.msk [vmem:[#allocation2 + $0xd8] sm:$0xff] %vm827, 0.0
      %857 = vst.msk [vmem:[#allocation2 + $0xe0] sm:$0xff] %vm827, 0.0
      %858 = vst.msk [vmem:[#allocation2 + $0xe8] sm:$0xf] %vm830, 0.0
      %859 = vst.msk [vmem:[#allocation2 + $0xf0] sm:$0xff] %vm827, 0.0
      %860 = vst.msk [vmem:[#allocation2 + $0xf8] sm:$0xff] %vm827, 0.0
      %861 = vst.msk [vmem:[#allocation2 + $0x100] sm:$0xf] %vm830, 0.0
      %862 = vst.msk [vmem:[#allocation2 + $0x108] sm:$0xff] %vm827, 0.0
      %863 = vst.msk [vmem:[#allocation2 + $0x110] sm:$0xff] %vm827, 0.0
      %864 = vst.msk [vmem:[#allocation2 + $0x118] sm:$0xf] %vm830, 0.0
      %865 = vst.msk [vmem:[#allocation2 + $0x2] sm:$0xff] %vm827, %v803
      %866 = vst.msk [vmem:[#allocation2 + $0xa] sm:$0xff] %vm827, %v804
      %867 = vst.msk [vmem:[#allocation2 + $0x1a] sm:$0xff] %vm827, %v805
      %868 = vst.msk [vmem:[#allocation2 + $0x22] sm:$0xff] %vm827, %v806
      %869 = vst.msk [vmem:[#allocation2 + $0x32] sm:$0xff] %vm827, %v807
      %870 = vst.msk [vmem:[#allocation2 + $0x3a] sm:$0xff] %vm827, %v808
      %871 = vst.msk [vmem:[#allocation2 + $0x4a] sm:$0xff] %vm827, %v809
      %872 = vst.msk [vmem:[#allocation2 + $0x52] sm:$0xff] %vm827, %v810
      %873 = vst.msk [vmem:[#allocation2 + $0x62] sm:$0xff] %vm827, %v811
      %874 = vst.msk [vmem:[#allocation2 + $0x6a] sm:$0xff] %vm827, %v812
      %875 = vst.msk [vmem:[#allocation2 + $0x7a] sm:$0xff] %vm827, %v813
      %876 = vst.msk [vmem:[#allocation2 + $0x82] sm:$0xff] %vm827, %v814
      %877 = vst.msk [vmem:[#allocation2 + $0x92] sm:$0xff] %vm827, %v815
      %878 = vst.msk [vmem:[#allocation2 + $0x9a] sm:$0xff] %vm827, %v816
      %879 = vst.msk [vmem:[#allocation2 + $0xaa] sm:$0xff] %vm827, %v817
      %880 = vst.msk [vmem:[#allocation2 + $0xb2] sm:$0xff] %vm827, %v818
      %881 = vst.msk [vmem:[#allocation2 + $0xc2] sm:$0xff] %vm827, %v819
      %882 = vst.msk [vmem:[#allocation2 + $0xca] sm:$0xff] %vm827, %v820
      %883 = vst.msk [vmem:[#allocation2 + $0xda] sm:$0xff] %vm827, %v821
      %884 = vst.msk [vmem:[#allocation2 + $0xe2] sm:$0xff] %vm827, %v822
      %885 = vst.msk [vmem:[#allocation2 + $0xf2] sm:$0xff] %vm827, %v823
      %886 = vst.msk [vmem:[#allocation2 + $0xfa] sm:$0xff] %vm827, %v824
      %887 = vst.msk [vmem:[#allocation2 + $0x10a] sm:$0xff] %vm827, %v825
      %888 = vst.msk [vmem:[#allocation2 + $0x112] sm:$0xff] %vm827, %v826
      %v889 = vld [vmem:[%s5] sm:$0xff]
      %v890 = vld [vmem:[%s5 + $0x8] sm:$0xff]
      %v891 = vld [vmem:[%s5 + $0x10] sm:$0xff]
      %v892 = vld [vmem:[%s5 + $0x18] sm:$0x1]
      %v893 = vld [vmem:[#allocation2] sm:$0xff]
      %v894 = vld [vmem:[#allocation2 + $0x8] sm:$0xff]
      %v895 = vld [vmem:[#allocation2 + $0x18] sm:$0xff]
      %v896 = vld [vmem:[#allocation2 + $0x20] sm:$0xff]
      %v897 = vld [vmem:[#allocation2 + $0x30] sm:$0xff]
      %v898 = vld [vmem:[#allocation2 + $0x38] sm:$0xff]
      %v899 = vld [vmem:[#allocation2 + $0x48] sm:$0xff]
      %v900 = vld [vmem:[#allocation2 + $0x50] sm:$0xff]
      %v901 = vld [vmem:[#allocation2 + $0x60] sm:$0xff]
      %v902 = vld [vmem:[#allocation2 + $0x68] sm:$0xff]
      %v903 = vld [vmem:[#allocation2 + $0x78] sm:$0xff]
      %v904 = vld [vmem:[#allocation2 + $0x80] sm:$0xff]
      %v905 = vld [vmem:[#allocation2 + $0x90] sm:$0xff]
      %v906 = vld [vmem:[#allocation2 + $0x98] sm:$0xff]
      %v907 = vld [vmem:[#allocation2 + $0xa8] sm:$0xff]
      %v908 = vld [vmem:[#allocation2 + $0xb0] sm:$0xff]
      %v909 = vperm.slane %v889, 0
      %v910 = vmul.f32 %v893, %v909
      %v911 = vmul.f32 %v894, %v909
      %v912 = vmul.f32 %v895, %v909
      %v913 = vmul.f32 %v896, %v909
      %v914 = vmul.f32 %v897, %v909
      %v915 = vmul.f32 %v898, %v909
      %v916 = vmul.f32 %v899, %v909
      %v917 = vmul.f32 %v900, %v909
      %v918 = vmul.f32 %v901, %v909
      %v919 = vmul.f32 %v902, %v909
      %v920 = vmul.f32 %v903, %v909
      %v921 = vmul.f32 %v904, %v909
      %v922 = vmul.f32 %v905, %v909
      %v923 = vmul.f32 %v906, %v909
      %v924 = vmul.f32 %v907, %v909
      %v925 = vmul.f32 %v908, %v909
      %v926 = vadd.f32 %v910, 0.0
      %v927 = vadd.f32 %v911, 0.0
      %v928 = vadd.f32 %v912, 0.0
      %v929 = vadd.f32 %v913, 0.0
      %v930 = vadd.f32 %v914, 0.0
      %v931 = vadd.f32 %v915, 0.0
      %v932 = vadd.f32 %v916, 0.0
      %v933 = vadd.f32 %v917, 0.0
      %v934 = vadd.f32 %v918, 0.0
      %v935 = vadd.f32 %v919, 0.0
      %v936 = vadd.f32 %v920, 0.0
      %v937 = vadd.f32 %v921, 0.0
      %v938 = vadd.f32 %v922, 0.0
      %v939 = vadd.f32 %v923, 0.0
      %v940 = vadd.f32 %v924, 0.0
      %v941 = vadd.f32 %v925, 0.0
      %v942 = vld [vmem:[#allocation2 + $0x1] sm:$0xff]
      %v943 = vld [vmem:[#allocation2 + $0x9] sm:$0xff]
      %v944 = vld [vmem:[#allocation2 + $0x19] sm:$0xff]
      %v945 = vld [vmem:[#allocation2 + $0x21] sm:$0xff]
      %v946 = vld [vmem:[#allocation2 + $0x31] sm:$0xff]
      %v947 = vld [vmem:[#allocation2 + $0x39] sm:$0xff]
      %v948 = vld [vmem:[#allocation2 + $0x49] sm:$0xff]
      %v949 = vld [vmem:[#allocation2 + $0x51] sm:$0xff]
      %v950 = vld [vmem:[#allocation2 + $0x61] sm:$0xff]
      %v951 = vld [vmem:[#allocation2 + $0x69] sm:$0xff]
      %v952 = vld [vmem:[#allocation2 + $0x79] sm:$0xff]
      %v953 = vld [vmem:[#allocation2 + $0x81] sm:$0xff]
      %v954 = vld [vmem:[#allocation2 + $0x91] sm:$0xff]
      %v955 = vld [vmem:[#allocation2 + $0x99] sm:$0xff]
      %v956 = vld [vmem:[#allocation2 + $0xa9] sm:$0xff]
      %v957 = vld [vmem:[#allocation2 + $0xb1] sm:$0xff]
      %v958 = vperm.slane %v889, 1
      %v959 = vmul.f32 %v942, %v958
      %v960 = vmul.f32 %v943, %v958
      %v961 = vmul.f32 %v944, %v958
      %v962 = vmul.f32 %v945, %v958
      %v963 = vmul.f32 %v946, %v958
      %v964 = vmul.f32 %v947, %v958
      %v965 = vmul.f32 %v948, %v958
      %v966 = vmul.f32 %v949, %v958
      %v967 = vmul.f32 %v950, %v958
      %v968 = vmul.f32 %v951, %v958
      %v969 = vmul.f32 %v952, %v958
      %v970 = vmul.f32 %v953, %v958
      %v971 = vmul.f32 %v954, %v958
      %v972 = vmul.f32 %v955, %v958
      %v973 = vmul.f32 %v956, %v958
      %v974 = vmul.f32 %v957, %v958
      %v975 = vadd.f32 %v926, %v959
      %v976 = vadd.f32 %v927, %v960
      %v977 = vadd.f32 %v928, %v961
      %v978 = vadd.f32 %v929, %v962
      %v979 = vadd.f32 %v930, %v963
      %v980 = vadd.f32 %v931, %v964
      %v981 = vadd.f32 %v932, %v965
      %v982 = vadd.f32 %v933, %v966
      %v983 = vadd.f32 %v934, %v967
      %v984 = vadd.f32 %v935, %v968
      %v985 = vadd.f32 %v936, %v969
      %v986 = vadd.f32 %v937, %v970
      %v987 = vadd.f32 %v938, %v971
      %v988 = vadd.f32 %v939, %v972
      %v989 = vadd.f32 %v940, %v973
      %v990 = vadd.f32 %v941, %v974
      %v991 = vld [vmem:[#allocation2 + $0x2] sm:$0xff]
      %v992 = vld [vmem:[#allocation2 + $0xa] sm:$0xff]
      %v993 = vld [vmem:[#allocation2 + $0x1a] sm:$0xff]
      %v994 = vld [vmem:[#allocation2 + $0x22] sm:$0xff]
      %v995 = vld [vmem:[#allocation2 + $0x32] sm:$0xff]
      %v996 = vld [vmem:[#allocation2 + $0x3a] sm:$0xff]
      %v997 = vld [vmem:[#allocation2 + $0x4a] sm:$0xff]
      %v998 = vld [vmem:[#allocation2 + $0x52] sm:$0xff]
      %v999 = vld [vmem:[#allocation2 + $0x62] sm:$0xff]
      %v1000 = vld [vmem:[#allocation2 + $0x6a] sm:$0xff]
      %v1001 = vld [vmem:[#allocation2 + $0x7a] sm:$0xff]
      %v1002 = vld [vmem:[#allocation2 + $0x82] sm:$0xff]
      %v1003 = vld [vmem:[#allocation2 + $0x92] sm:$0xff]
      %v1004 = vld [vmem:[#allocation2 + $0x9a] sm:$0xff]
      %v1005 = vld [vmem:[#allocation2 + $0xaa] sm:$0xff]
      %v1006 = vld [vmem:[#allocation2 + $0xb2] sm:$0xff]
      %v1007 = vperm.slane %v889, 2
      %v1008 = vmul.f32 %v991, %v1007
      %v1009 = vmul.f32 %v992, %v1007
      %v1010 = vmul.f32 %v993, %v1007
      %v1011 = vmul.f32 %v994, %v1007
      %v1012 = vmul.f32 %v995, %v1007
      %v1013 = vmul.f32 %v996, %v1007
      %v1014 = vmul.f32 %v997, %v1007
      %v1015 = vmul.f32 %v998, %v1007
      %v1016 = vmul.f32 %v999, %v1007
      %v1017 = vmul.f32 %v1000, %v1007
      %v1018 = vmul.f32 %v1001, %v1007
      %v1019 = vmul.f32 %v1002, %v1007
      %v1020 = vmul.f32 %v1003, %v1007
      %v1021 = vmul.f32 %v1004, %v1007
      %v1022 = vmul.f32 %v1005, %v1007
      %v1023 = vmul.f32 %v1006, %v1007
      %v1024 = vadd.f32 %v975, %v1008
      %v1025 = vadd.f32 %v976, %v1009
      %v1026 = vadd.f32 %v977, %v1010
      %v1027 = vadd.f32 %v978, %v1011
      %v1028 = vadd.f32 %v979, %v1012
      %v1029 = vadd.f32 %v980, %v1013
      %v1030 = vadd.f32 %v981, %v1014
      %v1031 = vadd.f32 %v982, %v1015
      %v1032 = vadd.f32 %v983, %v1016
      %v1033 = vadd.f32 %v984, %v1017
      %v1034 = vadd.f32 %v985, %v1018
      %v1035 = vadd.f32 %v986, %v1019
      %v1036 = vadd.f32 %v987, %v1020
      %v1037 = vadd.f32 %v988, %v1021
      %v1038 = vadd.f32 %v989, %v1022
      %v1039 = vadd.f32 %v990, %v1023
      %v1040 = vld [vmem:[#allocation2 + $0x3] sm:$0xff]
      %v1041 = vld [vmem:[#allocation2 + $0xb] sm:$0xff]
      %v1042 = vld [vmem:[#allocation2 + $0x1b] sm:$0xff]
      %v1043 = vld [vmem:[#allocation2 + $0x23] sm:$0xff]
      %v1044 = vld [vmem:[#allocation2 + $0x33] sm:$0xff]
      %v1045 = vld [vmem:[#allocation2 + $0x3b] sm:$0xff]
      %v1046 = vld [vmem:[#allocation2 + $0x4b] sm:$0xff]
      %v1047 = vld [vmem:[#allocation2 + $0x53] sm:$0xff]
      %v1048 = vld [vmem:[#allocation2 + $0x63] sm:$0xff]
      %v1049 = vld [vmem:[#allocation2 + $0x6b] sm:$0xff]
      %v1050 = vld [vmem:[#allocation2 + $0x7b] sm:$0xff]
      %v1051 = vld [vmem:[#allocation2 + $0x83] sm:$0xff]
      %v1052 = vld [vmem:[#allocation2 + $0x93] sm:$0xff]
      %v1053 = vld [vmem:[#allocation2 + $0x9b] sm:$0xff]
      %v1054 = vld [vmem:[#allocation2 + $0xab] sm:$0xff]
      %v1055 = vld [vmem:[#allocation2 + $0xb3] sm:$0xff]
      %v1056 = vperm.slane %v889, 3
      %v1057 = vmul.f32 %v1040, %v1056
      %v1058 = vmul.f32 %v1041, %v1056
      %v1059 = vmul.f32 %v1042, %v1056
      %v1060 = vmul.f32 %v1043, %v1056
      %v1061 = vmul.f32 %v1044, %v1056
      %v1062 = vmul.f32 %v1045, %v1056
      %v1063 = vmul.f32 %v1046, %v1056
      %v1064 = vmul.f32 %v1047, %v1056
      %v1065 = vmul.f32 %v1048, %v1056
      %v1066 = vmul.f32 %v1049, %v1056
      %v1067 = vmul.f32 %v1050, %v1056
      %v1068 = vmul.f32 %v1051, %v1056
      %v1069 = vmul.f32 %v1052, %v1056
      %v1070 = vmul.f32 %v1053, %v1056
      %v1071 = vmul.f32 %v1054, %v1056
      %v1072 = vmul.f32 %v1055, %v1056
      %v1073 = vadd.f32 %v1024, %v1057
      %v1074 = vadd.f32 %v1025, %v1058
      %v1075 = vadd.f32 %v1026, %v1059
      %v1076 = vadd.f32 %v1027, %v1060
      %v1077 = vadd.f32 %v1028, %v1061
      %v1078 = vadd.f32 %v1029, %v1062
      %v1079 = vadd.f32 %v1030, %v1063
      %v1080 = vadd.f32 %v1031, %v1064
      %v1081 = vadd.f32 %v1032, %v1065
      %v1082 = vadd.f32 %v1033, %v1066
      %v1083 = vadd.f32 %v1034, %v1067
      %v1084 = vadd.f32 %v1035, %v1068
      %v1085 = vadd.f32 %v1036, %v1069
      %v1086 = vadd.f32 %v1037, %v1070
      %v1087 = vadd.f32 %v1038, %v1071
      %v1088 = vadd.f32 %v1039, %v1072
      %v1089 = vld [vmem:[#allocation2 + $0x4] sm:$0xff]
      %v1090 = vld [vmem:[#allocation2 + $0xc] sm:$0xff]
      %v1091 = vld [vmem:[#allocation2 + $0x1c] sm:$0xff]
      %v1092 = vld [vmem:[#allocation2 + $0x24] sm:$0xff]
      %v1093 = vld [vmem:[#allocation2 + $0x34] sm:$0xff]
      %v1094 = vld [vmem:[#allocation2 + $0x3c] sm:$0xff]
      %v1095 = vld [vmem:[#allocation2 + $0x4c] sm:$0xff]
      %v1096 = vld [vmem:[#allocation2 + $0x54] sm:$0xff]
      %v1097 = vld [vmem:[#allocation2 + $0x64] sm:$0xff]
      %v1098 = vld [vmem:[#allocation2 + $0x6c] sm:$0xff]
      %v1099 = vld [vmem:[#allocation2 + $0x7c] sm:$0xff]
      %v1100 = vld [vmem:[#allocation2 + $0x84] sm:$0xff]
      %v1101 = vld [vmem:[#allocation2 + $0x94] sm:$0xff]
      %v1102 = vld [vmem:[#allocation2 + $0x9c] sm:$0xff]
      %v1103 = vld [vmem:[#allocation2 + $0xac] sm:$0xff]
      %v1104 = vld [vmem:[#allocation2 + $0xb4] sm:$0xff]
      %v1105 = vperm.slane %v889, 4
      %v1106 = vmul.f32 %v1089, %v1105
      %v1107 = vmul.f32 %v1090, %v1105
      %v1108 = vmul.f32 %v1091, %v1105
      %v1109 = vmul.f32 %v1092, %v1105
      %v1110 = vmul.f32 %v1093, %v1105
      %v1111 = vmul.f32 %v1094, %v1105
      %v1112 = vmul.f32 %v1095, %v1105
      %v1113 = vmul.f32 %v1096, %v1105
      %v1114 = vmul.f32 %v1097, %v1105
      %v1115 = vmul.f32 %v1098, %v1105
      %v1116 = vmul.f32 %v1099, %v1105
      %v1117 = vmul.f32 %v1100, %v1105
      %v1118 = vmul.f32 %v1101, %v1105
      %v1119 = vmul.f32 %v1102, %v1105
      %v1120 = vmul.f32 %v1103, %v1105
      %v1121 = vmul.f32 %v1104, %v1105
      %v1122 = vadd.f32 %v1073, %v1106
      %v1123 = vadd.f32 %v1074, %v1107
      %v1124 = vadd.f32 %v1075, %v1108
      %v1125 = vadd.f32 %v1076, %v1109
      %v1126 = vadd.f32 %v1077, %v1110
      %v1127 = vadd.f32 %v1078, %v1111
      %v1128 = vadd.f32 %v1079, %v1112
      %v1129 = vadd.f32 %v1080, %v1113
      %v1130 = vadd.f32 %v1081, %v1114
      %v1131 = vadd.f32 %v1082, %v1115
      %v1132 = vadd.f32 %v1083, %v1116
      %v1133 = vadd.f32 %v1084, %v1117
      %v1134 = vadd.f32 %v1085, %v1118
      %v1135 = vadd.f32 %v1086, %v1119
      %v1136 = vadd.f32 %v1087, %v1120
      %v1137 = vadd.f32 %v1088, %v1121
      %s1138 = scalar_lea.vmem [#allocation2], 24
      %v1139 = vld [vmem:[%s1138] sm:$0xff]
      %v1140 = vld [vmem:[%s1138 + $0x8] sm:$0xff]
      %v1141 = vld [vmem:[%s1138 + $0x18] sm:$0xff]
      %v1142 = vld [vmem:[%s1138 + $0x20] sm:$0xff]
      %v1143 = vld [vmem:[%s1138 + $0x30] sm:$0xff]
      %v1144 = vld [vmem:[%s1138 + $0x38] sm:$0xff]
      %v1145 = vld [vmem:[%s1138 + $0x48] sm:$0xff]
      %v1146 = vld [vmem:[%s1138 + $0x50] sm:$0xff]
      %v1147 = vld [vmem:[%s1138 + $0x60] sm:$0xff]
      %v1148 = vld [vmem:[%s1138 + $0x68] sm:$0xff]
      %v1149 = vld [vmem:[%s1138 + $0x78] sm:$0xff]
      %v1150 = vld [vmem:[%s1138 + $0x80] sm:$0xff]
      %v1151 = vld [vmem:[%s1138 + $0x90] sm:$0xff]
      %v1152 = vld [vmem:[%s1138 + $0x98] sm:$0xff]
      %v1153 = vld [vmem:[%s1138 + $0xa8] sm:$0xff]
      %v1154 = vld [vmem:[%s1138 + $0xb0] sm:$0xff]
      %v1155 = vperm.slane %v889, 5
      %v1156 = vmul.f32 %v1139, %v1155
      %v1157 = vmul.f32 %v1140, %v1155
      %v1158 = vmul.f32 %v1141, %v1155
      %v1159 = vmul.f32 %v1142, %v1155
      %v1160 = vmul.f32 %v1143, %v1155
      %v1161 = vmul.f32 %v1144, %v1155
      %v1162 = vmul.f32 %v1145, %v1155
      %v1163 = vmul.f32 %v1146, %v1155
      %v1164 = vmul.f32 %v1147, %v1155
      %v1165 = vmul.f32 %v1148, %v1155
      %v1166 = vmul.f32 %v1149, %v1155
      %v1167 = vmul.f32 %v1150, %v1155
      %v1168 = vmul.f32 %v1151, %v1155
      %v1169 = vmul.f32 %v1152, %v1155
      %v1170 = vmul.f32 %v1153, %v1155
      %v1171 = vmul.f32 %v1154, %v1155
      %v1172 = vadd.f32 %v1122, %v1156
      %v1173 = vadd.f32 %v1123, %v1157
      %v1174 = vadd.f32 %v1124, %v1158
      %v1175 = vadd.f32 %v1125, %v1159
      %v1176 = vadd.f32 %v1126, %v1160
      %v1177 = vadd.f32 %v1127, %v1161
      %v1178 = vadd.f32 %v1128, %v1162
      %v1179 = vadd.f32 %v1129, %v1163
      %v1180 = vadd.f32 %v1130, %v1164
      %v1181 = vadd.f32 %v1131, %v1165
      %v1182 = vadd.f32 %v1132, %v1166
      %v1183 = vadd.f32 %v1133, %v1167
      %v1184 = vadd.f32 %v1134, %v1168
      %v1185 = vadd.f32 %v1135, %v1169
      %v1186 = vadd.f32 %v1136, %v1170
      %v1187 = vadd.f32 %v1137, %v1171
      %v1188 = vld [vmem:[%s1138 + $0x1] sm:$0xff]
      %v1189 = vld [vmem:[%s1138 + $0x9] sm:$0xff]
      %v1190 = vld [vmem:[%s1138 + $0x19] sm:$0xff]
      %v1191 = vld [vmem:[%s1138 + $0x21] sm:$0xff]
      %v1192 = vld [vmem:[%s1138 + $0x31] sm:$0xff]
      %v1193 = vld [vmem:[%s1138 + $0x39] sm:$0xff]
      %v1194 = vld [vmem:[%s1138 + $0x49] sm:$0xff]
      %v1195 = vld [vmem:[%s1138 + $0x51] sm:$0xff]
      %v1196 = vld [vmem:[%s1138 + $0x61] sm:$0xff]
      %v1197 = vld [vmem:[%s1138 + $0x69] sm:$0xff]
      %v1198 = vld [vmem:[%s1138 + $0x79] sm:$0xff]
      %v1199 = vld [vmem:[%s1138 + $0x81] sm:$0xff]
      %v1200 = vld [vmem:[%s1138 + $0x91] sm:$0xff]
      %v1201 = vld [vmem:[%s1138 + $0x99] sm:$0xff]
      %v1202 = vld [vmem:[%s1138 + $0xa9] sm:$0xff]
      %v1203 = vld [vmem:[%s1138 + $0xb1] sm:$0xff]
      %v1204 = vperm.slane %v889, 6
      %v1205 = vmul.f32 %v1188, %v1204
      %v1206 = vmul.f32 %v1189, %v1204
      %v1207 = vmul.f32 %v1190, %v1204
      %v1208 = vmul.f32 %v1191, %v1204
      %v1209 = vmul.f32 %v1192, %v1204
      %v1210 = vmul.f32 %v1193, %v1204
      %v1211 = vmul.f32 %v1194, %v1204
      %v1212 = vmul.f32 %v1195, %v1204
      %v1213 = vmul.f32 %v1196, %v1204
      %v1214 = vmul.f32 %v1197, %v1204
      %v1215 = vmul.f32 %v1198, %v1204
      %v1216 = vmul.f32 %v1199, %v1204
      %v1217 = vmul.f32 %v1200, %v1204
      %v1218 = vmul.f32 %v1201, %v1204
      %v1219 = vmul.f32 %v1202, %v1204
      %v1220 = vmul.f32 %v1203, %v1204
      %v1221 = vadd.f32 %v1172, %v1205
      %v1222 = vadd.f32 %v1173, %v1206
      %v1223 = vadd.f32 %v1174, %v1207
      %v1224 = vadd.f32 %v1175, %v1208
      %v1225 = vadd.f32 %v1176, %v1209
      %v1226 = vadd.f32 %v1177, %v1210
      %v1227 = vadd.f32 %v1178, %v1211
      %v1228 = vadd.f32 %v1179, %v1212
      %v1229 = vadd.f32 %v1180, %v1213
      %v1230 = vadd.f32 %v1181, %v1214
      %v1231 = vadd.f32 %v1182, %v1215
      %v1232 = vadd.f32 %v1183, %v1216
      %v1233 = vadd.f32 %v1184, %v1217
      %v1234 = vadd.f32 %v1185, %v1218
      %v1235 = vadd.f32 %v1186, %v1219
      %v1236 = vadd.f32 %v1187, %v1220
      %v1237 = vld [vmem:[%s1138 + $0x2] sm:$0xff]
      %v1238 = vld [vmem:[%s1138 + $0xa] sm:$0xff]
      %v1239 = vld [vmem:[%s1138 + $0x1a] sm:$0xff]
      %v1240 = vld [vmem:[%s1138 + $0x22] sm:$0xff]
      %v1241 = vld [vmem:[%s1138 + $0x32] sm:$0xff]
      %v1242 = vld [vmem:[%s1138 + $0x3a] sm:$0xff]
      %v1243 = vld [vmem:[%s1138 + $0x4a] sm:$0xff]
      %v1244 = vld [vmem:[%s1138 + $0x52] sm:$0xff]
      %v1245 = vld [vmem:[%s1138 + $0x62] sm:$0xff]
      %v1246 = vld [vmem:[%s1138 + $0x6a] sm:$0xff]
      %v1247 = vld [vmem:[%s1138 + $0x7a] sm:$0xff]
      %v1248 = vld [vmem:[%s1138 + $0x82] sm:$0xff]
      %v1249 = vld [vmem:[%s1138 + $0x92] sm:$0xff]
      %v1250 = vld [vmem:[%s1138 + $0x9a] sm:$0xff]
      %v1251 = vld [vmem:[%s1138 + $0xaa] sm:$0xff]
      %v1252 = vld [vmem:[%s1138 + $0xb2] sm:$0xff]
      %v1253 = vperm.slane %v889, 7
      %v1254 = vmul.f32 %v1237, %v1253
      %v1255 = vmul.f32 %v1238, %v1253
      %v1256 = vmul.f32 %v1239, %v1253
      %v1257 = vmul.f32 %v1240, %v1253
      %v1258 = vmul.f32 %v1241, %v1253
      %v1259 = vmul.f32 %v1242, %v1253
      %v1260 = vmul.f32 %v1243, %v1253
      %v1261 = vmul.f32 %v1244, %v1253
      %v1262 = vmul.f32 %v1245, %v1253
      %v1263 = vmul.f32 %v1246, %v1253
      %v1264 = vmul.f32 %v1247, %v1253
      %v1265 = vmul.f32 %v1248, %v1253
      %v1266 = vmul.f32 %v1249, %v1253
      %v1267 = vmul.f32 %v1250, %v1253
      %v1268 = vmul.f32 %v1251, %v1253
      %v1269 = vmul.f32 %v1252, %v1253
      %v1270 = vadd.f32 %v1221, %v1254
      %v1271 = vadd.f32 %v1222, %v1255
      %v1272 = vadd.f32 %v1223, %v1256
      %v1273 = vadd.f32 %v1224, %v1257
      %v1274 = vadd.f32 %v1225, %v1258
      %v1275 = vadd.f32 %v1226, %v1259
      %v1276 = vadd.f32 %v1227, %v1260
      %v1277 = vadd.f32 %v1228, %v1261
      %v1278 = vadd.f32 %v1229, %v1262
      %v1279 = vadd.f32 %v1230, %v1263
      %v1280 = vadd.f32 %v1231, %v1264
      %v1281 = vadd.f32 %v1232, %v1265
      %v1282 = vadd.f32 %v1233, %v1266
      %v1283 = vadd.f32 %v1234, %v1267
      %v1284 = vadd.f32 %v1235, %v1268
      %v1285 = vadd.f32 %v1236, %v1269
      %v1286 = vld [vmem:[%s1138 + $0x3] sm:$0xff]
      %v1287 = vld [vmem:[%s1138 + $0xb] sm:$0xff]
      %v1288 = vld [vmem:[%s1138 + $0x1b] sm:$0xff]
      %v1289 = vld [vmem:[%s1138 + $0x23] sm:$0xff]
      %v1290 = vld [vmem:[%s1138 + $0x33] sm:$0xff]
      %v1291 = vld [vmem:[%s1138 + $0x3b] sm:$0xff]
      %v1292 = vld [vmem:[%s1138 + $0x4b] sm:$0xff]
      %v1293 = vld [vmem:[%s1138 + $0x53] sm:$0xff]
      %v1294 = vld [vmem:[%s1138 + $0x63] sm:$0xff]
      %v1295 = vld [vmem:[%s1138 + $0x6b] sm:$0xff]
      %v1296 = vld [vmem:[%s1138 + $0x7b] sm:$0xff]
      %v1297 = vld [vmem:[%s1138 + $0x83] sm:$0xff]
      %v1298 = vld [vmem:[%s1138 + $0x93] sm:$0xff]
      %v1299 = vld [vmem:[%s1138 + $0x9b] sm:$0xff]
      %v1300 = vld [vmem:[%s1138 + $0xab] sm:$0xff]
      %v1301 = vld [vmem:[%s1138 + $0xb3] sm:$0xff]
      %v1302 = vperm.slane %v890, 0
      %v1303 = vmul.f32 %v1286, %v1302
      %v1304 = vmul.f32 %v1287, %v1302
      %v1305 = vmul.f32 %v1288, %v1302
      %v1306 = vmul.f32 %v1289, %v1302
      %v1307 = vmul.f32 %v1290, %v1302
      %v1308 = vmul.f32 %v1291, %v1302
      %v1309 = vmul.f32 %v1292, %v1302
      %v1310 = vmul.f32 %v1293, %v1302
      %v1311 = vmul.f32 %v1294, %v1302
      %v1312 = vmul.f32 %v1295, %v1302
      %v1313 = vmul.f32 %v1296, %v1302
      %v1314 = vmul.f32 %v1297, %v1302
      %v1315 = vmul.f32 %v1298, %v1302
      %v1316 = vmul.f32 %v1299, %v1302
      %v1317 = vmul.f32 %v1300, %v1302
      %v1318 = vmul.f32 %v1301, %v1302
      %v1319 = vadd.f32 %v1270, %v1303
      %v1320 = vadd.f32 %v1271, %v1304
      %v1321 = vadd.f32 %v1272, %v1305
      %v1322 = vadd.f32 %v1273, %v1306
      %v1323 = vadd.f32 %v1274, %v1307
      %v1324 = vadd.f32 %v1275, %v1308
      %v1325 = vadd.f32 %v1276, %v1309
      %v1326 = vadd.f32 %v1277, %v1310
      %v1327 = vadd.f32 %v1278, %v1311
      %v1328 = vadd.f32 %v1279, %v1312
      %v1329 = vadd.f32 %v1280, %v1313
      %v1330 = vadd.f32 %v1281, %v1314
      %v1331 = vadd.f32 %v1282, %v1315
      %v1332 = vadd.f32 %v1283, %v1316
      %v1333 = vadd.f32 %v1284, %v1317
      %v1334 = vadd.f32 %v1285, %v1318
      %v1335 = vld [vmem:[%s1138 + $0x4] sm:$0xff]
      %v1336 = vld [vmem:[%s1138 + $0xc] sm:$0xff]
      %v1337 = vld [vmem:[%s1138 + $0x1c] sm:$0xff]
      %v1338 = vld [vmem:[%s1138 + $0x24] sm:$0xff]
      %v1339 = vld [vmem:[%s1138 + $0x34] sm:$0xff]
      %v1340 = vld [vmem:[%s1138 + $0x3c] sm:$0xff]
      %v1341 = vld [vmem:[%s1138 + $0x4c] sm:$0xff]
      %v1342 = vld [vmem:[%s1138 + $0x54] sm:$0xff]
      %v1343 = vld [vmem:[%s1138 + $0x64] sm:$0xff]
      %v1344 = vld [vmem:[%s1138 + $0x6c] sm:$0xff]
      %v1345 = vld [vmem:[%s1138 + $0x7c] sm:$0xff]
      %v1346 = vld [vmem:[%s1138 + $0x84] sm:$0xff]
      %v1347 = vld [vmem:[%s1138 + $0x94] sm:$0xff]
      %v1348 = vld [vmem:[%s1138 + $0x9c] sm:$0xff]
      %v1349 = vld [vmem:[%s1138 + $0xac] sm:$0xff]
      %v1350 = vld [vmem:[%s1138 + $0xb4] sm:$0xff]
      %v1351 = vperm.slane %v890, 1
      %v1352 = vmul.f32 %v1335, %v1351
      %v1353 = vmul.f32 %v1336, %v1351
      %v1354 = vmul.f32 %v1337, %v1351
      %v1355 = vmul.f32 %v1338, %v1351
      %v1356 = vmul.f32 %v1339, %v1351
      %v1357 = vmul.f32 %v1340, %v1351
      %v1358 = vmul.f32 %v1341, %v1351
      %v1359 = vmul.f32 %v1342, %v1351
      %v1360 = vmul.f32 %v1343, %v1351
      %v1361 = vmul.f32 %v1344, %v1351
      %v1362 = vmul.f32 %v1345, %v1351
      %v1363 = vmul.f32 %v1346, %v1351
      %v1364 = vmul.f32 %v1347, %v1351
      %v1365 = vmul.f32 %v1348, %v1351
      %v1366 = vmul.f32 %v1349, %v1351
      %v1367 = vmul.f32 %v1350, %v1351
      %v1368 = vadd.f32 %v1319, %v1352
      %v1369 = vadd.f32 %v1320, %v1353
      %v1370 = vadd.f32 %v1321, %v1354
      %v1371 = vadd.f32 %v1322, %v1355
      %v1372 = vadd.f32 %v1323, %v1356
      %v1373 = vadd.f32 %v1324, %v1357
      %v1374 = vadd.f32 %v1325, %v1358
      %v1375 = vadd.f32 %v1326, %v1359
      %v1376 = vadd.f32 %v1327, %v1360
      %v1377 = vadd.f32 %v1328, %v1361
      %v1378 = vadd.f32 %v1329, %v1362
      %v1379 = vadd.f32 %v1330, %v1363
      %v1380 = vadd.f32 %v1331, %v1364
      %v1381 = vadd.f32 %v1332, %v1365
      %v1382 = vadd.f32 %v1333, %v1366
      %v1383 = vadd.f32 %v1334, %v1367
      %s1384 = scalar_lea.vmem [#allocation2], 48
      %v1385 = vld [vmem:[%s1384] sm:$0xff]
      %v1386 = vld [vmem:[%s1384 + $0x8] sm:$0xff]
      %v1387 = vld [vmem:[%s1384 + $0x18] sm:$0xff]
      %v1388 = vld [vmem:[%s1384 + $0x20] sm:$0xff]
      %v1389 = vld [vmem:[%s1384 + $0x30] sm:$0xff]
      %v1390 = vld [vmem:[%s1384 + $0x38] sm:$0xff]
      %v1391 = vld [vmem:[%s1384 + $0x48] sm:$0xff]
      %v1392 = vld [vmem:[%s1384 + $0x50] sm:$0xff]
      %v1393 = vld [vmem:[%s1384 + $0x60] sm:$0xff]
      %v1394 = vld [vmem:[%s1384 + $0x68] sm:$0xff]
      %v1395 = vld [vmem:[%s1384 + $0x78] sm:$0xff]
      %v1396 = vld [vmem:[%s1384 + $0x80] sm:$0xff]
      %v1397 = vld [vmem:[%s1384 + $0x90] sm:$0xff]
      %v1398 = vld [vmem:[%s1384 + $0x98] sm:$0xff]
      %v1399 = vld [vmem:[%s1384 + $0xa8] sm:$0xff]
      %v1400 = vld [vmem:[%s1384 + $0xb0] sm:$0xff]
      %v1401 = vperm.slane %v890, 2
      %v1402 = vmul.f32 %v1385, %v1401
      %v1403 = vmul.f32 %v1386, %v1401
      %v1404 = vmul.f32 %v1387, %v1401
      %v1405 = vmul.f32 %v1388, %v1401
      %v1406 = vmul.f32 %v1389, %v1401
      %v1407 = vmul.f32 %v1390, %v1401
      %v1408 = vmul.f32 %v1391, %v1401
      %v1409 = vmul.f32 %v1392, %v1401
      %v1410 = vmul.f32 %v1393, %v1401
      %v1411 = vmul.f32 %v1394, %v1401
      %v1412 = vmul.f32 %v1395, %v1401
      %v1413 = vmul.f32 %v1396, %v1401
      %v1414 = vmul.f32 %v1397, %v1401
      %v1415 = vmul.f32 %v1398, %v1401
      %v1416 = vmul.f32 %v1399, %v1401
      %v1417 = vmul.f32 %v1400, %v1401
      %v1418 = vadd.f32 %v1368, %v1402
      %v1419 = vadd.f32 %v1369, %v1403
      %v1420 = vadd.f32 %v1370, %v1404
      %v1421 = vadd.f32 %v1371, %v1405
      %v1422 = vadd.f32 %v1372, %v1406
      %v1423 = vadd.f32 %v1373, %v1407
      %v1424 = vadd.f32 %v1374, %v1408
      %v1425 = vadd.f32 %v1375, %v1409
      %v1426 = vadd.f32 %v1376, %v1410
      %v1427 = vadd.f32 %v1377, %v1411
      %v1428 = vadd.f32 %v1378, %v1412
      %v1429 = vadd.f32 %v1379, %v1413
      %v1430 = vadd.f32 %v1380, %v1414
      %v1431 = vadd.f32 %v1381, %v1415
      %v1432 = vadd.f32 %v1382, %v1416
      %v1433 = vadd.f32 %v1383, %v1417
      %v1434 = vld [vmem:[%s1384 + $0x1] sm:$0xff]
      %v1435 = vld [vmem:[%s1384 + $0x9] sm:$0xff]
      %v1436 = vld [vmem:[%s1384 + $0x19] sm:$0xff]
      %v1437 = vld [vmem:[%s1384 + $0x21] sm:$0xff]
      %v1438 = vld [vmem:[%s1384 + $0x31] sm:$0xff]
      %v1439 = vld [vmem:[%s1384 + $0x39] sm:$0xff]
      %v1440 = vld [vmem:[%s1384 + $0x49] sm:$0xff]
      %v1441 = vld [vmem:[%s1384 + $0x51] sm:$0xff]
      %v1442 = vld [vmem:[%s1384 + $0x61] sm:$0xff]
      %v1443 = vld [vmem:[%s1384 + $0x69] sm:$0xff]
      %v1444 = vld [vmem:[%s1384 + $0x79] sm:$0xff]
      %v1445 = vld [vmem:[%s1384 + $0x81] sm:$0xff]
      %v1446 = vld [vmem:[%s1384 + $0x91] sm:$0xff]
      %v1447 = vld [vmem:[%s1384 + $0x99] sm:$0xff]
      %v1448 = vld [vmem:[%s1384 + $0xa9] sm:$0xff]
      %v1449 = vld [vmem:[%s1384 + $0xb1] sm:$0xff]
      %v1450 = vperm.slane %v890, 3
      %v1451 = vmul.f32 %v1434, %v1450
      %v1452 = vmul.f32 %v1435, %v1450
      %v1453 = vmul.f32 %v1436, %v1450
      %v1454 = vmul.f32 %v1437, %v1450
      %v1455 = vmul.f32 %v1438, %v1450
      %v1456 = vmul.f32 %v1439, %v1450
      %v1457 = vmul.f32 %v1440, %v1450
      %v1458 = vmul.f32 %v1441, %v1450
      %v1459 = vmul.f32 %v1442, %v1450
      %v1460 = vmul.f32 %v1443, %v1450
      %v1461 = vmul.f32 %v1444, %v1450
      %v1462 = vmul.f32 %v1445, %v1450
      %v1463 = vmul.f32 %v1446, %v1450
      %v1464 = vmul.f32 %v1447, %v1450
      %v1465 = vmul.f32 %v1448, %v1450
      %v1466 = vmul.f32 %v1449, %v1450
      %v1467 = vadd.f32 %v1418, %v1451
      %v1468 = vadd.f32 %v1419, %v1452
      %v1469 = vadd.f32 %v1420, %v1453
      %v1470 = vadd.f32 %v1421, %v1454
      %v1471 = vadd.f32 %v1422, %v1455
      %v1472 = vadd.f32 %v1423, %v1456
      %v1473 = vadd.f32 %v1424, %v1457
      %v1474 = vadd.f32 %v1425, %v1458
      %v1475 = vadd.f32 %v1426, %v1459
      %v1476 = vadd.f32 %v1427, %v1460
      %v1477 = vadd.f32 %v1428, %v1461
      %v1478 = vadd.f32 %v1429, %v1462
      %v1479 = vadd.f32 %v1430, %v1463
      %v1480 = vadd.f32 %v1431, %v1464
      %v1481 = vadd.f32 %v1432, %v1465
      %v1482 = vadd.f32 %v1433, %v1466
      %v1483 = vld [vmem:[%s1384 + $0x2] sm:$0xff]
      %v1484 = vld [vmem:[%s1384 + $0xa] sm:$0xff]
      %v1485 = vld [vmem:[%s1384 + $0x1a] sm:$0xff]
      %v1486 = vld [vmem:[%s1384 + $0x22] sm:$0xff]
      %v1487 = vld [vmem:[%s1384 + $0x32] sm:$0xff]
      %v1488 = vld [vmem:[%s1384 + $0x3a] sm:$0xff]
      %v1489 = vld [vmem:[%s1384 + $0x4a] sm:$0xff]
      %v1490 = vld [vmem:[%s1384 + $0x52] sm:$0xff]
      %v1491 = vld [vmem:[%s1384 + $0x62] sm:$0xff]
      %v1492 = vld [vmem:[%s1384 + $0x6a] sm:$0xff]
      %v1493 = vld [vmem:[%s1384 + $0x7a] sm:$0xff]
      %v1494 = vld [vmem:[%s1384 + $0x82] sm:$0xff]
      %v1495 = vld [vmem:[%s1384 + $0x92] sm:$0xff]
      %v1496 = vld [vmem:[%s1384 + $0x9a] sm:$0xff]
      %v1497 = vld [vmem:[%s1384 + $0xaa] sm:$0xff]
      %v1498 = vld [vmem:[%s1384 + $0xb2] sm:$0xff]
      %v1499 = vperm.slane %v890, 4
      %v1500 = vmul.f32 %v1483, %v1499
      %v1501 = vmul.f32 %v1484, %v1499
      %v1502 = vmul.f32 %v1485, %v1499
      %v1503 = vmul.f32 %v1486, %v1499
      %v1504 = vmul.f32 %v1487, %v1499
      %v1505 = vmul.f32 %v1488, %v1499
      %v1506 = vmul.f32 %v1489, %v1499
      %v1507 = vmul.f32 %v1490, %v1499
      %v1508 = vmul.f32 %v1491, %v1499
      %v1509 = vmul.f32 %v1492, %v1499
      %v1510 = vmul.f32 %v1493, %v1499
      %v1511 = vmul.f32 %v1494, %v1499
      %v1512 = vmul.f32 %v1495, %v1499
      %v1513 = vmul.f32 %v1496, %v1499
      %v1514 = vmul.f32 %v1497, %v1499
      %v1515 = vmul.f32 %v1498, %v1499
      %v1516 = vadd.f32 %v1467, %v1500
      %v1517 = vadd.f32 %v1468, %v1501
      %v1518 = vadd.f32 %v1469, %v1502
      %v1519 = vadd.f32 %v1470, %v1503
      %v1520 = vadd.f32 %v1471, %v1504
      %v1521 = vadd.f32 %v1472, %v1505
      %v1522 = vadd.f32 %v1473, %v1506
      %v1523 = vadd.f32 %v1474, %v1507
      %v1524 = vadd.f32 %v1475, %v1508
      %v1525 = vadd.f32 %v1476, %v1509
      %v1526 = vadd.f32 %v1477, %v1510
      %v1527 = vadd.f32 %v1478, %v1511
      %v1528 = vadd.f32 %v1479, %v1512
      %v1529 = vadd.f32 %v1480, %v1513
      %v1530 = vadd.f32 %v1481, %v1514
      %v1531 = vadd.f32 %v1482, %v1515
      %v1532 = vld [vmem:[%s1384 + $0x3] sm:$0xff]
      %v1533 = vld [vmem:[%s1384 + $0xb] sm:$0xff]
      %v1534 = vld [vmem:[%s1384 + $0x1b] sm:$0xff]
      %v1535 = vld [vmem:[%s1384 + $0x23] sm:$0xff]
      %v1536 = vld [vmem:[%s1384 + $0x33] sm:$0xff]
      %v1537 = vld [vmem:[%s1384 + $0x3b] sm:$0xff]
      %v1538 = vld [vmem:[%s1384 + $0x4b] sm:$0xff]
      %v1539 = vld [vmem:[%s1384 + $0x53] sm:$0xff]
      %v1540 = vld [vmem:[%s1384 + $0x63] sm:$0xff]
      %v1541 = vld [vmem:[%s1384 + $0x6b] sm:$0xff]
      %v1542 = vld [vmem:[%s1384 + $0x7b] sm:$0xff]
      %v1543 = vld [vmem:[%s1384 + $0x83] sm:$0xff]
      %v1544 = vld [vmem:[%s1384 + $0x93] sm:$0xff]
      %v1545 = vld [vmem:[%s1384 + $0x9b] sm:$0xff]
      %v1546 = vld [vmem:[%s1384 + $0xab] sm:$0xff]
      %v1547 = vld [vmem:[%s1384 + $0xb3] sm:$0xff]
      %v1548 = vperm.slane %v890, 5
      %v1549 = vmul.f32 %v1532, %v1548
      %v1550 = vmul.f32 %v1533, %v1548
      %v1551 = vmul.f32 %v1534, %v1548
      %v1552 = vmul.f32 %v1535, %v1548
      %v1553 = vmul.f32 %v1536, %v1548
      %v1554 = vmul.f32 %v1537, %v1548
      %v1555 = vmul.f32 %v1538, %v1548
      %v1556 = vmul.f32 %v1539, %v1548
      %v1557 = vmul.f32 %v1540, %v1548
      %v1558 = vmul.f32 %v1541, %v1548
      %v1559 = vmul.f32 %v1542, %v1548
      %v1560 = vmul.f32 %v1543, %v1548
      %v1561 = vmul.f32 %v1544, %v1548
      %v1562 = vmul.f32 %v1545, %v1548
      %v1563 = vmul.f32 %v1546, %v1548
      %v1564 = vmul.f32 %v1547, %v1548
      %v1565 = vadd.f32 %v1516, %v1549
      %v1566 = vadd.f32 %v1517, %v1550
      %v1567 = vadd.f32 %v1518, %v1551
      %v1568 = vadd.f32 %v1519, %v1552
      %v1569 = vadd.f32 %v1520, %v1553
      %v1570 = vadd.f32 %v1521, %v1554
      %v1571 = vadd.f32 %v1522, %v1555
      %v1572 = vadd.f32 %v1523, %v1556
      %v1573 = vadd.f32 %v1524, %v1557
      %v1574 = vadd.f32 %v1525, %v1558
      %v1575 = vadd.f32 %v1526, %v1559
      %v1576 = vadd.f32 %v1527, %v1560
      %v1577 = vadd.f32 %v1528, %v1561
      %v1578 = vadd.f32 %v1529, %v1562
      %v1579 = vadd.f32 %v1530, %v1563
      %v1580 = vadd.f32 %v1531, %v1564
      %v1581 = vld [vmem:[%s1384 + $0x4] sm:$0xff]
      %v1582 = vld [vmem:[%s1384 + $0xc] sm:$0xff]
      %v1583 = vld [vmem:[%s1384 + $0x1c] sm:$0xff]
      %v1584 = vld [vmem:[%s1384 + $0x24] sm:$0xff]
      %v1585 = vld [vmem:[%s1384 + $0x34] sm:$0xff]
      %v1586 = vld [vmem:[%s1384 + $0x3c] sm:$0xff]
      %v1587 = vld [vmem:[%s1384 + $0x4c] sm:$0xff]
      %v1588 = vld [vmem:[%s1384 + $0x54] sm:$0xff]
      %v1589 = vld [vmem:[%s1384 + $0x64] sm:$0xff]
      %v1590 = vld [vmem:[%s1384 + $0x6c] sm:$0xff]
      %v1591 = vld [vmem:[%s1384 + $0x7c] sm:$0xff]
      %v1592 = vld [vmem:[%s1384 + $0x84] sm:$0xff]
      %v1593 = vld [vmem:[%s1384 + $0x94] sm:$0xff]
      %v1594 = vld [vmem:[%s1384 + $0x9c] sm:$0xff]
      %v1595 = vld [vmem:[%s1384 + $0xac] sm:$0xff]
      %v1596 = vld [vmem:[%s1384 + $0xb4] sm:$0xff]
      %v1597 = vperm.slane %v890, 6
      %v1598 = vmul.f32 %v1581, %v1597
      %v1599 = vmul.f32 %v1582, %v1597
      %v1600 = vmul.f32 %v1583, %v1597
      %v1601 = vmul.f32 %v1584, %v1597
      %v1602 = vmul.f32 %v1585, %v1597
      %v1603 = vmul.f32 %v1586, %v1597
      %v1604 = vmul.f32 %v1587, %v1597
      %v1605 = vmul.f32 %v1588, %v1597
      %v1606 = vmul.f32 %v1589, %v1597
      %v1607 = vmul.f32 %v1590, %v1597
      %v1608 = vmul.f32 %v1591, %v1597
      %v1609 = vmul.f32 %v1592, %v1597
      %v1610 = vmul.f32 %v1593, %v1597
      %v1611 = vmul.f32 %v1594, %v1597
      %v1612 = vmul.f32 %v1595, %v1597
      %v1613 = vmul.f32 %v1596, %v1597
      %v1614 = vadd.f32 %v1565, %v1598
      %v1615 = vadd.f32 %v1566, %v1599
      %v1616 = vadd.f32 %v1567, %v1600
      %v1617 = vadd.f32 %v1568, %v1601
      %v1618 = vadd.f32 %v1569, %v1602
      %v1619 = vadd.f32 %v1570, %v1603
      %v1620 = vadd.f32 %v1571, %v1604
      %v1621 = vadd.f32 %v1572, %v1605
      %v1622 = vadd.f32 %v1573, %v1606
      %v1623 = vadd.f32 %v1574, %v1607
      %v1624 = vadd.f32 %v1575, %v1608
      %v1625 = vadd.f32 %v1576, %v1609
      %v1626 = vadd.f32 %v1577, %v1610
      %v1627 = vadd.f32 %v1578, %v1611
      %v1628 = vadd.f32 %v1579, %v1612
      %v1629 = vadd.f32 %v1580, %v1613
      %s1630 = scalar_lea.vmem [#allocation2], 72
      %v1631 = vld [vmem:[%s1630] sm:$0xff]
      %v1632 = vld [vmem:[%s1630 + $0x8] sm:$0xff]
      %v1633 = vld [vmem:[%s1630 + $0x18] sm:$0xff]
      %v1634 = vld [vmem:[%s1630 + $0x20] sm:$0xff]
      %v1635 = vld [vmem:[%s1630 + $0x30] sm:$0xff]
      %v1636 = vld [vmem:[%s1630 + $0x38] sm:$0xff]
      %v1637 = vld [vmem:[%s1630 + $0x48] sm:$0xff]
      %v1638 = vld [vmem:[%s1630 + $0x50] sm:$0xff]
      %v1639 = vld [vmem:[%s1630 + $0x60] sm:$0xff]
      %v1640 = vld [vmem:[%s1630 + $0x68] sm:$0xff]
      %v1641 = vld [vmem:[%s1630 + $0x78] sm:$0xff]
      %v1642 = vld [vmem:[%s1630 + $0x80] sm:$0xff]
      %v1643 = vld [vmem:[%s1630 + $0x90] sm:$0xff]
      %v1644 = vld [vmem:[%s1630 + $0x98] sm:$0xff]
      %v1645 = vld [vmem:[%s1630 + $0xa8] sm:$0xff]
      %v1646 = vld [vmem:[%s1630 + $0xb0] sm:$0xff]
      %v1647 = vperm.slane %v890, 7
      %v1648 = vmul.f32 %v1631, %v1647
      %v1649 = vmul.f32 %v1632, %v1647
      %v1650 = vmul.f32 %v1633, %v1647
      %v1651 = vmul.f32 %v1634, %v1647
      %v1652 = vmul.f32 %v1635, %v1647
      %v1653 = vmul.f32 %v1636, %v1647
      %v1654 = vmul.f32 %v1637, %v1647
      %v1655 = vmul.f32 %v1638, %v1647
      %v1656 = vmul.f32 %v1639, %v1647
      %v1657 = vmul.f32 %v1640, %v1647
      %v1658 = vmul.f32 %v1641, %v1647
      %v1659 = vmul.f32 %v1642, %v1647
      %v1660 = vmul.f32 %v1643, %v1647
      %v1661 = vmul.f32 %v1644, %v1647
      %v1662 = vmul.f32 %v1645, %v1647
      %v1663 = vmul.f32 %v1646, %v1647
      %v1664 = vadd.f32 %v1614, %v1648
      %v1665 = vadd.f32 %v1615, %v1649
      %v1666 = vadd.f32 %v1616, %v1650
      %v1667 = vadd.f32 %v1617, %v1651
      %v1668 = vadd.f32 %v1618, %v1652
      %v1669 = vadd.f32 %v1619, %v1653
      %v1670 = vadd.f32 %v1620, %v1654
      %v1671 = vadd.f32 %v1621, %v1655
      %v1672 = vadd.f32 %v1622, %v1656
      %v1673 = vadd.f32 %v1623, %v1657
      %v1674 = vadd.f32 %v1624, %v1658
      %v1675 = vadd.f32 %v1625, %v1659
      %v1676 = vadd.f32 %v1626, %v1660
      %v1677 = vadd.f32 %v1627, %v1661
      %v1678 = vadd.f32 %v1628, %v1662
      %v1679 = vadd.f32 %v1629, %v1663
      %v1680 = vld [vmem:[%s1630 + $0x1] sm:$0xff]
      %v1681 = vld [vmem:[%s1630 + $0x9] sm:$0xff]
      %v1682 = vld [vmem:[%s1630 + $0x19] sm:$0xff]
      %v1683 = vld [vmem:[%s1630 + $0x21] sm:$0xff]
      %v1684 = vld [vmem:[%s1630 + $0x31] sm:$0xff]
      %v1685 = vld [vmem:[%s1630 + $0x39] sm:$0xff]
      %v1686 = vld [vmem:[%s1630 + $0x49] sm:$0xff]
      %v1687 = vld [vmem:[%s1630 + $0x51] sm:$0xff]
      %v1688 = vld [vmem:[%s1630 + $0x61] sm:$0xff]
      %v1689 = vld [vmem:[%s1630 + $0x69] sm:$0xff]
      %v1690 = vld [vmem:[%s1630 + $0x79] sm:$0xff]
      %v1691 = vld [vmem:[%s1630 + $0x81] sm:$0xff]
      %v1692 = vld [vmem:[%s1630 + $0x91] sm:$0xff]
      %v1693 = vld [vmem:[%s1630 + $0x99] sm:$0xff]
      %v1694 = vld [vmem:[%s1630 + $0xa9] sm:$0xff]
      %v1695 = vld [vmem:[%s1630 + $0xb1] sm:$0xff]
      %v1696 = vperm.slane %v891, 0
      %v1697 = vmul.f32 %v1680, %v1696
      %v1698 = vmul.f32 %v1681, %v1696
      %v1699 = vmul.f32 %v1682, %v1696
      %v1700 = vmul.f32 %v1683, %v1696
      %v1701 = vmul.f32 %v1684, %v1696
      %v1702 = vmul.f32 %v1685, %v1696
      %v1703 = vmul.f32 %v1686, %v1696
      %v1704 = vmul.f32 %v1687, %v1696
      %v1705 = vmul.f32 %v1688, %v1696
      %v1706 = vmul.f32 %v1689, %v1696
      %v1707 = vmul.f32 %v1690, %v1696
      %v1708 = vmul.f32 %v1691, %v1696
      %v1709 = vmul.f32 %v1692, %v1696
      %v1710 = vmul.f32 %v1693, %v1696
      %v1711 = vmul.f32 %v1694, %v1696
      %v1712 = vmul.f32 %v1695, %v1696
      %v1713 = vadd.f32 %v1664, %v1697
      %v1714 = vadd.f32 %v1665, %v1698
      %v1715 = vadd.f32 %v1666, %v1699
      %v1716 = vadd.f32 %v1667, %v1700
      %v1717 = vadd.f32 %v1668, %v1701
      %v1718 = vadd.f32 %v1669, %v1702
      %v1719 = vadd.f32 %v1670, %v1703
      %v1720 = vadd.f32 %v1671, %v1704
      %v1721 = vadd.f32 %v1672, %v1705
      %v1722 = vadd.f32 %v1673, %v1706
      %v1723 = vadd.f32 %v1674, %v1707
      %v1724 = vadd.f32 %v1675, %v1708
      %v1725 = vadd.f32 %v1676, %v1709
      %v1726 = vadd.f32 %v1677, %v1710
      %v1727 = vadd.f32 %v1678, %v1711
      %v1728 = vadd.f32 %v1679, %v1712
      %v1729 = vld [vmem:[%s1630 + $0x2] sm:$0xff]
      %v1730 = vld [vmem:[%s1630 + $0xa] sm:$0xff]
      %v1731 = vld [vmem:[%s1630 + $0x1a] sm:$0xff]
      %v1732 = vld [vmem:[%s1630 + $0x22] sm:$0xff]
      %v1733 = vld [vmem:[%s1630 + $0x32] sm:$0xff]
      %v1734 = vld [vmem:[%s1630 + $0x3a] sm:$0xff]
      %v1735 = vld [vmem:[%s1630 + $0x4a] sm:$0xff]
      %v1736 = vld [vmem:[%s1630 + $0x52] sm:$0xff]
      %v1737 = vld [vmem:[%s1630 + $0x62] sm:$0xff]
      %v1738 = vld [vmem:[%s1630 + $0x6a] sm:$0xff]
      %v1739 = vld [vmem:[%s1630 + $0x7a] sm:$0xff]
      %v1740 = vld [vmem:[%s1630 + $0x82] sm:$0xff]
      %v1741 = vld [vmem:[%s1630 + $0x92] sm:$0xff]
      %v1742 = vld [vmem:[%s1630 + $0x9a] sm:$0xff]
      %v1743 = vld [vmem:[%s1630 + $0xaa] sm:$0xff]
      %v1744 = vld [vmem:[%s1630 + $0xb2] sm:$0xff]
      %v1745 = vperm.slane %v891, 1
      %v1746 = vmul.f32 %v1729, %v1745
      %v1747 = vmul.f32 %v1730, %v1745
      %v1748 = vmul.f32 %v1731, %v1745
      %v1749 = vmul.f32 %v1732, %v1745
      %v1750 = vmul.f32 %v1733, %v1745
      %v1751 = vmul.f32 %v1734, %v1745
      %v1752 = vmul.f32 %v1735, %v1745
      %v1753 = vmul.f32 %v1736, %v1745
      %v1754 = vmul.f32 %v1737, %v1745
      %v1755 = vmul.f32 %v1738, %v1745
      %v1756 = vmul.f32 %v1739, %v1745
      %v1757 = vmul.f32 %v1740, %v1745
      %v1758 = vmul.f32 %v1741, %v1745
      %v1759 = vmul.f32 %v1742, %v1745
      %v1760 = vmul.f32 %v1743, %v1745
      %v1761 = vmul.f32 %v1744, %v1745
      %v1762 = vadd.f32 %v1713, %v1746
      %v1763 = vadd.f32 %v1714, %v1747
      %v1764 = vadd.f32 %v1715, %v1748
      %v1765 = vadd.f32 %v1716, %v1749
      %v1766 = vadd.f32 %v1717, %v1750
      %v1767 = vadd.f32 %v1718, %v1751
      %v1768 = vadd.f32 %v1719, %v1752
      %v1769 = vadd.f32 %v1720, %v1753
      %v1770 = vadd.f32 %v1721, %v1754
      %v1771 = vadd.f32 %v1722, %v1755
      %v1772 = vadd.f32 %v1723, %v1756
      %v1773 = vadd.f32 %v1724, %v1757
      %v1774 = vadd.f32 %v1725, %v1758
      %v1775 = vadd.f32 %v1726, %v1759
      %v1776 = vadd.f32 %v1727, %v1760
      %v1777 = vadd.f32 %v1728, %v1761
      %v1778 = vld [vmem:[%s1630 + $0x3] sm:$0xff]
      %v1779 = vld [vmem:[%s1630 + $0xb] sm:$0xff]
      %v1780 = vld [vmem:[%s1630 + $0x1b] sm:$0xff]
      %v1781 = vld [vmem:[%s1630 + $0x23] sm:$0xff]
      %v1782 = vld [vmem:[%s1630 + $0x33] sm:$0xff]
      %v1783 = vld [vmem:[%s1630 + $0x3b] sm:$0xff]
      %v1784 = vld [vmem:[%s1630 + $0x4b] sm:$0xff]
      %v1785 = vld [vmem:[%s1630 + $0x53] sm:$0xff]
      %v1786 = vld [vmem:[%s1630 + $0x63] sm:$0xff]
      %v1787 = vld [vmem:[%s1630 + $0x6b] sm:$0xff]
      %v1788 = vld [vmem:[%s1630 + $0x7b] sm:$0xff]
      %v1789 = vld [vmem:[%s1630 + $0x83] sm:$0xff]
      %v1790 = vld [vmem:[%s1630 + $0x93] sm:$0xff]
      %v1791 = vld [vmem:[%s1630 + $0x9b] sm:$0xff]
      %v1792 = vld [vmem:[%s1630 + $0xab] sm:$0xff]
      %v1793 = vld [vmem:[%s1630 + $0xb3] sm:$0xff]
      %v1794 = vperm.slane %v891, 2
      %v1795 = vmul.f32 %v1778, %v1794
      %v1796 = vmul.f32 %v1779, %v1794
      %v1797 = vmul.f32 %v1780, %v1794
      %v1798 = vmul.f32 %v1781, %v1794
      %v1799 = vmul.f32 %v1782, %v1794
      %v1800 = vmul.f32 %v1783, %v1794
      %v1801 = vmul.f32 %v1784, %v1794
      %v1802 = vmul.f32 %v1785, %v1794
      %v1803 = vmul.f32 %v1786, %v1794
      %v1804 = vmul.f32 %v1787, %v1794
      %v1805 = vmul.f32 %v1788, %v1794
      %v1806 = vmul.f32 %v1789, %v1794
      %v1807 = vmul.f32 %v1790, %v1794
      %v1808 = vmul.f32 %v1791, %v1794
      %v1809 = vmul.f32 %v1792, %v1794
      %v1810 = vmul.f32 %v1793, %v1794
      %v1811 = vadd.f32 %v1762, %v1795
      %v1812 = vadd.f32 %v1763, %v1796
      %v1813 = vadd.f32 %v1764, %v1797
      %v1814 = vadd.f32 %v1765, %v1798
      %v1815 = vadd.f32 %v1766, %v1799
      %v1816 = vadd.f32 %v1767, %v1800
      %v1817 = vadd.f32 %v1768, %v1801
      %v1818 = vadd.f32 %v1769, %v1802
      %v1819 = vadd.f32 %v1770, %v1803
      %v1820 = vadd.f32 %v1771, %v1804
      %v1821 = vadd.f32 %v1772, %v1805
      %v1822 = vadd.f32 %v1773, %v1806
      %v1823 = vadd.f32 %v1774, %v1807
      %v1824 = vadd.f32 %v1775, %v1808
      %v1825 = vadd.f32 %v1776, %v1809
      %v1826 = vadd.f32 %v1777, %v1810
      %v1827 = vld [vmem:[%s1630 + $0x4] sm:$0xff]
      %v1828 = vld [vmem:[%s1630 + $0xc] sm:$0xff]
      %v1829 = vld [vmem:[%s1630 + $0x1c] sm:$0xff]
      %v1830 = vld [vmem:[%s1630 + $0x24] sm:$0xff]
      %v1831 = vld [vmem:[%s1630 + $0x34] sm:$0xff]
      %v1832 = vld [vmem:[%s1630 + $0x3c] sm:$0xff]
      %v1833 = vld [vmem:[%s1630 + $0x4c] sm:$0xff]
      %v1834 = vld [vmem:[%s1630 + $0x54] sm:$0xff]
      %v1835 = vld [vmem:[%s1630 + $0x64] sm:$0xff]
      %v1836 = vld [vmem:[%s1630 + $0x6c] sm:$0xff]
      %v1837 = vld [vmem:[%s1630 + $0x7c] sm:$0xff]
      %v1838 = vld [vmem:[%s1630 + $0x84] sm:$0xff]
      %v1839 = vld [vmem:[%s1630 + $0x94] sm:$0xff]
      %v1840 = vld [vmem:[%s1630 + $0x9c] sm:$0xff]
      %v1841 = vld [vmem:[%s1630 + $0xac] sm:$0xff]
      %v1842 = vld [vmem:[%s1630 + $0xb4] sm:$0xff]
      %v1843 = vperm.slane %v891, 3
      %v1844 = vmul.f32 %v1827, %v1843
      %v1845 = vmul.f32 %v1828, %v1843
      %v1846 = vmul.f32 %v1829, %v1843
      %v1847 = vmul.f32 %v1830, %v1843
      %v1848 = vmul.f32 %v1831, %v1843
      %v1849 = vmul.f32 %v1832, %v1843
      %v1850 = vmul.f32 %v1833, %v1843
      %v1851 = vmul.f32 %v1834, %v1843
      %v1852 = vmul.f32 %v1835, %v1843
      %v1853 = vmul.f32 %v1836, %v1843
      %v1854 = vmul.f32 %v1837, %v1843
      %v1855 = vmul.f32 %v1838, %v1843
      %v1856 = vmul.f32 %v1839, %v1843
      %v1857 = vmul.f32 %v1840, %v1843
      %v1858 = vmul.f32 %v1841, %v1843
      %v1859 = vmul.f32 %v1842, %v1843
      %v1860 = vadd.f32 %v1811, %v1844
      %v1861 = vadd.f32 %v1812, %v1845
      %v1862 = vadd.f32 %v1813, %v1846
      %v1863 = vadd.f32 %v1814, %v1847
      %v1864 = vadd.f32 %v1815, %v1848
      %v1865 = vadd.f32 %v1816, %v1849
      %v1866 = vadd.f32 %v1817, %v1850
      %v1867 = vadd.f32 %v1818, %v1851
      %v1868 = vadd.f32 %v1819, %v1852
      %v1869 = vadd.f32 %v1820, %v1853
      %v1870 = vadd.f32 %v1821, %v1854
      %v1871 = vadd.f32 %v1822, %v1855
      %v1872 = vadd.f32 %v1823, %v1856
      %v1873 = vadd.f32 %v1824, %v1857
      %v1874 = vadd.f32 %v1825, %v1858
      %v1875 = vadd.f32 %v1826, %v1859
      %s1876 = scalar_lea.vmem [#allocation2], 96
      %v1877 = vld [vmem:[%s1876] sm:$0xff]
      %v1878 = vld [vmem:[%s1876 + $0x8] sm:$0xff]
      %v1879 = vld [vmem:[%s1876 + $0x18] sm:$0xff]
      %v1880 = vld [vmem:[%s1876 + $0x20] sm:$0xff]
      %v1881 = vld [vmem:[%s1876 + $0x30] sm:$0xff]
      %v1882 = vld [vmem:[%s1876 + $0x38] sm:$0xff]
      %v1883 = vld [vmem:[%s1876 + $0x48] sm:$0xff]
      %v1884 = vld [vmem:[%s1876 + $0x50] sm:$0xff]
      %v1885 = vld [vmem:[%s1876 + $0x60] sm:$0xff]
      %v1886 = vld [vmem:[%s1876 + $0x68] sm:$0xff]
      %v1887 = vld [vmem:[%s1876 + $0x78] sm:$0xff]
      %v1888 = vld [vmem:[%s1876 + $0x80] sm:$0xff]
      %v1889 = vld [vmem:[%s1876 + $0x90] sm:$0xff]
      %v1890 = vld [vmem:[%s1876 + $0x98] sm:$0xff]
      %v1891 = vld [vmem:[%s1876 + $0xa8] sm:$0xff]
      %v1892 = vld [vmem:[%s1876 + $0xb0] sm:$0xff]
      %v1893 = vperm.slane %v891, 4
      %v1894 = vmul.f32 %v1877, %v1893
      %v1895 = vmul.f32 %v1878, %v1893
      %v1896 = vmul.f32 %v1879, %v1893
      %v1897 = vmul.f32 %v1880, %v1893
      %v1898 = vmul.f32 %v1881, %v1893
      %v1899 = vmul.f32 %v1882, %v1893
      %v1900 = vmul.f32 %v1883, %v1893
      %v1901 = vmul.f32 %v1884, %v1893
      %v1902 = vmul.f32 %v1885, %v1893
      %v1903 = vmul.f32 %v1886, %v1893
      %v1904 = vmul.f32 %v1887, %v1893
      %v1905 = vmul.f32 %v1888, %v1893
      %v1906 = vmul.f32 %v1889, %v1893
      %v1907 = vmul.f32 %v1890, %v1893
      %v1908 = vmul.f32 %v1891, %v1893
      %v1909 = vmul.f32 %v1892, %v1893
      %v1910 = vadd.f32 %v1860, %v1894
      %v1911 = vadd.f32 %v1861, %v1895
      %v1912 = vadd.f32 %v1862, %v1896
      %v1913 = vadd.f32 %v1863, %v1897
      %v1914 = vadd.f32 %v1864, %v1898
      %v1915 = vadd.f32 %v1865, %v1899
      %v1916 = vadd.f32 %v1866, %v1900
      %v1917 = vadd.f32 %v1867, %v1901
      %v1918 = vadd.f32 %v1868, %v1902
      %v1919 = vadd.f32 %v1869, %v1903
      %v1920 = vadd.f32 %v1870, %v1904
      %v1921 = vadd.f32 %v1871, %v1905
      %v1922 = vadd.f32 %v1872, %v1906
      %v1923 = vadd.f32 %v1873, %v1907
      %v1924 = vadd.f32 %v1874, %v1908
      %v1925 = vadd.f32 %v1875, %v1909
      %v1926 = vld [vmem:[%s1876 + $0x1] sm:$0xff]
      %v1927 = vld [vmem:[%s1876 + $0x9] sm:$0xff]
      %v1928 = vld [vmem:[%s1876 + $0x19] sm:$0xff]
      %v1929 = vld [vmem:[%s1876 + $0x21] sm:$0xff]
      %v1930 = vld [vmem:[%s1876 + $0x31] sm:$0xff]
      %v1931 = vld [vmem:[%s1876 + $0x39] sm:$0xff]
      %v1932 = vld [vmem:[%s1876 + $0x49] sm:$0xff]
      %v1933 = vld [vmem:[%s1876 + $0x51] sm:$0xff]
      %v1934 = vld [vmem:[%s1876 + $0x61] sm:$0xff]
      %v1935 = vld [vmem:[%s1876 + $0x69] sm:$0xff]
      %v1936 = vld [vmem:[%s1876 + $0x79] sm:$0xff]
      %v1937 = vld [vmem:[%s1876 + $0x81] sm:$0xff]
      %v1938 = vld [vmem:[%s1876 + $0x91] sm:$0xff]
      %v1939 = vld [vmem:[%s1876 + $0x99] sm:$0xff]
      %v1940 = vld [vmem:[%s1876 + $0xa9] sm:$0xff]
      %v1941 = vld [vmem:[%s1876 + $0xb1] sm:$0xff]
      %v1942 = vperm.slane %v891, 5
      %v1943 = vmul.f32 %v1926, %v1942
      %v1944 = vmul.f32 %v1927, %v1942
      %v1945 = vmul.f32 %v1928, %v1942
      %v1946 = vmul.f32 %v1929, %v1942
      %v1947 = vmul.f32 %v1930, %v1942
      %v1948 = vmul.f32 %v1931, %v1942
      %v1949 = vmul.f32 %v1932, %v1942
      %v1950 = vmul.f32 %v1933, %v1942
      %v1951 = vmul.f32 %v1934, %v1942
      %v1952 = vmul.f32 %v1935, %v1942
      %v1953 = vmul.f32 %v1936, %v1942
      %v1954 = vmul.f32 %v1937, %v1942
      %v1955 = vmul.f32 %v1938, %v1942
      %v1956 = vmul.f32 %v1939, %v1942
      %v1957 = vmul.f32 %v1940, %v1942
      %v1958 = vmul.f32 %v1941, %v1942
      %v1959 = vadd.f32 %v1910, %v1943
      %v1960 = vadd.f32 %v1911, %v1944
      %v1961 = vadd.f32 %v1912, %v1945
      %v1962 = vadd.f32 %v1913, %v1946
      %v1963 = vadd.f32 %v1914, %v1947
      %v1964 = vadd.f32 %v1915, %v1948
      %v1965 = vadd.f32 %v1916, %v1949
      %v1966 = vadd.f32 %v1917, %v1950
      %v1967 = vadd.f32 %v1918, %v1951
      %v1968 = vadd.f32 %v1919, %v1952
      %v1969 = vadd.f32 %v1920, %v1953
      %v1970 = vadd.f32 %v1921, %v1954
      %v1971 = vadd.f32 %v1922, %v1955
      %v1972 = vadd.f32 %v1923, %v1956
      %v1973 = vadd.f32 %v1924, %v1957
      %v1974 = vadd.f32 %v1925, %v1958
      %v1975 = vld [vmem:[%s1876 + $0x2] sm:$0xff]
      %v1976 = vld [vmem:[%s1876 + $0xa] sm:$0xff]
      %v1977 = vld [vmem:[%s1876 + $0x1a] sm:$0xff]
      %v1978 = vld [vmem:[%s1876 + $0x22] sm:$0xff]
      %v1979 = vld [vmem:[%s1876 + $0x32] sm:$0xff]
      %v1980 = vld [vmem:[%s1876 + $0x3a] sm:$0xff]
      %v1981 = vld [vmem:[%s1876 + $0x4a] sm:$0xff]
      %v1982 = vld [vmem:[%s1876 + $0x52] sm:$0xff]
      %v1983 = vld [vmem:[%s1876 + $0x62] sm:$0xff]
      %v1984 = vld [vmem:[%s1876 + $0x6a] sm:$0xff]
      %v1985 = vld [vmem:[%s1876 + $0x7a] sm:$0xff]
      %v1986 = vld [vmem:[%s1876 + $0x82] sm:$0xff]
      %v1987 = vld [vmem:[%s1876 + $0x92] sm:$0xff]
      %v1988 = vld [vmem:[%s1876 + $0x9a] sm:$0xff]
      %v1989 = vld [vmem:[%s1876 + $0xaa] sm:$0xff]
      %v1990 = vld [vmem:[%s1876 + $0xb2] sm:$0xff]
      %v1991 = vperm.slane %v891, 6
      %v1992 = vmul.f32 %v1975, %v1991
      %v1993 = vmul.f32 %v1976, %v1991
      %v1994 = vmul.f32 %v1977, %v1991
      %v1995 = vmul.f32 %v1978, %v1991
      %v1996 = vmul.f32 %v1979, %v1991
      %v1997 = vmul.f32 %v1980, %v1991
      %v1998 = vmul.f32 %v1981, %v1991
      %v1999 = vmul.f32 %v1982, %v1991
      %v2000 = vmul.f32 %v1983, %v1991
      %v2001 = vmul.f32 %v1984, %v1991
      %v2002 = vmul.f32 %v1985, %v1991
      %v2003 = vmul.f32 %v1986, %v1991
      %v2004 = vmul.f32 %v1987, %v1991
      %v2005 = vmul.f32 %v1988, %v1991
      %v2006 = vmul.f32 %v1989, %v1991
      %v2007 = vmul.f32 %v1990, %v1991
      %v2008 = vadd.f32 %v1959, %v1992
      %v2009 = vadd.f32 %v1960, %v1993
      %v2010 = vadd.f32 %v1961, %v1994
      %v2011 = vadd.f32 %v1962, %v1995
      %v2012 = vadd.f32 %v1963, %v1996
      %v2013 = vadd.f32 %v1964, %v1997
      %v2014 = vadd.f32 %v1965, %v1998
      %v2015 = vadd.f32 %v1966, %v1999
      %v2016 = vadd.f32 %v1967, %v2000
      %v2017 = vadd.f32 %v1968, %v2001
      %v2018 = vadd.f32 %v1969, %v2002
      %v2019 = vadd.f32 %v1970, %v2003
      %v2020 = vadd.f32 %v1971, %v2004
      %v2021 = vadd.f32 %v1972, %v2005
      %v2022 = vadd.f32 %v1973, %v2006
      %v2023 = vadd.f32 %v1974, %v2007
      %v2024 = vld [vmem:[%s1876 + $0x3] sm:$0xff]
      %v2025 = vld [vmem:[%s1876 + $0xb] sm:$0xff]
      %v2026 = vld [vmem:[%s1876 + $0x1b] sm:$0xff]
      %v2027 = vld [vmem:[%s1876 + $0x23] sm:$0xff]
      %v2028 = vld [vmem:[%s1876 + $0x33] sm:$0xff]
      %v2029 = vld [vmem:[%s1876 + $0x3b] sm:$0xff]
      %v2030 = vld [vmem:[%s1876 + $0x4b] sm:$0xff]
      %v2031 = vld [vmem:[%s1876 + $0x53] sm:$0xff]
      %v2032 = vld [vmem:[%s1876 + $0x63] sm:$0xff]
      %v2033 = vld [vmem:[%s1876 + $0x6b] sm:$0xff]
      %v2034 = vld [vmem:[%s1876 + $0x7b] sm:$0xff]
      %v2035 = vld [vmem:[%s1876 + $0x83] sm:$0xff]
      %v2036 = vld [vmem:[%s1876 + $0x93] sm:$0xff]
      %v2037 = vld [vmem:[%s1876 + $0x9b] sm:$0xff]
      %v2038 = vld [vmem:[%s1876 + $0xab] sm:$0xff]
      %v2039 = vld [vmem:[%s1876 + $0xb3] sm:$0xff]
      %v2040 = vperm.slane %v891, 7
      %v2041 = vmul.f32 %v2024, %v2040
      %v2042 = vmul.f32 %v2025, %v2040
      %v2043 = vmul.f32 %v2026, %v2040
      %v2044 = vmul.f32 %v2027, %v2040
      %v2045 = vmul.f32 %v2028, %v2040
      %v2046 = vmul.f32 %v2029, %v2040
      %v2047 = vmul.f32 %v2030, %v2040
      %v2048 = vmul.f32 %v2031, %v2040
      %v2049 = vmul.f32 %v2032, %v2040
      %v2050 = vmul.f32 %v2033, %v2040
      %v2051 = vmul.f32 %v2034, %v2040
      %v2052 = vmul.f32 %v2035, %v2040
      %v2053 = vmul.f32 %v2036, %v2040
      %v2054 = vmul.f32 %v2037, %v2040
      %v2055 = vmul.f32 %v2038, %v2040
      %v2056 = vmul.f32 %v2039, %v2040
      %v2057 = vadd.f32 %v2008, %v2041
      %v2058 = vadd.f32 %v2009, %v2042
      %v2059 = vadd.f32 %v2010, %v2043
      %v2060 = vadd.f32 %v2011, %v2044
      %v2061 = vadd.f32 %v2012, %v2045
      %v2062 = vadd.f32 %v2013, %v2046
      %v2063 = vadd.f32 %v2014, %v2047
      %v2064 = vadd.f32 %v2015, %v2048
      %v2065 = vadd.f32 %v2016, %v2049
      %v2066 = vadd.f32 %v2017, %v2050
      %v2067 = vadd.f32 %v2018, %v2051
      %v2068 = vadd.f32 %v2019, %v2052
      %v2069 = vadd.f32 %v2020, %v2053
      %v2070 = vadd.f32 %v2021, %v2054
      %v2071 = vadd.f32 %v2022, %v2055
      %v2072 = vadd.f32 %v2023, %v2056
      %v2073 = vld [vmem:[%s1876 + $0x4] sm:$0xff]
      %v2074 = vld [vmem:[%s1876 + $0xc] sm:$0xff]
      %v2075 = vld [vmem:[%s1876 + $0x1c] sm:$0xff]
      %v2076 = vld [vmem:[%s1876 + $0x24] sm:$0xff]
      %v2077 = vld [vmem:[%s1876 + $0x34] sm:$0xff]
      %v2078 = vld [vmem:[%s1876 + $0x3c] sm:$0xff]
      %v2079 = vld [vmem:[%s1876 + $0x4c] sm:$0xff]
      %v2080 = vld [vmem:[%s1876 + $0x54] sm:$0xff]
      %v2081 = vld [vmem:[%s1876 + $0x64] sm:$0xff]
      %v2082 = vld [vmem:[%s1876 + $0x6c] sm:$0xff]
      %v2083 = vld [vmem:[%s1876 + $0x7c] sm:$0xff]
      %v2084 = vld [vmem:[%s1876 + $0x84] sm:$0xff]
      %v2085 = vld [vmem:[%s1876 + $0x94] sm:$0xff]
      %v2086 = vld [vmem:[%s1876 + $0x9c] sm:$0xff]
      %v2087 = vld [vmem:[%s1876 + $0xac] sm:$0xff]
      %v2088 = vld [vmem:[%s1876 + $0xb4] sm:$0xff]
      %v2089 = vperm.slane %v892, 0
      %v2090 = vmul.f32 %v2073, %v2089
      %v2091 = vmul.f32 %v2074, %v2089
      %v2092 = vmul.f32 %v2075, %v2089
      %v2093 = vmul.f32 %v2076, %v2089
      %v2094 = vmul.f32 %v2077, %v2089
      %v2095 = vmul.f32 %v2078, %v2089
      %v2096 = vmul.f32 %v2079, %v2089
      %v2097 = vmul.f32 %v2080, %v2089
      %v2098 = vmul.f32 %v2081, %v2089
      %v2099 = vmul.f32 %v2082, %v2089
      %v2100 = vmul.f32 %v2083, %v2089
      %v2101 = vmul.f32 %v2084, %v2089
      %v2102 = vmul.f32 %v2085, %v2089
      %v2103 = vmul.f32 %v2086, %v2089
      %v2104 = vmul.f32 %v2087, %v2089
      %v2105 = vmul.f32 %v2088, %v2089
      %v2106 = vadd.f32 %v2057, %v2090
      %v2107 = vadd.f32 %v2058, %v2091
      %v2108 = vadd.f32 %v2059, %v2092
      %v2109 = vadd.f32 %v2060, %v2093
      %v2110 = vadd.f32 %v2061, %v2094
      %v2111 = vadd.f32 %v2062, %v2095
      %v2112 = vadd.f32 %v2063, %v2096
      %v2113 = vadd.f32 %v2064, %v2097
      %v2114 = vadd.f32 %v2065, %v2098
      %v2115 = vadd.f32 %v2066, %v2099
      %v2116 = vadd.f32 %v2067, %v2100
      %v2117 = vadd.f32 %v2068, %v2101
      %v2118 = vadd.f32 %v2069, %v2102
      %v2119 = vadd.f32 %v2070, %v2103
      %v2120 = vadd.f32 %v2071, %v2104
      %v2121 = vadd.f32 %v2072, %v2105
      %v2122 = vld [vmem:[%s6] sm:$0x1]
      %v2124 = vperm.slane %v2122, 0
      %v2126 = vadd.f32 %v2106, %v2124
      %v2127 = vadd.f32 %v2107, %v2124
      %v2128 = vadd.f32 %v2108, %v2124
      %v2129 = vadd.f32 %v2109, %v2124
      %v2130 = vadd.f32 %v2110, %v2124
      %v2131 = vadd.f32 %v2111, %v2124
      %v2132 = vadd.f32 %v2112, %v2124
      %v2133 = vadd.f32 %v2113, %v2124
      %v2134 = vadd.f32 %v2114, %v2124
      %v2135 = vadd.f32 %v2115, %v2124
      %v2136 = vadd.f32 %v2116, %v2124
      %v2137 = vadd.f32 %v2117, %v2124
      %v2138 = vadd.f32 %v2118, %v2124
      %v2139 = vadd.f32 %v2119, %v2124
      %v2140 = vadd.f32 %v2120, %v2124
      %v2141 = vadd.f32 %v2121, %v2124
      %v2142 = vsub.f32 0.0, %v2126
      %v2143 = vsub.f32 0.0, %v2127
      %v2144 = vsub.f32 0.0, %v2128
      %v2145 = vsub.f32 0.0, %v2129
      %v2146 = vsub.f32 0.0, %v2130
      %v2147 = vsub.f32 0.0, %v2131
      %v2148 = vsub.f32 0.0, %v2132
      %v2149 = vsub.f32 0.0, %v2133
      %v2150 = vsub.f32 0.0, %v2134
      %v2151 = vsub.f32 0.0, %v2135
      %v2152 = vsub.f32 0.0, %v2136
      %v2153 = vsub.f32 0.0, %v2137
      %v2154 = vsub.f32 0.0, %v2138
      %v2155 = vsub.f32 0.0, %v2139
      %v2156 = vsub.f32 0.0, %v2140
      %v2157 = vsub.f32 0.0, %v2141
      %v2158 = vmul.f32 %v2142, 1.442695
      %v2159 = vpow.pop %v2158
      %v2160 = vmul.f32 %v2143, 1.442695
      %v2161 = vpow.pop %v2160
      %v2162 = vmul.f32 %v2144, 1.442695
      %v2163 = vpow.pop %v2162
      %v2164 = vmul.f32 %v2145, 1.442695
      %v2165 = vpow.pop %v2164
      %v2166 = vmul.f32 %v2146, 1.442695
      %v2167 = vpow.pop %v2166
      %v2168 = vmul.f32 %v2147, 1.442695
      %v2169 = vpow.pop %v2168
      %v2170 = vmul.f32 %v2148, 1.442695
      %v2171 = vpow.pop %v2170
      %v2172 = vmul.f32 %v2149, 1.442695
      %v2173 = vpow.pop %v2172
      %v2174 = vmul.f32 %v2150, 1.442695
      %v2175 = vpow.pop %v2174
      %v2176 = vmul.f32 %v2151, 1.442695
      %v2177 = vpow.pop %v2176
      %v2178 = vmul.f32 %v2152, 1.442695
      %v2179 = vpow.pop %v2178
      %v2180 = vmul.f32 %v2153, 1.442695
      %v2181 = vpow.pop %v2180
      %v2182 = vmul.f32 %v2154, 1.442695
      %v2183 = vpow.pop %v2182
      %v2184 = vmul.f32 %v2155, 1.442695
      %v2185 = vpow.pop %v2184
      %v2186 = vmul.f32 %v2156, 1.442695
      %v2187 = vpow.pop %v2186
      %v2188 = vmul.f32 %v2157, 1.442695
      %v2189 = vpow.pop %v2188
      %v2190 = vadd.f32 %v2159, 1.0
      %v2191 = vadd.f32 %v2161, 1.0
      %v2192 = vadd.f32 %v2163, 1.0
      %v2193 = vadd.f32 %v2165, 1.0
      %v2194 = vadd.f32 %v2167, 1.0
      %v2195 = vadd.f32 %v2169, 1.0
      %v2196 = vadd.f32 %v2171, 1.0
      %v2197 = vadd.f32 %v2173, 1.0
      %v2198 = vadd.f32 %v2175, 1.0
      %v2199 = vadd.f32 %v2177, 1.0
      %v2200 = vadd.f32 %v2179, 1.0
      %v2201 = vadd.f32 %v2181, 1.0
      %v2202 = vadd.f32 %v2183, 1.0
      %v2203 = vadd.f32 %v2185, 1.0
      %v2204 = vadd.f32 %v2187, 1.0
      %v2205 = vadd.f32 %v2189, 1.0
      %v2206 = vrcp.pop %v2190
      %v2207 = vrcp.pop %v2191
      %v2208 = vrcp.pop %v2192
      %v2209 = vrcp.pop %v2193
      %v2210 = vrcp.pop %v2194
      %v2211 = vrcp.pop %v2195
      %v2212 = vrcp.pop %v2196
      %v2213 = vrcp.pop %v2197
      %v2214 = vrcp.pop %v2198
      %v2215 = vrcp.pop %v2199
      %v2216 = vrcp.pop %v2200
      %v2217 = vrcp.pop %v2201
      %v2218 = vrcp.pop %v2202
      %v2219 = vrcp.pop %v2203
      %v2220 = vrcp.pop %v2204
      %v2221 = vrcp.pop %v2205
      %v2222 = vmul.f32 %v2126, %v2206
      %v2223 = vmul.f32 %v2127, %v2207
      %v2224 = vmul.f32 %v2128, %v2208
      %v2225 = vmul.f32 %v2129, %v2209
      %v2226 = vmul.f32 %v2130, %v2210
      %v2227 = vmul.f32 %v2131, %v2211
      %v2228 = vmul.f32 %v2132, %v2212
      %v2229 = vmul.f32 %v2133, %v2213
      %v2230 = vmul.f32 %v2134, %v2214
      %v2231 = vmul.f32 %v2135, %v2215
      %v2232 = vmul.f32 %v2136, %v2216
      %v2233 = vmul.f32 %v2137, %v2217
      %v2234 = vmul.f32 %v2138, %v2218
      %v2235 = vmul.f32 %v2139, %v2219
      %v2236 = vmul.f32 %v2140, %v2220
      %v2237 = vmul.f32 %v2141, %v2221
      %2254 = vrot.lane.b32.xlu0 %v2222, 2
      %v2255 = vpop.permute.xlu0 %2254
      %2256 = vrot.lane.b32.xlu0 %v2223, 2
      %v2257 = vpop.permute.xlu0 %2256
      %2258 = vrot.lane.b32.xlu0 %v2224, 2
      %v2259 = vpop.permute.xlu0 %2258
      %2260 = vrot.lane.b32.xlu0 %v2225, 2
      %v2261 = vpop.permute.xlu0 %2260
      %2262 = vrot.lane.b32.xlu0 %v2226, 2
      %v2263 = vpop.permute.xlu0 %2262
      %2264 = vrot.lane.b32.xlu0 %v2227, 2
      %v2265 = vpop.permute.xlu0 %2264
      %2266 = vrot.lane.b32.xlu0 %v2228, 2
      %v2267 = vpop.permute.xlu0 %2266
      %2268 = vrot.lane.b32.xlu0 %v2229, 2
      %v2269 = vpop.permute.xlu0 %2268
      %2270 = vrot.lane.b32.xlu0 %v2230, 2
      %v2271 = vpop.permute.xlu0 %2270
      %2272 = vrot.lane.b32.xlu0 %v2231, 2
      %v2273 = vpop.permute.xlu0 %2272
      %2274 = vrot.lane.b32.xlu0 %v2232, 2
      %v2275 = vpop.permute.xlu0 %2274
      %2276 = vrot.lane.b32.xlu0 %v2233, 2
      %v2277 = vpop.permute.xlu0 %2276
      %2278 = vrot.lane.b32.xlu0 %v2234, 2
      %v2279 = vpop.permute.xlu0 %2278
      %2280 = vrot.lane.b32.xlu0 %v2235, 2
      %v2281 = vpop.permute.xlu0 %2280
      %2282 = vrot.lane.b32.xlu0 %v2236, 2
      %v2283 = vpop.permute.xlu0 %2282
      %2284 = vrot.lane.b32.xlu0 %v2237, 2
      %v2285 = vpop.permute.xlu0 %2284
      %2318 = vrot.lane.b32.xlu0 %v1483, 2
      %v2319 = vpop.permute.xlu0 %2318
      %2320 = vrot.lane.b32.xlu0 %v1484, 2
      %v2321 = vpop.permute.xlu0 %2320
      %2322 = vrot.lane.b32.xlu0 %v1485, 2
      %v2323 = vpop.permute.xlu0 %2322
      %2324 = vrot.lane.b32.xlu0 %v1486, 2
      %v2325 = vpop.permute.xlu0 %2324
      %2326 = vrot.lane.b32.xlu0 %v1487, 2
      %v2327 = vpop.permute.xlu0 %2326
      %2328 = vrot.lane.b32.xlu0 %v1488, 2
      %v2329 = vpop.permute.xlu0 %2328
      %2330 = vrot.lane.b32.xlu0 %v1489, 2
      %v2331 = vpop.permute.xlu0 %2330
      %2332 = vrot.lane.b32.xlu0 %v1490, 2
      %v2333 = vpop.permute.xlu0 %2332
      %2334 = vrot.lane.b32.xlu0 %v1491, 2
      %v2335 = vpop.permute.xlu0 %2334
      %2336 = vrot.lane.b32.xlu0 %v1492, 2
      %v2337 = vpop.permute.xlu0 %2336
      %2338 = vrot.lane.b32.xlu0 %v1493, 2
      %v2339 = vpop.permute.xlu0 %2338
      %2340 = vrot.lane.b32.xlu0 %v1494, 2
      %v2341 = vpop.permute.xlu0 %2340
      %2342 = vrot.lane.b32.xlu0 %v1495, 2
      %v2343 = vpop.permute.xlu0 %2342
      %2344 = vrot.lane.b32.xlu0 %v1496, 2
      %v2345 = vpop.permute.xlu0 %2344
      %2346 = vrot.lane.b32.xlu0 %v1497, 2
      %v2347 = vpop.permute.xlu0 %2346
      %2348 = vrot.lane.b32.xlu0 %v1498, 2
      %v2349 = vpop.permute.xlu0 %2348
      %2366 = vrot.lane.b32.xlu0 %v2222, 4
      %v2367 = vpop.permute.xlu0 %2366
      %2368 = vrot.lane.b32.xlu0 %v2223, 4
      %v2369 = vpop.permute.xlu0 %2368
      %2370 = vrot.lane.b32.xlu0 %v2224, 4
      %v2371 = vpop.permute.xlu0 %2370
      %2372 = vrot.lane.b32.xlu0 %v2225, 4
      %v2373 = vpop.permute.xlu0 %2372
      %2374 = vrot.lane.b32.xlu0 %v2226, 4
      %v2375 = vpop.permute.xlu0 %2374
      %2376 = vrot.lane.b32.xlu0 %v2227, 4
      %v2377 = vpop.permute.xlu0 %2376
      %2378 = vrot.lane.b32.xlu0 %v2228, 4
      %v2379 = vpop.permute.xlu0 %2378
      %2380 = vrot.lane.b32.xlu0 %v2229, 4
      %v2381 = vpop.permute.xlu0 %2380
      %2382 = vrot.lane.b32.xlu0 %v2230, 4
      %v2383 = vpop.permute.xlu0 %2382
      %2384 = vrot.lane.b32.xlu0 %v2231, 4
      %v2385 = vpop.permute.xlu0 %2384
      %2386 = vrot.lane.b32.xlu0 %v2232, 4
      %v2387 = vpop.permute.xlu0 %2386
      %2388 = vrot.lane.b32.xlu0 %v2233, 4
      %v2389 = vpop.permute.xlu0 %2388
      %2390 = vrot.lane.b32.xlu0 %v2234, 4
      %v2391 = vpop.permute.xlu0 %2390
      %2392 = vrot.lane.b32.xlu0 %v2235, 4
      %v2393 = vpop.permute.xlu0 %2392
      %2394 = vrot.lane.b32.xlu0 %v2236, 4
      %v2395 = vpop.permute.xlu0 %2394
      %2396 = vrot.lane.b32.xlu0 %v2237, 4
      %v2397 = vpop.permute.xlu0 %2396
      %vm2414 = vcmask 15360
      %v2415 = vsel %vm2414, %v1483, %v2255
      %v2416 = vsel %vm2414, %v1484, %v2257
      %v2417 = vsel %vm2414, %v1485, %v2259
      %v2418 = vsel %vm2414, %v1486, %v2261
      %v2419 = vsel %vm2414, %v1487, %v2263
      %v2420 = vsel %vm2414, %v1488, %v2265
      %v2421 = vsel %vm2414, %v1489, %v2267
      %v2422 = vsel %vm2414, %v1490, %v2269
      %v2423 = vsel %vm2414, %v1491, %v2271
      %v2424 = vsel %vm2414, %v1492, %v2273
      %v2425 = vsel %vm2414, %v1493, %v2275
      %v2426 = vsel %vm2414, %v1494, %v2277
      %v2427 = vsel %vm2414, %v1495, %v2279
      %v2428 = vsel %vm2414, %v1496, %v2281
      %v2429 = vsel %vm2414, %v1497, %v2283
      %v2430 = vsel %vm2414, %v1498, %v2285
      %v2431 = vsel %vm827, %v2415, %v2319
      %v2432 = vsel %vm827, %v2416, %v2321
      %v2433 = vsel %vm827, %v2417, %v2323
      %v2434 = vsel %vm827, %v2418, %v2325
      %v2435 = vsel %vm827, %v2419, %v2327
      %v2436 = vsel %vm827, %v2420, %v2329
      %v2437 = vsel %vm827, %v2421, %v2331
      %v2438 = vsel %vm827, %v2422, %v2333
      %v2439 = vsel %vm827, %v2423, %v2335
      %v2440 = vsel %vm827, %v2424, %v2337
      %v2441 = vsel %vm827, %v2425, %v2339
      %v2442 = vsel %vm827, %v2426, %v2341
      %v2443 = vsel %vm827, %v2427, %v2343
      %v2444 = vsel %vm827, %v2428, %v2345
      %v2445 = vsel %vm827, %v2429, %v2347
      %v2446 = vsel %vm827, %v2430, %v2349
      %vm2447 = vcmask 48128
      %v2448 = vsel %vm2447, %v2431, %v2367
      %v2449 = vsel %vm2447, %v2432, %v2369
      %v2450 = vsel %vm2447, %v2433, %v2371
      %v2451 = vsel %vm2447, %v2434, %v2373
      %v2452 = vsel %vm2447, %v2435, %v2375
      %v2453 = vsel %vm2447, %v2436, %v2377
      %v2454 = vsel %vm2447, %v2437, %v2379
      %v2455 = vsel %vm2447, %v2438, %v2381
      %v2456 = vsel %vm2447, %v2439, %v2383
      %v2457 = vsel %vm2447, %v2440, %v2385
      %v2458 = vsel %vm2447, %v2441, %v2387
      %v2459 = vsel %vm2447, %v2442, %v2389
      %v2460 = vsel %vm2447, %v2443, %v2391
      %v2461 = vsel %vm2447, %v2444, %v2393
      %v2462 = vsel %vm2447, %v2445, %v2395
      %v2463 = vsel %vm2447, %v2446, %v2397
      %v2464 = vld [vmem:[%s406] sm:$0xff]
      %v2465 = vld [vmem:[%s406 + $0x8] sm:$0xff]
      %v2466 = vld [vmem:[%s406 + $0x10] sm:$0xff]
      %v2467 = vld [vmem:[%s406 + $0x18] sm:$0xff]
      %v2468 = vld [vmem:[%s406 + $0x20] sm:$0xff]
      %v2469 = vld [vmem:[%s406 + $0x28] sm:$0xff]
      %v2470 = vld [vmem:[%s406 + $0x30] sm:$0xff]
      %v2471 = vld [vmem:[%s406 + $0x38] sm:$0xff]
      %v2472 = vld [vmem:[%s406 + $0x40] sm:$0xff]
      %v2473 = vld [vmem:[%s406 + $0x48] sm:$0xff]
      %v2474 = vld [vmem:[%s406 + $0x50] sm:$0xff]
      %v2475 = vld [vmem:[%s406 + $0x58] sm:$0xff]
      %v2476 = vld [vmem:[%s406 + $0x60] sm:$0xff]
      %v2477 = vld [vmem:[%s406 + $0x68] sm:$0xff]
      %v2478 = vld [vmem:[%s406 + $0x70] sm:$0xff]
      %v2479 = vld [vmem:[%s406 + $0x78] sm:$0xff]
      %v2480 = vadd.f32 %v2448, %v2464
      %v2481 = vadd.f32 %v2449, %v2465
      %v2482 = vadd.f32 %v2450, %v2466
      %v2483 = vadd.f32 %v2451, %v2467
      %v2484 = vadd.f32 %v2452, %v2468
      %v2485 = vadd.f32 %v2453, %v2469
      %v2486 = vadd.f32 %v2454, %v2470
      %v2487 = vadd.f32 %v2455, %v2471
      %v2488 = vadd.f32 %v2456, %v2472
      %v2489 = vadd.f32 %v2457, %v2473
      %v2490 = vadd.f32 %v2458, %v2474
      %v2491 = vadd.f32 %v2459, %v2475
      %v2492 = vadd.f32 %v2460, %v2476
      %v2493 = vadd.f32 %v2461, %v2477
      %v2494 = vadd.f32 %v2462, %v2478
      %v2495 = vadd.f32 %v2463, %v2479
      %2496 = vst.msk [vmem:[%s455] sm:$0xff] %vm499, %v2480
      %2497 = vst.msk [vmem:[%s455 + $0x8] sm:$0xff] %vm499, %v2481
      %2498 = vst.msk [vmem:[%s455 + $0x10] sm:$0xff] %vm499, %v2482
      %2499 = vst.msk [vmem:[%s455 + $0x18] sm:$0xff] %vm499, %v2483
      %2500 = vst.msk [vmem:[%s455 + $0x20] sm:$0xff] %vm499, %v2484
      %2501 = vst.msk [vmem:[%s455 + $0x28] sm:$0xff] %vm499, %v2485
      %2502 = vst.msk [vmem:[%s455 + $0x30] sm:$0xff] %vm499, %v2486
      %2503 = vst.msk [vmem:[%s455 + $0x38] sm:$0xff] %vm499, %v2487
      %2504 = vst.msk [vmem:[%s455 + $0x40] sm:$0xff] %vm499, %v2488
      %2505 = vst.msk [vmem:[%s455 + $0x48] sm:$0xff] %vm499, %v2489
      %2506 = vst.msk [vmem:[%s455 + $0x50] sm:$0xff] %vm499, %v2490
      %2507 = vst.msk [vmem:[%s455 + $0x58] sm:$0xff] %vm499, %v2491
      %2508 = vst.msk [vmem:[%s455 + $0x60] sm:$0xff] %vm499, %v2492
      %2509 = vst.msk [vmem:[%s455 + $0x68] sm:$0xff] %vm499, %v2493
      %2510 = vst.msk [vmem:[%s455 + $0x70] sm:$0xff] %vm499, %v2494
      %2511 = vst.msk [vmem:[%s455 + $0x78] sm:$0xff] %vm499, %v2495
      %s2512 = smul.u32 8, %s23
      %p2513 = scmp.lt.s32.totalorder %s22, 1
      %s2514 = scalar_select %p2513, %s22, 1
      %p2515 = scmp.lt.s32.totalorder %s2512, 15
      %s2516 = scalar_select %p2515, %s2512, 15
      %s2517 = smul.addr %s2516, 2
      %s2518 = smul.addr %s2514, 32
      %s2519 = sadd.s32 %s2517, %s2518
      %s2520 = smul.addr %s2519, 8
      %s2521 = scalar_lea.vmem %s7, %s2520
      // Predicated region
      $region49: #{residual_gsconv_forward.1} parent=47 // pred_check
        %p2522 = pneg %p234
      $region50: #{residual_gsconv_forward.1} parent=47 // pred_check_branch
        %2524 = sbr.rel (%p2522) target = $region52
      $region51: #{residual_gsconv_forward.1} parent=47 // pred_region
        %s2525 = smul.u32 8, %s23
      $region52: #{residual_gsconv_forward.1} parent=47 // pred_fallthru
        _
    $region48: #{residual_gsconv_forward.1} parent=5 // pred_fallthru
      _
    %p2526 = scmp.le.s32.totalorder 2, %s13
    // Predicated region
    $region53: #{residual_gsconv_forward.1} parent=5 // pred_check
      %p2527 = pneg %p2526
    $region54: #{residual_gsconv_forward.1} parent=5 // pred_check_branch
      %2529 = sbr.rel (%p2527) target = $region56
    $region55: #{residual_gsconv_forward.1} parent=5 // pred_region
      %s2530 = ssub.s32 %s13, 2
      // Predicated region
      $region57: #{residual_gsconv_forward.1} parent=55 // pred_check
        %p2531 = pneg %p240
      $region58: #{residual_gsconv_forward.1} parent=55 // pred_check_branch
        %2533 = sbr.rel (%p2531) target = $region60
      $region59: #{residual_gsconv_forward.1} parent=55 // pred_region
        %s2534 = smul.u32 8, %s25
        %p2535 = scmp.lt.s32.totalorder %s24, 1
        %s2536 = scalar_select %p2535, %s24, 1
        %p2537 = scmp.lt.s32.totalorder %s2534, 15
        %s2538 = scalar_select %p2537, %s2534, 15
        %s2539 = smul.addr %s2538, 2
        %s2540 = smul.addr %s2536, 32
        %s2541 = sadd.s32 %s2539, %s2540
        %s2542 = smul.addr %s2541, 8
        %s2543 = scalar_lea.vmem %s7, %s2542
      $region60: #{residual_gsconv_forward.1} parent=55 // pred_fallthru
        _
    $region56: #{residual_gsconv_forward.1} parent=5 // pred_fallthru
      _
  $region6: #{residual_gsconv_forward.1} parent=0 // loop_footer
    %s17 = sadd.s32 1, %s13
  $region7: #{residual_gsconv_forward.1} parent=0 // loop_footer_branch
    %12 = sbr.rel target = $region3
  $region8: #{residual_gsconv_forward.1} parent=0 // loop_exit
    _

</llo_original>
